<compile_context>
chip_gen: v7x
topology: tpu7x:2x2x1
jax: 0.10.0
libtpu: 0.0.40
codegen_flags: <defaults>
</compile_context>

<pallas_src>
import math
import jax
import jax.numpy as jnp
from jax import lax
from jax.experimental import pallas as pl
from jax.experimental.pallas import tpu as pltpu  # noqa: F401  (kept for TPU-specific params if needed)

# ---------------- small GPT-2-like config ----------------
T = 8            # sequence length
D = 32           # hidden size
H = 4            # attention heads
DH = D // H      # head dim
F = 4 * D        # MLP hidden
V = 64           # vocab size
L = 2            # number of transformer blocks
MAXPOS = 32      # positional table size
EPS = 1e-5
NEG_MIN = float(jnp.finfo(jnp.float32).min)
INV_SQRT_DH = 1.0 / math.sqrt(DH)


# ---------------- in-kernel math helpers ----------------
def _ln(x, g, b):
    mu = jnp.mean(x, axis=-1, keepdims=True)
    var = jnp.mean((x - mu) ** 2, axis=-1, keepdims=True)
    return (x - mu) * lax.rsqrt(var + EPS) * g + b


def _gelu_new(x):
    c = math.sqrt(2.0 / math.pi)
    return 0.5 * x * (1.0 + jnp.tanh(c * (x + 0.044715 * x * x * x)))


def _softmax(x):
    m = jnp.max(x, axis=-1, keepdims=True)
    e = jnp.exp(x - m)
    # division -> EUP reciprocal (free slot)
    return e * pl.reciprocal(jnp.sum(e, axis=-1, keepdims=True), approx=True)


def _dot(a, b):
    return jnp.dot(a, b, preferred_element_type=jnp.float32)


def _dot_t(a, b):
    # a @ b.T without an explicit in-kernel transpose (contract last dims of both).
    return lax.dot_general(a, b, (((1,), (1,)), ((), ())),
                           preferred_element_type=jnp.float32)


# ---------------- single fused kernel (all layers, no grid) ----------------
def fused_kernel(h0_ref, amask_ref,
                 ln1g_ref, ln1b_ref, wqkv_ref, bqkv_ref, wo_ref, bo_ref,
                 ln2g_ref, ln2b_ref, wfc_ref, bfc_ref, wproj_ref, bproj_ref,
                 ub1_ref, bkf_ref, b3_ref, bvwo_ref,
                 lnfg_ref, lnfb_ref, wu_ref,
                 out_ref):
    # constants built once for all layers
    row = lax.broadcasted_iota(jnp.int32, (T, T), 0)
    col = lax.broadcasted_iota(jnp.int32, (T, T), 1)
    causal = col <= row
    lane2v = lax.broadcasted_iota(jnp.int32, (1, 2 * V), 1)

    amask = amask_ref[...]                             # (1, T) additive padding mask
    lnfg, lnfb = lnfg_ref[...], lnfb_ref[...]
    wu = wu_ref[...]

    hs = h0_ref[...]                                   # carried hidden state, lives in vregs

    for l in range(L):                                 # static unroll over layers
        ln1g, ln1b = ln1g_ref[l], ln1b_ref[l]
        ln2g, ln2b = ln2g_ref[l], ln2b_ref[l]
        wqkv, bqkv = wqkv_ref[l], bqkv_ref[l]
        wo, bo = wo_ref[l], bo_ref[l]
        wfc, bfc = wfc_ref[l], bfc_ref[l]
        wproj, bproj = wproj_ref[l], bproj_ref[l]

        ci = hs                                        # circuit_input == layer input

        # ---- ln_1 and bias-free QKV matmul, shared by forward & circuit paths ----
        x = _ln(ci, ln1g, ln1b)                        # == circuit2_input_ln (bit-identical)
        qkv_nb = _dot(x, wqkv)                         # (T, 3D), one full-width matmul, no bias
        qkv = qkv_nb + bqkv                            # forward q/k/v with bias

        # ---- forward causal MHA (HF eager semantics) ----
        ctx_heads = []
        for hd in range(H):                            # static unroll over heads
            sl = slice(hd * DH, (hd + 1) * DH)
            qh = qkv[:, sl]
            kh = qkv[:, D + hd * DH:D + (hd + 1) * DH]
            vh = qkv[:, 2 * D + hd * DH:2 * D + (hd + 1) * DH]
            s = _dot_t(qh, kh) * INV_SQRT_DH
            s = jnp.where(causal, s, NEG_MIN) + amask  # same order as HF (mask, then +amask)
            ctx_heads.append(_dot(_softmax(s), vh))    # (T, DH), stays in vregs
        ctx = jnp.concatenate(ctx_heads, axis=-1)      # (T, D)
        attn_out = _dot(ctx, wo) + bo                  # ONE (T,D)@(D,D) output projection
        mid = ci + attn_out

        # ---- circuit_2 (reuses x and qkv_nb; bias terms hoisted) ----
        qc = qkv_nb[:, :D]                             # ln @ W_q
        kc = qkv_nb[:, D:2 * D]                        # ln @ W_k
        vc = qkv_nb[:, 2 * D:]                         # ln @ W_v
        ub1 = ub1_ref[l]                               # (H, D)  b_q[h] @ W_k[h]^T (host-precomputed)
        b1_all = _dot_t(ub1, x)                        # (H, T)  all heads in one matmul
        b2_prod = qc * bkf_ref[l]                      # (T, D)  single VPU multiply, reduced per head
        b3v = b3_ref[l]                                # (H, 1)  b_q[h] . b_k[h]

        pv_heads = []
        for hd in range(H):                            # static unroll over heads
            sl = slice(hd * DH, (hd + 1) * DH)
            s0 = _dot_t(qc[:, sl], kc[:, sl])          # ln Wq Wk^T ln^T           (T, T)
            b1 = b1_all[hd:hd + 1, :]                  # rank-1: (1, T) broadcast over queries
            b2 = jnp.sum(b2_prod[:, sl], axis=-1, keepdims=True)   # (T, 1) broadcast over keys
            s = (s0 + b1 + b2 + b3v[hd:hd + 1, :]) * INV_SQRT_DH
            s = jnp.where(causal, s, NEG_MIN)          # circuit path: causal mask only (as reference)
            pv_heads.append(_dot(_softmax(s), vc[:, sl]))           # (T, DH)
        pv = jnp.concatenate(pv_heads, axis=-1)        # (T, D)
        # sum_h p_h @ (ln W_v[h] W_o[h]) == (concat_h p_h @ ln W_v[h]) @ W_o ; plus b_v @ W_o
        circuit_2 = _dot(pv, wo) + bvwo_ref[l]

        residual_stream = ci + circuit_2 + bo          # circuit_1 + circuit_2 + W_obias

        # ---- batched MLP pass: forward ff rows + circuit stream rows in one fc/gelu/proj ----
        mlp_in = jnp.concatenate(
            [_ln(mid, ln2g, ln2b), _ln(residual_stream, ln2g, ln2b)], axis=0)   # (2T, D)
        mlp_out = _dot(_gelu_new(_dot(mlp_in, wfc) + bfc), wproj)               # (2T, D)
        hs = mid + mlp_out[:T] + bproj                                          # block output
        # circuit_5 = stream_all - c3 - c4  =>  circuit_sum = residual_stream + stream_all + bproj
        # (NOTE: W_mlp = W_mlp1 @ W_mlp2 in the reference is dead code and is skipped.)
        circuit_sum_last = (residual_stream + mlp_out[T:] + bproj)[T - 1:T, :]  # + circuit_6

        # ---- batched unembedding: FFN rows + circuit row in one matmul ----
        lnf_h = _ln(hs, lnfg, lnfb)
        u_in = jnp.concatenate([lnf_h, _ln(circuit_sum_last, lnfg, lnfb)], axis=0)  # (T+1, D)
        u_out = _dot(u_in, wu)                          # (T+1, V)
        ffn_last = u_out[T - 1:T, :]                    # lm_head on all rows, slice last   (1, V)
        circ_last = u_out[T:T + 1, :]                   # circuit logits at last token      (1, V)
        prod_last = _dot(lnf_h[T - 1:T, :], wu)         # kept as an independent matmul (check intent)
        mse_fp = jnp.sum((ffn_last - prod_last) ** 2, axis=-1, keepdims=True) * (1.0 / V)
        mse_fc = jnp.sum((ffn_last - circ_last) ** 2, axis=-1, keepdims=True) * (1.0 / V)

        # ---- one lane-dense packed (2, 2V) = (2, 128) slab per layer ----
        row0 = jnp.concatenate([ffn_last, circ_last], axis=-1)                 # (1, 128), unmasked lanes
        row1 = jnp.where(lane2v == 0, mse_fp, jnp.where(lane2v == 1, mse_fc, 0.0))
        out_ref[l] = jnp.concatenate([row0, row1], axis=0)                     # single (2, 128) store


# ---------------- pallas_call wrapper (single call, no grid, all-VMEM) ----------------
def run_fused(hidden0, amask_add, stacked, aux, lnf_g, lnf_b, w_unemb):
    num_layers = stacked['ln1_g'].shape[0]
    return pl.pallas_call(
        fused_kernel,
        out_shape=jax.ShapeDtypeStruct((num_layers, 2, 2 * V), jnp.float32),
    )(hidden0, amask_add,
      stacked['ln1_g'], stacked['ln1_b'], stacked['w_qkv'], stacked['b_qkv'],
      stacked['w_o'], stacked['b_o'], stacked['ln2_g'], stacked['ln2_b'],
      stacked['w_fc'], stacked['b_fc'], stacked['w_proj'], stacked['b_proj'],
      aux['ub1'], aux['bkf'], aux['b3'], aux['bvwo'],
      lnf_g, lnf_b, w_unemb)


# ---------------- main ----------------
if __name__ == "__main__":
    root = jax.random.PRNGKey(0)
    k_tok, k_emb, k_pos, k_lnf, *k_layers = jax.random.split(root, 4 + L)

    s = 0.02
    wte = (s * jax.random.normal(k_emb, (V, D))).astype(jnp.float32)
    wpe = (0.01 * jax.random.normal(k_pos, (MAXPOS, D))).astype(jnp.float32)
    k_lnf1, k_lnf2 = jax.random.split(k_lnf)
    lnf_g = (1.0 + s * jax.random.normal(k_lnf1, (1, D))).astype(jnp.float32)
    lnf_b = (s * jax.random.normal(k_lnf2, (1, D))).astype(jnp.float32)
    w_unemb = wte.T                                   # tied lm_head: U = Unembedding^T, (D, V)

    def init_layer(k):
        ks = jax.random.split(k, 12)
        return dict(
            ln1_g=(1.0 + s * jax.random.normal(ks[0], (1, D))).astype(jnp.float32),
            ln1_b=(s * jax.random.normal(ks[1], (1, D))).astype(jnp.float32),
            w_qkv=(s * jax.random.normal(ks[2], (D, 3 * D))).astype(jnp.float32),
            b_qkv=(s * jax.random.normal(ks[3], (1, 3 * D))).astype(jnp.float32),
            w_o=(s * jax.random.normal(ks[4], (D, D))).astype(jnp.float32),
            b_o=(s * jax.random.normal(ks[5], (1, D))).astype(jnp.float32),
            ln2_g=(1.0 + s * jax.random.normal(ks[6], (1, D))).astype(jnp.float32),
            ln2_b=(s * jax.random.normal(ks[7], (1, D))).astype(jnp.float32),
            w_fc=(s * jax.random.normal(ks[8], (D, F))).astype(jnp.float32),
            b_fc=(s * jax.random.normal(ks[9], (1, F))).astype(jnp.float32),
            w_proj=(s * jax.random.normal(ks[10], (F, D))).astype(jnp.float32),
            b_proj=(s * jax.random.normal(ks[11], (1, D))).astype(jnp.float32),
        )

    layers = [init_layer(k) for k in k_layers]
    stacked = {k: jnp.stack([p[k] for p in layers], axis=0) for k in layers[0]}

    # parameter-only circuit terms hoisted out of the kernel (computed once on host/XLA)
    bq_h = stacked['b_qkv'][:, 0, :D].reshape(L, H, DH)
    bk_h = stacked['b_qkv'][:, 0, D:2 * D].reshape(L, H, DH)
    bv_row = stacked['b_qkv'][:, :, 2 * D:]                                # (L, 1, D)
    wk_heads = stacked['w_qkv'][:, :, D:2 * D].reshape(L, D, H, DH)
    ub1 = jnp.einsum('lhd,lihd->lhi', bq_h, wk_heads)                      # b_q[h] @ W_k[h]^T (L, H, D)
    b3 = jnp.sum(bq_h * bk_h, axis=-1)[:, :, None]                         # b_q[h].b_k[h]     (L, H, 1)
    bvwo = jnp.einsum('lrd,lde->lre', bv_row, stacked['w_o'])              # b_v @ W_o         (L, 1, D)
    bkf = stacked['b_qkv'][:, :, D:2 * D]                                  # key bias, flat    (L, 1, D)
    aux = dict(ub1=ub1, bkf=bkf, b3=b3, bvwo=bvwo)

    # inputs: {"input_ids": (1, T) int32, "attention_mask": (1, T)}
    input_ids = jax.random.randint(k_tok, (1, T), 0, V)
    attention_mask = jnp.ones((1, T), jnp.float32)
    amask_add = (1.0 - attention_mask) * NEG_MIN      # (1, T) additive mask

    # embeddings (glue): wte lookup + wpe  (data-dependent gather stays on host)
    hidden0 = wte[input_ids[0]] + wpe[:T]             # (T, D)

    result = run_fused(hidden0, amask_add, stacked, aux, lnf_g, lnf_b, w_unemb)
    result = jax.block_until_ready(result)

    ffn_logits = result[:, 0, :V]                     # (L, V)
    circuit_logits = result[:, 0, V:]                 # (L, V)
    mse_ffn_product = result[:, 1, 0]                 # (L,)
    mse_ffn_circuit = result[:, 1, 1]                 # (L,)
    # top-10 token ids (the reference only prints these; one cheap host-side top_k)
    # TODO(synk): tokenizer.decode of the top-10 ids has no Pallas/JAX equivalent (string op).
    top10_ffn = lax.top_k(ffn_logits, 10)[1]
    top10_circuit = lax.top_k(circuit_logits, 10)[1]

    ok = bool(jnp.all(jnp.isfinite(result)))
    ok &= bool(jnp.all(mse_ffn_product < 1e-6))       # FFN vs matrix product with U
    ok &= bool(jnp.all(mse_ffn_circuit < 1e-3))       # block forward vs circuit sum
    ok &= top10_ffn.shape == (L, 10) and top10_circuit.shape == (L, 10)

    print("KERNEL_OK" if ok else "KERNEL_MISMATCH")
</pallas_src>

<mosaic_0001>
module attributes {stable_mosaic.version = 11 : i64} {
  func.func @fused_kernel(%arg0: memref<8x32xf32, #tpu.memory_space<vmem>>, %arg1: memref<1x8xf32, #tpu.memory_space<vmem>>, %arg2: memref<2x1x32xf32, #tpu.memory_space<vmem>>, %arg3: memref<2x1x32xf32, #tpu.memory_space<vmem>>, %arg4: memref<2x32x96xf32, #tpu.memory_space<vmem>>, %arg5: memref<2x1x96xf32, #tpu.memory_space<vmem>>, %arg6: memref<2x32x32xf32, #tpu.memory_space<vmem>>, %arg7: memref<2x1x32xf32, #tpu.memory_space<vmem>>, %arg8: memref<2x1x32xf32, #tpu.memory_space<vmem>>, %arg9: memref<2x1x32xf32, #tpu.memory_space<vmem>>, %arg10: memref<2x32x128xf32, #tpu.memory_space<vmem>>, %arg11: memref<2x1x128xf32, #tpu.memory_space<vmem>>, %arg12: memref<2x128x32xf32, #tpu.memory_space<vmem>>, %arg13: memref<2x1x32xf32, #tpu.memory_space<vmem>>, %arg14: memref<2x4x32xf32, #tpu.memory_space<vmem>>, %arg15: memref<2x1x32xf32, #tpu.memory_space<vmem>>, %arg16: memref<2x4x1xf32, #tpu.memory_space<vmem>>, %arg17: memref<2x1x32xf32, #tpu.memory_space<vmem>>, %arg18: memref<1x32xf32, #tpu.memory_space<vmem>>, %arg19: memref<1x32xf32, #tpu.memory_space<vmem>>, %arg20: memref<32x64xf32, #tpu.memory_space<vmem>>, %arg21: memref<2x2x128xf32, #tpu.memory_space<vmem>>) attributes {dimension_semantics = [], scalar_prefetch = 0 : i64, scratch_operands = 0 : i64, tpu.core_type = #tpu.core_type<tc>} {
    %0 = tpu.iota {dimensions = array<i32: 0>} : vector<8x8xi32>
    %1 = tpu.iota {dimensions = array<i32: 1>} : vector<8x8xi32>
    %2 = arith.cmpi sle, %1, %0 : vector<8x8xi32>
    %3 = tpu.iota {dimensions = array<i32: 1>} : vector<1x128xi32>
    %c0 = arith.constant 0 : index
    %c0_0 = arith.constant 0 : index
    %4 = vector.load %arg1[%c0, %c0_0] : memref<1x8xf32, #tpu.memory_space<vmem>>, vector<1x8xf32>
    %c0_1 = arith.constant 0 : index
    %c0_2 = arith.constant 0 : index
    %5 = vector.load %arg18[%c0_1, %c0_2] : memref<1x32xf32, #tpu.memory_space<vmem>>, vector<1x32xf32>
    %c0_3 = arith.constant 0 : index
    %c0_4 = arith.constant 0 : index
    %6 = vector.load %arg19[%c0_3, %c0_4] : memref<1x32xf32, #tpu.memory_space<vmem>>, vector<1x32xf32>
    %c0_5 = arith.constant 0 : index
    %c0_6 = arith.constant 0 : index
    %7 = vector.load %arg20[%c0_5, %c0_6] : memref<32x64xf32, #tpu.memory_space<vmem>>, vector<32x64xf32>
    %c0_7 = arith.constant 0 : index
    %c0_8 = arith.constant 0 : index
    %8 = vector.load %arg0[%c0_7, %c0_8] : memref<8x32xf32, #tpu.memory_space<vmem>>, vector<8x32xf32>
    %c0_9 = arith.constant 0 : index
    %c0_10 = arith.constant 0 : index
    %c0_11 = arith.constant 0 : index
    %9 = vector.load %arg2[%c0_9, %c0_10, %c0_11] : memref<2x1x32xf32, #tpu.memory_space<vmem>>, vector<1x1x32xf32>
    %10 = vector.shape_cast %9 : vector<1x1x32xf32> to vector<1x32xf32>
    %c0_12 = arith.constant 0 : index
    %c0_13 = arith.constant 0 : index
    %c0_14 = arith.constant 0 : index
    %11 = vector.load %arg3[%c0_12, %c0_13, %c0_14] : memref<2x1x32xf32, #tpu.memory_space<vmem>>, vector<1x1x32xf32>
    %12 = vector.shape_cast %11 : vector<1x1x32xf32> to vector<1x32xf32>
    %c0_15 = arith.constant 0 : index
    %c0_16 = arith.constant 0 : index
    %c0_17 = arith.constant 0 : index
    %13 = vector.load %arg8[%c0_15, %c0_16, %c0_17] : memref<2x1x32xf32, #tpu.memory_space<vmem>>, vector<1x1x32xf32>
    %14 = vector.shape_cast %13 : vector<1x1x32xf32> to vector<1x32xf32>
    %c0_18 = arith.constant 0 : index
    %c0_19 = arith.constant 0 : index
    %c0_20 = arith.constant 0 : index
    %15 = vector.load %arg9[%c0_18, %c0_19, %c0_20] : memref<2x1x32xf32, #tpu.memory_space<vmem>>, vector<1x1x32xf32>
    %16 = vector.shape_cast %15 : vector<1x1x32xf32> to vector<1x32xf32>
    %c0_21 = arith.constant 0 : index
    %c0_22 = arith.constant 0 : index
    %c0_23 = arith.constant 0 : index
    %17 = vector.load %arg4[%c0_21, %c0_22, %c0_23] : memref<2x32x96xf32, #tpu.memory_space<vmem>>, vector<1x32x96xf32>
    %18 = vector.shape_cast %17 : vector<1x32x96xf32> to vector<32x96xf32>
    %c0_24 = arith.constant 0 : index
    %c0_25 = arith.constant 0 : index
    %c0_26 = arith.constant 0 : index
    %19 = vector.load %arg5[%c0_24, %c0_25, %c0_26] : memref<2x1x96xf32, #tpu.memory_space<vmem>>, vector<1x1x96xf32>
    %20 = vector.shape_cast %19 : vector<1x1x96xf32> to vector<1x96xf32>
    %c0_27 = arith.constant 0 : index
    %c0_28 = arith.constant 0 : index
    %c0_29 = arith.constant 0 : index
    %21 = vector.load %arg6[%c0_27, %c0_28, %c0_29] : memref<2x32x32xf32, #tpu.memory_space<vmem>>, vector<1x32x32xf32>
    %22 = vector.shape_cast %21 : vector<1x32x32xf32> to vector<32x32xf32>
    %c0_30 = arith.constant 0 : index
    %c0_31 = arith.constant 0 : index
    %c0_32 = arith.constant 0 : index
    %23 = vector.load %arg7[%c0_30, %c0_31, %c0_32] : memref<2x1x32xf32, #tpu.memory_space<vmem>>, vector<1x1x32xf32>
    %24 = vector.shape_cast %23 : vector<1x1x32xf32> to vector<1x32xf32>
    %c0_33 = arith.constant 0 : index
    %c0_34 = arith.constant 0 : index
    %c0_35 = arith.constant 0 : index
    %25 = vector.load %arg10[%c0_33, %c0_34, %c0_35] : memref<2x32x128xf32, #tpu.memory_space<vmem>>, vector<1x32x128xf32>
    %26 = vector.shape_cast %25 : vector<1x32x128xf32> to vector<32x128xf32>
    %c0_36 = arith.constant 0 : index
    %c0_37 = arith.constant 0 : index
    %c0_38 = arith.constant 0 : index
    %27 = vector.load %arg11[%c0_36, %c0_37, %c0_38] : memref<2x1x128xf32, #tpu.memory_space<vmem>>, vector<1x1x128xf32>
    %28 = vector.shape_cast %27 : vector<1x1x128xf32> to vector<1x128xf32>
    %c0_39 = arith.constant 0 : index
    %c0_40 = arith.constant 0 : index
    %c0_41 = arith.constant 0 : index
    %29 = vector.load %arg12[%c0_39, %c0_40, %c0_41] : memref<2x128x32xf32, #tpu.memory_space<vmem>>, vector<1x128x32xf32>
    %30 = vector.shape_cast %29 : vector<1x128x32xf32> to vector<128x32xf32>
    %c0_42 = arith.constant 0 : index
    %c0_43 = arith.constant 0 : index
    %c0_44 = arith.constant 0 : index
    %31 = vector.load %arg13[%c0_42, %c0_43, %c0_44] : memref<2x1x32xf32, #tpu.memory_space<vmem>>, vector<1x1x32xf32>
    %32 = vector.shape_cast %31 : vector<1x1x32xf32> to vector<1x32xf32>
    %cst = arith.constant dense<0.000000e+00> : vector<8xf32>
    %33 = vector.multi_reduction <add>, %8, %cst [1] : vector<8x32xf32> to vector<8xf32>
    %34 = vector.shape_cast %33 : vector<8xf32> to vector<8x1xf32>
    %cst_45 = arith.constant 3.200000e+01 : f32
    %35 = vector.broadcast %cst_45 : f32 to vector<8x1xf32>
    %36 = arith.divf %34, %35 : vector<8x1xf32>
    %37 = vector.broadcast %36 : vector<8x1xf32> to vector<8x32xf32>
    %38 = arith.subf %8, %37 : vector<8x32xf32>
    %39 = arith.mulf %38, %38 : vector<8x32xf32>
    %cst_46 = arith.constant dense<0.000000e+00> : vector<8xf32>
    %40 = vector.multi_reduction <add>, %39, %cst_46 [1] : vector<8x32xf32> to vector<8xf32>
    %41 = vector.shape_cast %40 : vector<8xf32> to vector<8x1xf32>
    %cst_47 = arith.constant 3.200000e+01 : f32
    %42 = vector.broadcast %cst_47 : f32 to vector<8x1xf32>
    %43 = arith.divf %41, %42 : vector<8x1xf32>
    %44 = vector.broadcast %36 : vector<8x1xf32> to vector<8x32xf32>
    %45 = arith.subf %8, %44 : vector<8x32xf32>
    %cst_48 = arith.constant 9.99999974E-6 : f32
    %46 = vector.broadcast %cst_48 : f32 to vector<8x1xf32>
    %47 = arith.addf %43, %46 : vector<8x1xf32>
    %48 = math.rsqrt %47 : vector<8x1xf32>
    %49 = vector.broadcast %48 : vector<8x1xf32> to vector<8x32xf32>
    %50 = arith.mulf %45, %49 : vector<8x32xf32>
    %51 = vector.broadcast %10 : vector<1x32xf32> to vector<8x32xf32>
    %52 = arith.mulf %50, %51 : vector<8x32xf32>
    %53 = vector.broadcast %12 : vector<1x32xf32> to vector<8x32xf32>
    %54 = arith.addf %52, %53 : vector<8x32xf32>
    %cst_49 = arith.constant dense<0.000000e+00> : vector<8x96xf32>
    %55 = tpu.matmul %54, %18, %cst_49 {dimension_numbers = #tpu.dot_dimension_numbers<[1], [0], [0], [1], [0, 0, 1, 1], [], []>} : vector<8x32xf32>, vector<32x96xf32>, vector<8x96xf32> -> vector<8x96xf32>
    %56 = vector.broadcast %20 : vector<1x96xf32> to vector<8x96xf32>
    %57 = arith.addf %55, %56 : vector<8x96xf32>
    %58 = vector.extract_strided_slice %57 {offsets = [0, 0], sizes = [8, 8], strides = [1, 1]} : vector<8x96xf32> to vector<8x8xf32>
    %59 = vector.extract_strided_slice %57 {offsets = [0, 32], sizes = [8, 8], strides = [1, 1]} : vector<8x96xf32> to vector<8x8xf32>
    %60 = vector.extract_strided_slice %57 {offsets = [0, 64], sizes = [8, 8], strides = [1, 1]} : vector<8x96xf32> to vector<8x8xf32>
    %cst_50 = arith.constant dense<0.000000e+00> : vector<8x8xf32>
    %61 = tpu.matmul %58, %59, %cst_50 {dimension_numbers = #tpu.dot_dimension_numbers<[1], [1], [0], [0], [0, 0, 1, 0], [], []>} : vector<8x8xf32>, vector<8x8xf32>, vector<8x8xf32> -> vector<8x8xf32>
    %cst_51 = arith.constant 0.353553385 : f32
    %62 = vector.broadcast %cst_51 : f32 to vector<8x8xf32>
    %63 = arith.mulf %61, %62 : vector<8x8xf32>
    %cst_52 = arith.constant -3.40282347E+38 : f32
    %64 = vector.broadcast %cst_52 : f32 to vector<8x8xf32>
    %65 = arith.select %2, %63, %64 : vector<8x8xi1>, vector<8x8xf32>
    %66 = vector.broadcast %4 : vector<1x8xf32> to vector<8x8xf32>
    %67 = arith.addf %65, %66 : vector<8x8xf32>
    %cst_53 = arith.constant dense<0xFF800000> : vector<8xf32>
    %68 = vector.multi_reduction <maximumf>, %67, %cst_53 [1] : vector<8x8xf32> to vector<8xf32>
    %69 = vector.shape_cast %68 : vector<8xf32> to vector<8x1xf32>
    %70 = vector.broadcast %69 : vector<8x1xf32> to vector<8x8xf32>
    %71 = arith.subf %67, %70 : vector<8x8xf32>
    %72 = math.exp %71 : vector<8x8xf32>
    %cst_54 = arith.constant dense<0.000000e+00> : vector<8xf32>
    %73 = vector.multi_reduction <add>, %72, %cst_54 [1] : vector<8x8xf32> to vector<8xf32>
    %74 = vector.shape_cast %73 : vector<8xf32> to vector<8x1xf32>
    %75 = tpu.reciprocal %74 {approx = true} : vector<8x1xf32> -> vector<8x1xf32>
    %76 = vector.broadcast %75 : vector<8x1xf32> to vector<8x8xf32>
    %77 = arith.mulf %72, %76 : vector<8x8xf32>
    %cst_55 = arith.constant dense<0.000000e+00> : vector<8x8xf32>
    %78 = tpu.matmul %77, %60, %cst_55 {dimension_numbers = #tpu.dot_dimension_numbers<[1], [0], [0], [1], [0, 0, 1, 1], [], []>} : vector<8x8xf32>, vector<8x8xf32>, vector<8x8xf32> -> vector<8x8xf32>
    %79 = vector.extract_strided_slice %57 {offsets = [0, 8], sizes = [8, 8], strides = [1, 1]} : vector<8x96xf32> to vector<8x8xf32>
    %80 = vector.extract_strided_slice %57 {offsets = [0, 40], sizes = [8, 8], strides = [1, 1]} : vector<8x96xf32> to vector<8x8xf32>
    %81 = vector.extract_strided_slice %57 {offsets = [0, 72], sizes = [8, 8], strides = [1, 1]} : vector<8x96xf32> to vector<8x8xf32>
    %cst_56 = arith.constant dense<0.000000e+00> : vector<8x8xf32>
    %82 = tpu.matmul %79, %80, %cst_56 {dimension_numbers = #tpu.dot_dimension_numbers<[1], [1], [0], [0], [0, 0, 1, 0], [], []>} : vector<8x8xf32>, vector<8x8xf32>, vector<8x8xf32> -> vector<8x8xf32>
    %cst_57 = arith.constant 0.353553385 : f32
    %83 = vector.broadcast %cst_57 : f32 to vector<8x8xf32>
    %84 = arith.mulf %82, %83 : vector<8x8xf32>
    %cst_58 = arith.constant -3.40282347E+38 : f32
    %85 = vector.broadcast %cst_58 : f32 to vector<8x8xf32>
    %86 = arith.select %2, %84, %85 : vector<8x8xi1>, vector<8x8xf32>
    %87 = vector.broadcast %4 : vector<1x8xf32> to vector<8x8xf32>
    %88 = arith.addf %86, %87 : vector<8x8xf32>
    %cst_59 = arith.constant dense<0xFF800000> : vector<8xf32>
    %89 = vector.multi_reduction <maximumf>, %88, %cst_59 [1] : vector<8x8xf32> to vector<8xf32>
    %90 = vector.shape_cast %89 : vector<8xf32> to vector<8x1xf32>
    %91 = vector.broadcast %90 : vector<8x1xf32> to vector<8x8xf32>
    %92 = arith.subf %88, %91 : vector<8x8xf32>
    %93 = math.exp %92 : vector<8x8xf32>
    %cst_60 = arith.constant dense<0.000000e+00> : vector<8xf32>
    %94 = vector.multi_reduction <add>, %93, %cst_60 [1] : vector<8x8xf32> to vector<8xf32>
    %95 = vector.shape_cast %94 : vector<8xf32> to vector<8x1xf32>
    %96 = tpu.reciprocal %95 {approx = true} : vector<8x1xf32> -> vector<8x1xf32>
    %97 = vector.broadcast %96 : vector<8x1xf32> to vector<8x8xf32>
    %98 = arith.mulf %93, %97 : vector<8x8xf32>
    %cst_61 = arith.constant dense<0.000000e+00> : vector<8x8xf32>
    %99 = tpu.matmul %98, %81, %cst_61 {dimension_numbers = #tpu.dot_dimension_numbers<[1], [0], [0], [1], [0, 0, 1, 1], [], []>} : vector<8x8xf32>, vector<8x8xf32>, vector<8x8xf32> -> vector<8x8xf32>
    %100 = vector.extract_strided_slice %57 {offsets = [0, 16], sizes = [8, 8], strides = [1, 1]} : vector<8x96xf32> to vector<8x8xf32>
    %101 = vector.extract_strided_slice %57 {offsets = [0, 48], sizes = [8, 8], strides = [1, 1]} : vector<8x96xf32> to vector<8x8xf32>
    %102 = vector.extract_strided_slice %57 {offsets = [0, 80], sizes = [8, 8], strides = [1, 1]} : vector<8x96xf32> to vector<8x8xf32>
    %cst_62 = arith.constant dense<0.000000e+00> : vector<8x8xf32>
    %103 = tpu.matmul %100, %101, %cst_62 {dimension_numbers = #tpu.dot_dimension_numbers<[1], [1], [0], [0], [0, 0, 1, 0], [], []>} : vector<8x8xf32>, vector<8x8xf32>, vector<8x8xf32> -> vector<8x8xf32>
    %cst_63 = arith.constant 0.353553385 : f32
    %104 = vector.broadcast %cst_63 : f32 to vector<8x8xf32>
    %105 = arith.mulf %103, %104 : vector<8x8xf32>
    %cst_64 = arith.constant -3.40282347E+38 : f32
    %106 = vector.broadcast %cst_64 : f32 to vector<8x8xf32>
    %107 = arith.select %2, %105, %106 : vector<8x8xi1>, vector<8x8xf32>
    %108 = vector.broadcast %4 : vector<1x8xf32> to vector<8x8xf32>
    %109 = arith.addf %107, %108 : vector<8x8xf32>
    %cst_65 = arith.constant dense<0xFF800000> : vector<8xf32>
    %110 = vector.multi_reduction <maximumf>, %109, %cst_65 [1] : vector<8x8xf32> to vector<8xf32>
    %111 = vector.shape_cast %110 : vector<8xf32> to vector<8x1xf32>
    %112 = vector.broadcast %111 : vector<8x1xf32> to vector<8x8xf32>
    %113 = arith.subf %109, %112 : vector<8x8xf32>
    %114 = math.exp %113 : vector<8x8xf32>
    %cst_66 = arith.constant dense<0.000000e+00> : vector<8xf32>
    %115 = vector.multi_reduction <add>, %114, %cst_66 [1] : vector<8x8xf32> to vector<8xf32>
    %116 = vector.shape_cast %115 : vector<8xf32> to vector<8x1xf32>
    %117 = tpu.reciprocal %116 {approx = true} : vector<8x1xf32> -> vector<8x1xf32>
    %118 = vector.broadcast %117 : vector<8x1xf32> to vector<8x8xf32>
    %119 = arith.mulf %114, %118 : vector<8x8xf32>
    %cst_67 = arith.constant dense<0.000000e+00> : vector<8x8xf32>
    %120 = tpu.matmul %119, %102, %cst_67 {dimension_numbers = #tpu.dot_dimension_numbers<[1], [0], [0], [1], [0, 0, 1, 1], [], []>} : vector<8x8xf32>, vector<8x8xf32>, vector<8x8xf32> -> vector<8x8xf32>
    %121 = vector.extract_strided_slice %57 {offsets = [0, 24], sizes = [8, 8], strides = [1, 1]} : vector<8x96xf32> to vector<8x8xf32>
    %122 = vector.extract_strided_slice %57 {offsets = [0, 56], sizes = [8, 8], strides = [1, 1]} : vector<8x96xf32> to vector<8x8xf32>
    %123 = vector.extract_strided_slice %57 {offsets = [0, 88], sizes = [8, 8], strides = [1, 1]} : vector<8x96xf32> to vector<8x8xf32>
    %cst_68 = arith.constant dense<0.000000e+00> : vector<8x8xf32>
    %124 = tpu.matmul %121, %122, %cst_68 {dimension_numbers = #tpu.dot_dimension_numbers<[1], [1], [0], [0], [0, 0, 1, 0], [], []>} : vector<8x8xf32>, vector<8x8xf32>, vector<8x8xf32> -> vector<8x8xf32>
    %cst_69 = arith.constant 0.353553385 : f32
    %125 = vector.broadcast %cst_69 : f32 to vector<8x8xf32>
    %126 = arith.mulf %124, %125 : vector<8x8xf32>
    %cst_70 = arith.constant -3.40282347E+38 : f32
    %127 = vector.broadcast %cst_70 : f32 to vector<8x8xf32>
    %128 = arith.select %2, %126, %127 : vector<8x8xi1>, vector<8x8xf32>
    %129 = vector.broadcast %4 : vector<1x8xf32> to vector<8x8xf32>
    %130 = arith.addf %128, %129 : vector<8x8xf32>
    %cst_71 = arith.constant dense<0xFF800000> : vector<8xf32>
    %131 = vector.multi_reduction <maximumf>, %130, %cst_71 [1] : vector<8x8xf32> to vector<8xf32>
    %132 = vector.shape_cast %131 : vector<8xf32> to vector<8x1xf32>
    %133 = vector.broadcast %132 : vector<8x1xf32> to vector<8x8xf32>
    %134 = arith.subf %130, %133 : vector<8x8xf32>
    %135 = math.exp %134 : vector<8x8xf32>
    %cst_72 = arith.constant dense<0.000000e+00> : vector<8xf32>
    %136 = vector.multi_reduction <add>, %135, %cst_72 [1] : vector<8x8xf32> to vector<8xf32>
    %137 = vector.shape_cast %136 : vector<8xf32> to vector<8x1xf32>
    %138 = tpu.reciprocal %137 {approx = true} : vector<8x1xf32> -> vector<8x1xf32>
    %139 = vector.broadcast %138 : vector<8x1xf32> to vector<8x8xf32>
    %140 = arith.mulf %135, %139 : vector<8x8xf32>
    %cst_73 = arith.constant dense<0.000000e+00> : vector<8x8xf32>
    %141 = tpu.matmul %140, %123, %cst_73 {dimension_numbers = #tpu.dot_dimension_numbers<[1], [0], [0], [1], [0, 0, 1, 1], [], []>} : vector<8x8xf32>, vector<8x8xf32>, vector<8x8xf32> -> vector<8x8xf32>
    %142 = tpu.concatenate %78, %99, %120, %141 in 1 : vector<8x8xf32>, vector<8x8xf32>, vector<8x8xf32>, vector<8x8xf32> -> vector<8x32xf32>
    %cst_74 = arith.constant dense<0.000000e+00> : vector<8x32xf32>
    %143 = tpu.matmul %142, %22, %cst_74 {dimension_numbers = #tpu.dot_dimension_numbers<[1], [0], [0], [1], [0, 0, 1, 1], [], []>} : vector<8x32xf32>, vector<32x32xf32>, vector<8x32xf32> -> vector<8x32xf32>
    %144 = vector.broadcast %24 : vector<1x32xf32> to vector<8x32xf32>
    %145 = arith.addf %143, %144 : vector<8x32xf32>
    %146 = arith.addf %8, %145 : vector<8x32xf32>
    %147 = vector.extract_strided_slice %55 {offsets = [0, 0], sizes = [8, 32], strides = [1, 1]} : vector<8x96xf32> to vector<8x32xf32>
    %148 = vector.extract_strided_slice %55 {offsets = [0, 32], sizes = [8, 32], strides = [1, 1]} : vector<8x96xf32> to vector<8x32xf32>
    %149 = vector.extract_strided_slice %55 {offsets = [0, 64], sizes = [8, 32], strides = [1, 1]} : vector<8x96xf32> to vector<8x32xf32>
    %c0_75 = arith.constant 0 : index
    %c0_76 = arith.constant 0 : index
    %c0_77 = arith.constant 0 : index
    %150 = vector.load %arg14[%c0_75, %c0_76, %c0_77] : memref<2x4x32xf32, #tpu.memory_space<vmem>>, vector<1x4x32xf32>
    %151 = vector.shape_cast %150 : vector<1x4x32xf32> to vector<4x32xf32>
    %cst_78 = arith.constant dense<0.000000e+00> : vector<4x8xf32>
    %152 = tpu.matmul %151, %54, %cst_78 {dimension_numbers = #tpu.dot_dimension_numbers<[1], [1], [0], [0], [0, 0, 1, 0], [], []>} : vector<4x32xf32>, vector<8x32xf32>, vector<4x8xf32> -> vector<4x8xf32>
    %c0_79 = arith.constant 0 : index
    %c0_80 = arith.constant 0 : index
    %c0_81 = arith.constant 0 : index
    %153 = vector.load %arg15[%c0_79, %c0_80, %c0_81] : memref<2x1x32xf32, #tpu.memory_space<vmem>>, vector<1x1x32xf32>
    %154 = vector.shape_cast %153 : vector<1x1x32xf32> to vector<1x32xf32>
    %155 = vector.broadcast %154 : vector<1x32xf32> to vector<8x32xf32>
    %156 = arith.mulf %147, %155 : vector<8x32xf32>
    %c0_82 = arith.constant 0 : index
    %c0_83 = arith.constant 0 : index
    %c0_84 = arith.constant 0 : index
    %157 = vector.load %arg16[%c0_82, %c0_83, %c0_84] : memref<2x4x1xf32, #tpu.memory_space<vmem>>, vector<1x4x1xf32>
    %158 = vector.shape_cast %157 : vector<1x4x1xf32> to vector<4x1xf32>
    %159 = vector.extract_strided_slice %147 {offsets = [0, 0], sizes = [8, 8], strides = [1, 1]} : vector<8x32xf32> to vector<8x8xf32>
    %160 = vector.extract_strided_slice %148 {offsets = [0, 0], sizes = [8, 8], strides = [1, 1]} : vector<8x32xf32> to vector<8x8xf32>
    %cst_85 = arith.constant dense<0.000000e+00> : vector<8x8xf32>
    %161 = tpu.matmul %159, %160, %cst_85 {dimension_numbers = #tpu.dot_dimension_numbers<[1], [1], [0], [0], [0, 0, 1, 0], [], []>} : vector<8x8xf32>, vector<8x8xf32>, vector<8x8xf32> -> vector<8x8xf32>
    %162 = vector.extract_strided_slice %152 {offsets = [0, 0], sizes = [1, 8], strides = [1, 1]} : vector<4x8xf32> to vector<1x8xf32>
    %163 = vector.extract_strided_slice %156 {offsets = [0, 0], sizes = [8, 8], strides = [1, 1]} : vector<8x32xf32> to vector<8x8xf32>
    %cst_86 = arith.constant dense<0.000000e+00> : vector<8xf32>
    %164 = vector.multi_reduction <add>, %163, %cst_86 [1] : vector<8x8xf32> to vector<8xf32>
    %165 = vector.shape_cast %164 : vector<8xf32> to vector<8x1xf32>
    %166 = vector.broadcast %162 : vector<1x8xf32> to vector<8x8xf32>
    %167 = arith.addf %161, %166 : vector<8x8xf32>
    %168 = vector.broadcast %165 : vector<8x1xf32> to vector<8x8xf32>
    %169 = arith.addf %167, %168 : vector<8x8xf32>
    %170 = vector.extract_strided_slice %158 {offsets = [0, 0], sizes = [1, 1], strides = [1, 1]} : vector<4x1xf32> to vector<1x1xf32>
    %171 = vector.broadcast %170 : vector<1x1xf32> to vector<8x8xf32>
    %172 = arith.addf %169, %171 : vector<8x8xf32>
    %cst_87 = arith.constant 0.353553385 : f32
    %173 = vector.broadcast %cst_87 : f32 to vector<8x8xf32>
    %174 = arith.mulf %172, %173 : vector<8x8xf32>
    %cst_88 = arith.constant -3.40282347E+38 : f32
    %175 = vector.broadcast %cst_88 : f32 to vector<8x8xf32>
    %176 = arith.select %2, %174, %175 : vector<8x8xi1>, vector<8x8xf32>
    %cst_89 = arith.constant dense<0xFF800000> : vector<8xf32>
    %177 = vector.multi_reduction <maximumf>, %176, %cst_89 [1] : vector<8x8xf32> to vector<8xf32>
    %178 = vector.shape_cast %177 : vector<8xf32> to vector<8x1xf32>
    %179 = vector.broadcast %178 : vector<8x1xf32> to vector<8x8xf32>
    %180 = arith.subf %176, %179 : vector<8x8xf32>
    %181 = math.exp %180 : vector<8x8xf32>
    %cst_90 = arith.constant dense<0.000000e+00> : vector<8xf32>
    %182 = vector.multi_reduction <add>, %181, %cst_90 [1] : vector<8x8xf32> to vector<8xf32>
    %183 = vector.shape_cast %182 : vector<8xf32> to vector<8x1xf32>
    %184 = tpu.reciprocal %183 {approx = true} : vector<8x1xf32> -> vector<8x1xf32>
    %185 = vector.broadcast %184 : vector<8x1xf32> to vector<8x8xf32>
    %186 = arith.mulf %181, %185 : vector<8x8xf32>
    %187 = vector.extract_strided_slice %149 {offsets = [0, 0], sizes = [8, 8], strides = [1, 1]} : vector<8x32xf32> to vector<8x8xf32>
    %cst_91 = arith.constant dense<0.000000e+00> : vector<8x8xf32>
    %188 = tpu.matmul %186, %187, %cst_91 {dimension_numbers = #tpu.dot_dimension_numbers<[1], [0], [0], [1], [0, 0, 1, 1], [], []>} : vector<8x8xf32>, vector<8x8xf32>, vector<8x8xf32> -> vector<8x8xf32>
    %189 = vector.extract_strided_slice %147 {offsets = [0, 8], sizes = [8, 8], strides = [1, 1]} : vector<8x32xf32> to vector<8x8xf32>
    %190 = vector.extract_strided_slice %148 {offsets = [0, 8], sizes = [8, 8], strides = [1, 1]} : vector<8x32xf32> to vector<8x8xf32>
    %cst_92 = arith.constant dense<0.000000e+00> : vector<8x8xf32>
    %191 = tpu.matmul %189, %190, %cst_92 {dimension_numbers = #tpu.dot_dimension_numbers<[1], [1], [0], [0], [0, 0, 1, 0], [], []>} : vector<8x8xf32>, vector<8x8xf32>, vector<8x8xf32> -> vector<8x8xf32>
    %192 = vector.extract_strided_slice %152 {offsets = [1, 0], sizes = [1, 8], strides = [1, 1]} : vector<4x8xf32> to vector<1x8xf32>
    %193 = vector.extract_strided_slice %156 {offsets = [0, 8], sizes = [8, 8], strides = [1, 1]} : vector<8x32xf32> to vector<8x8xf32>
    %cst_93 = arith.constant dense<0.000000e+00> : vector<8xf32>
    %194 = vector.multi_reduction <add>, %193, %cst_93 [1] : vector<8x8xf32> to vector<8xf32>
    %195 = vector.shape_cast %194 : vector<8xf32> to vector<8x1xf32>
    %196 = vector.broadcast %192 : vector<1x8xf32> to vector<8x8xf32>
    %197 = arith.addf %191, %196 : vector<8x8xf32>
    %198 = vector.broadcast %195 : vector<8x1xf32> to vector<8x8xf32>
    %199 = arith.addf %197, %198 : vector<8x8xf32>
    %200 = vector.extract_strided_slice %158 {offsets = [1, 0], sizes = [1, 1], strides = [1, 1]} : vector<4x1xf32> to vector<1x1xf32>
    %201 = vector.broadcast %200 : vector<1x1xf32> to vector<8x8xf32>
    %202 = arith.addf %199, %201 : vector<8x8xf32>
    %cst_94 = arith.constant 0.353553385 : f32
    %203 = vector.broadcast %cst_94 : f32 to vector<8x8xf32>
    %204 = arith.mulf %202, %203 : vector<8x8xf32>
    %cst_95 = arith.constant -3.40282347E+38 : f32
    %205 = vector.broadcast %cst_95 : f32 to vector<8x8xf32>
    %206 = arith.select %2, %204, %205 : vector<8x8xi1>, vector<8x8xf32>
    %cst_96 = arith.constant dense<0xFF800000> : vector<8xf32>
    %207 = vector.multi_reduction <maximumf>, %206, %cst_96 [1] : vector<8x8xf32> to vector<8xf32>
    %208 = vector.shape_cast %207 : vector<8xf32> to vector<8x1xf32>
    %209 = vector.broadcast %208 : vector<8x1xf32> to vector<8x8xf32>
    %210 = arith.subf %206, %209 : vector<8x8xf32>
    %211 = math.exp %210 : vector<8x8xf32>
    %cst_97 = arith.constant dense<0.000000e+00> : vector<8xf32>
    %212 = vector.multi_reduction <add>, %211, %cst_97 [1] : vector<8x8xf32> to vector<8xf32>
    %213 = vector.shape_cast %212 : vector<8xf32> to vector<8x1xf32>
    %214 = tpu.reciprocal %213 {approx = true} : vector<8x1xf32> -> vector<8x1xf32>
    %215 = vector.broadcast %214 : vector<8x1xf32> to vector<8x8xf32>
    %216 = arith.mulf %211, %215 : vector<8x8xf32>
    %217 = vector.extract_strided_slice %149 {offsets = [0, 8], sizes = [8, 8], strides = [1, 1]} : vector<8x32xf32> to vector<8x8xf32>
    %cst_98 = arith.constant dense<0.000000e+00> : vector<8x8xf32>
    %218 = tpu.matmul %216, %217, %cst_98 {dimension_numbers = #tpu.dot_dimension_numbers<[1], [0], [0], [1], [0, 0, 1, 1], [], []>} : vector<8x8xf32>, vector<8x8xf32>, vector<8x8xf32> -> vector<8x8xf32>
    %219 = vector.extract_strided_slice %147 {offsets = [0, 16], sizes = [8, 8], strides = [1, 1]} : vector<8x32xf32> to vector<8x8xf32>
    %220 = vector.extract_strided_slice %148 {offsets = [0, 16], sizes = [8, 8], strides = [1, 1]} : vector<8x32xf32> to vector<8x8xf32>
    %cst_99 = arith.constant dense<0.000000e+00> : vector<8x8xf32>
    %221 = tpu.matmul %219, %220, %cst_99 {dimension_numbers = #tpu.dot_dimension_numbers<[1], [1], [0], [0], [0, 0, 1, 0], [], []>} : vector<8x8xf32>, vector<8x8xf32>, vector<8x8xf32> -> vector<8x8xf32>
    %222 = vector.extract_strided_slice %152 {offsets = [2, 0], sizes = [1, 8], strides = [1, 1]} : vector<4x8xf32> to vector<1x8xf32>
    %223 = vector.extract_strided_slice %156 {offsets = [0, 16], sizes = [8, 8], strides = [1, 1]} : vector<8x32xf32> to vector<8x8xf32>
    %cst_100 = arith.constant dense<0.000000e+00> : vector<8xf32>
    %224 = vector.multi_reduction <add>, %223, %cst_100 [1] : vector<8x8xf32> to vector<8xf32>
    %225 = vector.shape_cast %224 : vector<8xf32> to vector<8x1xf32>
    %226 = vector.broadcast %222 : vector<1x8xf32> to vector<8x8xf32>
    %227 = arith.addf %221, %226 : vector<8x8xf32>
    %228 = vector.broadcast %225 : vector<8x1xf32> to vector<8x8xf32>
    %229 = arith.addf %227, %228 : vector<8x8xf32>
    %230 = vector.extract_strided_slice %158 {offsets = [2, 0], sizes = [1, 1], strides = [1, 1]} : vector<4x1xf32> to vector<1x1xf32>
    %231 = vector.broadcast %230 : vector<1x1xf32> to vector<8x8xf32>
    %232 = arith.addf %229, %231 : vector<8x8xf32>
    %cst_101 = arith.constant 0.353553385 : f32
    %233 = vector.broadcast %cst_101 : f32 to vector<8x8xf32>
    %234 = arith.mulf %232, %233 : vector<8x8xf32>
    %cst_102 = arith.constant -3.40282347E+38 : f32
    %235 = vector.broadcast %cst_102 : f32 to vector<8x8xf32>
    %236 = arith.select %2, %234, %235 : vector<8x8xi1>, vector<8x8xf32>
    %cst_103 = arith.constant dense<0xFF800000> : vector<8xf32>
    %237 = vector.multi_reduction <maximumf>, %236, %cst_103 [1] : vector<8x8xf32> to vector<8xf32>
    %238 = vector.shape_cast %237 : vector<8xf32> to vector<8x1xf32>
    %239 = vector.broadcast %238 : vector<8x1xf32> to vector<8x8xf32>
    %240 = arith.subf %236, %239 : vector<8x8xf32>
    %241 = math.exp %240 : vector<8x8xf32>
    %cst_104 = arith.constant dense<0.000000e+00> : vector<8xf32>
    %242 = vector.multi_reduction <add>, %241, %cst_104 [1] : vector<8x8xf32> to vector<8xf32>
    %243 = vector.shape_cast %242 : vector<8xf32> to vector<8x1xf32>
    %244 = tpu.reciprocal %243 {approx = true} : vector<8x1xf32> -> vector<8x1xf32>
    %245 = vector.broadcast %244 : vector<8x1xf32> to vector<8x8xf32>
    %246 = arith.mulf %241, %245 : vector<8x8xf32>
    %247 = vector.extract_strided_slice %149 {offsets = [0, 16], sizes = [8, 8], strides = [1, 1]} : vector<8x32xf32> to vector<8x8xf32>
    %cst_105 = arith.constant dense<0.000000e+00> : vector<8x8xf32>
    %248 = tpu.matmul %246, %247, %cst_105 {dimension_numbers = #tpu.dot_dimension_numbers<[1], [0], [0], [1], [0, 0, 1, 1], [], []>} : vector<8x8xf32>, vector<8x8xf32>, vector<8x8xf32> -> vector<8x8xf32>
    %249 = vector.extract_strided_slice %147 {offsets = [0, 24], sizes = [8, 8], strides = [1, 1]} : vector<8x32xf32> to vector<8x8xf32>
    %250 = vector.extract_strided_slice %148 {offsets = [0, 24], sizes = [8, 8], strides = [1, 1]} : vector<8x32xf32> to vector<8x8xf32>
    %cst_106 = arith.constant dense<0.000000e+00> : vector<8x8xf32>
    %251 = tpu.matmul %249, %250, %cst_106 {dimension_numbers = #tpu.dot_dimension_numbers<[1], [1], [0], [0], [0, 0, 1, 0], [], []>} : vector<8x8xf32>, vector<8x8xf32>, vector<8x8xf32> -> vector<8x8xf32>
    %252 = vector.extract_strided_slice %152 {offsets = [3, 0], sizes = [1, 8], strides = [1, 1]} : vector<4x8xf32> to vector<1x8xf32>
    %253 = vector.extract_strided_slice %156 {offsets = [0, 24], sizes = [8, 8], strides = [1, 1]} : vector<8x32xf32> to vector<8x8xf32>
    %cst_107 = arith.constant dense<0.000000e+00> : vector<8xf32>
    %254 = vector.multi_reduction <add>, %253, %cst_107 [1] : vector<8x8xf32> to vector<8xf32>
    %255 = vector.shape_cast %254 : vector<8xf32> to vector<8x1xf32>
    %256 = vector.broadcast %252 : vector<1x8xf32> to vector<8x8xf32>
    %257 = arith.addf %251, %256 : vector<8x8xf32>
    %258 = vector.broadcast %255 : vector<8x1xf32> to vector<8x8xf32>
    %259 = arith.addf %257, %258 : vector<8x8xf32>
    %260 = vector.extract_strided_slice %158 {offsets = [3, 0], sizes = [1, 1], strides = [1, 1]} : vector<4x1xf32> to vector<1x1xf32>
    %261 = vector.broadcast %260 : vector<1x1xf32> to vector<8x8xf32>
    %262 = arith.addf %259, %261 : vector<8x8xf32>
    %cst_108 = arith.constant 0.353553385 : f32
    %263 = vector.broadcast %cst_108 : f32 to vector<8x8xf32>
    %264 = arith.mulf %262, %263 : vector<8x8xf32>
    %cst_109 = arith.constant -3.40282347E+38 : f32
    %265 = vector.broadcast %cst_109 : f32 to vector<8x8xf32>
    %266 = arith.select %2, %264, %265 : vector<8x8xi1>, vector<8x8xf32>
    %cst_110 = arith.constant dense<0xFF800000> : vector<8xf32>
    %267 = vector.multi_reduction <maximumf>, %266, %cst_110 [1] : vector<8x8xf32> to vector<8xf32>
    %268 = vector.shape_cast %267 : vector<8xf32> to vector<8x1xf32>
    %269 = vector.broadcast %268 : vector<8x1xf32> to vector<8x8xf32>
    %270 = arith.subf %266, %269 : vector<8x8xf32>
    %271 = math.exp %270 : vector<8x8xf32>
    %cst_111 = arith.constant dense<0.000000e+00> : vector<8xf32>
    %272 = vector.multi_reduction <add>, %271, %cst_111 [1] : vector<8x8xf32> to vector<8xf32>
    %273 = vector.shape_cast %272 : vector<8xf32> to vector<8x1xf32>
    %274 = tpu.reciprocal %273 {approx = true} : vector<8x1xf32> -> vector<8x1xf32>
    %275 = vector.broadcast %274 : vector<8x1xf32> to vector<8x8xf32>
    %276 = arith.mulf %271, %275 : vector<8x8xf32>
    %277 = vector.extract_strided_slice %149 {offsets = [0, 24], sizes = [8, 8], strides = [1, 1]} : vector<8x32xf32> to vector<8x8xf32>
    %cst_112 = arith.constant dense<0.000000e+00> : vector<8x8xf32>
    %278 = tpu.matmul %276, %277, %cst_112 {dimension_numbers = #tpu.dot_dimension_numbers<[1], [0], [0], [1], [0, 0, 1, 1], [], []>} : vector<8x8xf32>, vector<8x8xf32>, vector<8x8xf32> -> vector<8x8xf32>
    %279 = tpu.concatenate %188, %218, %248, %278 in 1 : vector<8x8xf32>, vector<8x8xf32>, vector<8x8xf32>, vector<8x8xf32> -> vector<8x32xf32>
    %cst_113 = arith.constant dense<0.000000e+00> : vector<8x32xf32>
    %280 = tpu.matmul %279, %22, %cst_113 {dimension_numbers = #tpu.dot_dimension_numbers<[1], [0], [0], [1], [0, 0, 1, 1], [], []>} : vector<8x32xf32>, vector<32x32xf32>, vector<8x32xf32> -> vector<8x32xf32>
    %c0_114 = arith.constant 0 : index
    %c0_115 = arith.constant 0 : index
    %c0_116 = arith.constant 0 : index
    %281 = vector.load %arg17[%c0_114, %c0_115, %c0_116] : memref<2x1x32xf32, #tpu.memory_space<vmem>>, vector<1x1x32xf32>
    %282 = vector.shape_cast %281 : vector<1x1x32xf32> to vector<1x32xf32>
    %283 = vector.broadcast %282 : vector<1x32xf32> to vector<8x32xf32>
    %284 = arith.addf %280, %283 : vector<8x32xf32>
    %285 = arith.addf %8, %284 : vector<8x32xf32>
    %286 = vector.broadcast %24 : vector<1x32xf32> to vector<8x32xf32>
    %287 = arith.addf %285, %286 : vector<8x32xf32>
    %cst_117 = arith.constant dense<0.000000e+00> : vector<8xf32>
    %288 = vector.multi_reduction <add>, %146, %cst_117 [1] : vector<8x32xf32> to vector<8xf32>
    %289 = vector.shape_cast %288 : vector<8xf32> to vector<8x1xf32>
    %cst_118 = arith.constant 3.200000e+01 : f32
    %290 = vector.broadcast %cst_118 : f32 to vector<8x1xf32>
    %291 = arith.divf %289, %290 : vector<8x1xf32>
    %292 = vector.broadcast %291 : vector<8x1xf32> to vector<8x32xf32>
    %293 = arith.subf %146, %292 : vector<8x32xf32>
    %294 = arith.mulf %293, %293 : vector<8x32xf32>
    %cst_119 = arith.constant dense<0.000000e+00> : vector<8xf32>
    %295 = vector.multi_reduction <add>, %294, %cst_119 [1] : vector<8x32xf32> to vector<8xf32>
    %296 = vector.shape_cast %295 : vector<8xf32> to vector<8x1xf32>
    %cst_120 = arith.constant 3.200000e+01 : f32
    %297 = vector.broadcast %cst_120 : f32 to vector<8x1xf32>
    %298 = arith.divf %296, %297 : vector<8x1xf32>
    %299 = vector.broadcast %291 : vector<8x1xf32> to vector<8x32xf32>
    %300 = arith.subf %146, %299 : vector<8x32xf32>
    %cst_121 = arith.constant 9.99999974E-6 : f32
    %301 = vector.broadcast %cst_121 : f32 to vector<8x1xf32>
    %302 = arith.addf %298, %301 : vector<8x1xf32>
    %303 = math.rsqrt %302 : vector<8x1xf32>
    %304 = vector.broadcast %303 : vector<8x1xf32> to vector<8x32xf32>
    %305 = arith.mulf %300, %304 : vector<8x32xf32>
    %306 = vector.broadcast %14 : vector<1x32xf32> to vector<8x32xf32>
    %307 = arith.mulf %305, %306 : vector<8x32xf32>
    %308 = vector.broadcast %16 : vector<1x32xf32> to vector<8x32xf32>
    %309 = arith.addf %307, %308 : vector<8x32xf32>
    %cst_122 = arith.constant dense<0.000000e+00> : vector<8xf32>
    %310 = vector.multi_reduction <add>, %287, %cst_122 [1] : vector<8x32xf32> to vector<8xf32>
    %311 = vector.shape_cast %310 : vector<8xf32> to vector<8x1xf32>
    %cst_123 = arith.constant 3.200000e+01 : f32
    %312 = vector.broadcast %cst_123 : f32 to vector<8x1xf32>
    %313 = arith.divf %311, %312 : vector<8x1xf32>
    %314 = vector.broadcast %313 : vector<8x1xf32> to vector<8x32xf32>
    %315 = arith.subf %287, %314 : vector<8x32xf32>
    %316 = arith.mulf %315, %315 : vector<8x32xf32>
    %cst_124 = arith.constant dense<0.000000e+00> : vector<8xf32>
    %317 = vector.multi_reduction <add>, %316, %cst_124 [1] : vector<8x32xf32> to vector<8xf32>
    %318 = vector.shape_cast %317 : vector<8xf32> to vector<8x1xf32>
    %cst_125 = arith.constant 3.200000e+01 : f32
    %319 = vector.broadcast %cst_125 : f32 to vector<8x1xf32>
    %320 = arith.divf %318, %319 : vector<8x1xf32>
    %321 = vector.broadcast %313 : vector<8x1xf32> to vector<8x32xf32>
    %322 = arith.subf %287, %321 : vector<8x32xf32>
    %cst_126 = arith.constant 9.99999974E-6 : f32
    %323 = vector.broadcast %cst_126 : f32 to vector<8x1xf32>
    %324 = arith.addf %320, %323 : vector<8x1xf32>
    %325 = math.rsqrt %324 : vector<8x1xf32>
    %326 = vector.broadcast %325 : vector<8x1xf32> to vector<8x32xf32>
    %327 = arith.mulf %322, %326 : vector<8x32xf32>
    %328 = vector.broadcast %14 : vector<1x32xf32> to vector<8x32xf32>
    %329 = arith.mulf %327, %328 : vector<8x32xf32>
    %330 = vector.broadcast %16 : vector<1x32xf32> to vector<8x32xf32>
    %331 = arith.addf %329, %330 : vector<8x32xf32>
    %332 = tpu.concatenate %309, %331 in 0 : vector<8x32xf32>, vector<8x32xf32> -> vector<16x32xf32>
    %cst_127 = arith.constant dense<0.000000e+00> : vector<16x128xf32>
    %333 = tpu.matmul %332, %26, %cst_127 {dimension_numbers = #tpu.dot_dimension_numbers<[1], [0], [0], [1], [0, 0, 1, 1], [], []>} : vector<16x32xf32>, vector<32x128xf32>, vector<16x128xf32> -> vector<16x128xf32>
    %334 = vector.broadcast %28 : vector<1x128xf32> to vector<16x128xf32>
    %335 = arith.addf %333, %334 : vector<16x128xf32>
    %cst_128 = arith.constant 5.000000e-01 : f32
    %336 = vector.broadcast %cst_128 : f32 to vector<16x128xf32>
    %337 = arith.mulf %336, %335 : vector<16x128xf32>
    %cst_129 = arith.constant 4.471500e-02 : f32
    %338 = vector.broadcast %cst_129 : f32 to vector<16x128xf32>
    %339 = arith.mulf %338, %335 : vector<16x128xf32>
    %340 = arith.mulf %339, %335 : vector<16x128xf32>
    %341 = arith.mulf %340, %335 : vector<16x128xf32>
    %342 = arith.addf %335, %341 : vector<16x128xf32>
    %cst_130 = arith.constant 0.797884583 : f32
    %343 = vector.broadcast %cst_130 : f32 to vector<16x128xf32>
    %344 = arith.mulf %343, %342 : vector<16x128xf32>
    %345 = math.tanh %344 : vector<16x128xf32>
    %cst_131 = arith.constant 1.000000e+00 : f32
    %346 = vector.broadcast %cst_131 : f32 to vector<16x128xf32>
    %347 = arith.addf %346, %345 : vector<16x128xf32>
    %348 = arith.mulf %337, %347 : vector<16x128xf32>
    %cst_132 = arith.constant dense<0.000000e+00> : vector<16x32xf32>
    %349 = tpu.matmul %348, %30, %cst_132 {dimension_numbers = #tpu.dot_dimension_numbers<[1], [0], [0], [1], [0, 0, 1, 1], [], []>} : vector<16x128xf32>, vector<128x32xf32>, vector<16x32xf32> -> vector<16x32xf32>
    %350 = vector.extract_strided_slice %349 {offsets = [0, 0], sizes = [8, 32], strides = [1, 1]} : vector<16x32xf32> to vector<8x32xf32>
    %351 = arith.addf %146, %350 : vector<8x32xf32>
    %352 = vector.broadcast %32 : vector<1x32xf32> to vector<8x32xf32>
    %353 = arith.addf %351, %352 : vector<8x32xf32>
    %354 = vector.extract_strided_slice %349 {offsets = [8, 0], sizes = [8, 32], strides = [1, 1]} : vector<16x32xf32> to vector<8x32xf32>
    %355 = arith.addf %287, %354 : vector<8x32xf32>
    %356 = vector.broadcast %32 : vector<1x32xf32> to vector<8x32xf32>
    %357 = arith.addf %355, %356 : vector<8x32xf32>
    %358 = vector.extract_strided_slice %357 {offsets = [7, 0], sizes = [1, 32], strides = [1, 1]} : vector<8x32xf32> to vector<1x32xf32>
    %cst_133 = arith.constant dense<0.000000e+00> : vector<8xf32>
    %359 = vector.multi_reduction <add>, %353, %cst_133 [1] : vector<8x32xf32> to vector<8xf32>
    %360 = vector.shape_cast %359 : vector<8xf32> to vector<8x1xf32>
    %cst_134 = arith.constant 3.200000e+01 : f32
    %361 = vector.broadcast %cst_134 : f32 to vector<8x1xf32>
    %362 = arith.divf %360, %361 : vector<8x1xf32>
    %363 = vector.broadcast %362 : vector<8x1xf32> to vector<8x32xf32>
    %364 = arith.subf %353, %363 : vector<8x32xf32>
    %365 = arith.mulf %364, %364 : vector<8x32xf32>
    %cst_135 = arith.constant dense<0.000000e+00> : vector<8xf32>
    %366 = vector.multi_reduction <add>, %365, %cst_135 [1] : vector<8x32xf32> to vector<8xf32>
    %367 = vector.shape_cast %366 : vector<8xf32> to vector<8x1xf32>
    %cst_136 = arith.constant 3.200000e+01 : f32
    %368 = vector.broadcast %cst_136 : f32 to vector<8x1xf32>
    %369 = arith.divf %367, %368 : vector<8x1xf32>
    %370 = vector.broadcast %362 : vector<8x1xf32> to vector<8x32xf32>
    %371 = arith.subf %353, %370 : vector<8x32xf32>
    %cst_137 = arith.constant 9.99999974E-6 : f32
    %372 = vector.broadcast %cst_137 : f32 to vector<8x1xf32>
    %373 = arith.addf %369, %372 : vector<8x1xf32>
    %374 = math.rsqrt %373 : vector<8x1xf32>
    %375 = vector.broadcast %374 : vector<8x1xf32> to vector<8x32xf32>
    %376 = arith.mulf %371, %375 : vector<8x32xf32>
    %377 = vector.broadcast %5 : vector<1x32xf32> to vector<8x32xf32>
    %378 = arith.mulf %376, %377 : vector<8x32xf32>
    %379 = vector.broadcast %6 : vector<1x32xf32> to vector<8x32xf32>
    %380 = arith.addf %378, %379 : vector<8x32xf32>
    %cst_138 = arith.constant dense<0.000000e+00> : vector<1xf32>
    %381 = vector.multi_reduction <add>, %358, %cst_138 [1] : vector<1x32xf32> to vector<1xf32>
    %382 = vector.shape_cast %381 : vector<1xf32> to vector<1x1xf32>
    %cst_139 = arith.constant 3.200000e+01 : f32
    %383 = vector.broadcast %cst_139 : f32 to vector<1x1xf32>
    %384 = arith.divf %382, %383 : vector<1x1xf32>
    %385 = vector.broadcast %384 : vector<1x1xf32> to vector<1x32xf32>
    %386 = arith.subf %358, %385 : vector<1x32xf32>
    %387 = arith.mulf %386, %386 : vector<1x32xf32>
    %cst_140 = arith.constant dense<0.000000e+00> : vector<1xf32>
    %388 = vector.multi_reduction <add>, %387, %cst_140 [1] : vector<1x32xf32> to vector<1xf32>
    %389 = vector.shape_cast %388 : vector<1xf32> to vector<1x1xf32>
    %cst_141 = arith.constant 3.200000e+01 : f32
    %390 = vector.broadcast %cst_141 : f32 to vector<1x1xf32>
    %391 = arith.divf %389, %390 : vector<1x1xf32>
    %392 = vector.broadcast %384 : vector<1x1xf32> to vector<1x32xf32>
    %393 = arith.subf %358, %392 : vector<1x32xf32>
    %cst_142 = arith.constant 9.99999974E-6 : f32
    %394 = vector.broadcast %cst_142 : f32 to vector<1x1xf32>
    %395 = arith.addf %391, %394 : vector<1x1xf32>
    %396 = math.rsqrt %395 : vector<1x1xf32>
    %397 = vector.broadcast %396 : vector<1x1xf32> to vector<1x32xf32>
    %398 = arith.mulf %393, %397 : vector<1x32xf32>
    %399 = arith.mulf %398, %5 : vector<1x32xf32>
    %400 = arith.addf %399, %6 : vector<1x32xf32>
    %401 = tpu.concatenate %380, %400 in 0 : vector<8x32xf32>, vector<1x32xf32> -> vector<9x32xf32>
    %cst_143 = arith.constant dense<0.000000e+00> : vector<9x64xf32>
    %402 = tpu.matmul %401, %7, %cst_143 {dimension_numbers = #tpu.dot_dimension_numbers<[1], [0], [0], [1], [0, 0, 1, 1], [], []>} : vector<9x32xf32>, vector<32x64xf32>, vector<9x64xf32> -> vector<9x64xf32>
    %403 = vector.extract_strided_slice %402 {offsets = [7, 0], sizes = [1, 64], strides = [1, 1]} : vector<9x64xf32> to vector<1x64xf32>
    %404 = vector.extract_strided_slice %402 {offsets = [8, 0], sizes = [1, 64], strides = [1, 1]} : vector<9x64xf32> to vector<1x64xf32>
    %405 = vector.extract_strided_slice %380 {offsets = [7, 0], sizes = [1, 32], strides = [1, 1]} : vector<8x32xf32> to vector<1x32xf32>
    %cst_144 = arith.constant dense<0.000000e+00> : vector<1x64xf32>
    %406 = tpu.matmul %405, %7, %cst_144 {dimension_numbers = #tpu.dot_dimension_numbers<[1], [0], [0], [1], [0, 0, 1, 1], [], []>} : vector<1x32xf32>, vector<32x64xf32>, vector<1x64xf32> -> vector<1x64xf32>
    %407 = arith.subf %403, %406 : vector<1x64xf32>
    %408 = arith.mulf %407, %407 : vector<1x64xf32>
    %cst_145 = arith.constant dense<0.000000e+00> : vector<1xf32>
    %409 = vector.multi_reduction <add>, %408, %cst_145 [1] : vector<1x64xf32> to vector<1xf32>
    %410 = vector.shape_cast %409 : vector<1xf32> to vector<1x1xf32>
    %cst_146 = arith.constant 1.562500e-02 : f32
    %411 = vector.broadcast %cst_146 : f32 to vector<1x1xf32>
    %412 = arith.mulf %410, %411 : vector<1x1xf32>
    %413 = arith.subf %403, %404 : vector<1x64xf32>
    %414 = arith.mulf %413, %413 : vector<1x64xf32>
    %cst_147 = arith.constant dense<0.000000e+00> : vector<1xf32>
    %415 = vector.multi_reduction <add>, %414, %cst_147 [1] : vector<1x64xf32> to vector<1xf32>
    %416 = vector.shape_cast %415 : vector<1xf32> to vector<1x1xf32>
    %cst_148 = arith.constant 1.562500e-02 : f32
    %417 = vector.broadcast %cst_148 : f32 to vector<1x1xf32>
    %418 = arith.mulf %416, %417 : vector<1x1xf32>
    %419 = tpu.concatenate %403, %404 in 1 : vector<1x64xf32>, vector<1x64xf32> -> vector<1x128xf32>
    %c0_i32 = arith.constant 0 : i32
    %420 = vector.broadcast %c0_i32 : i32 to vector<1x128xi32>
    %421 = arith.cmpi eq, %3, %420 : vector<1x128xi32>
    %c1_i32 = arith.constant 1 : i32
    %422 = vector.broadcast %c1_i32 : i32 to vector<1x128xi32>
    %423 = arith.cmpi eq, %3, %422 : vector<1x128xi32>
    %cst_149 = arith.constant 0.000000e+00 : f32
    %424 = vector.shape_cast %418 : vector<1x1xf32> to vector<1x1xf32>
    %425 = vector.broadcast %424 : vector<1x1xf32> to vector<1x128xf32>
    %426 = vector.broadcast %cst_149 : f32 to vector<1x128xf32>
    %427 = arith.select %423, %425, %426 : vector<1x128xi1>, vector<1x128xf32>
    %428 = vector.shape_cast %412 : vector<1x1xf32> to vector<1x1xf32>
    %429 = vector.broadcast %428 : vector<1x1xf32> to vector<1x128xf32>
    %430 = arith.select %421, %429, %427 : vector<1x128xi1>, vector<1x128xf32>
    %431 = tpu.concatenate %419, %430 in 0 : vector<1x128xf32>, vector<1x128xf32> -> vector<2x128xf32>
    %c0_150 = arith.constant 0 : index
    %c0_151 = arith.constant 0 : index
    %c0_152 = arith.constant 0 : index
    %432 = vector.load %arg21[%c0_150, %c0_151, %c0_152] : memref<2x2x128xf32, #tpu.memory_space<vmem>>, vector<1x2x128xf32>
    %433 = vector.shape_cast %432 : vector<1x2x128xf32> to vector<2x128xf32>
    %434 = vector.shape_cast %431 : vector<2x128xf32> to vector<1x2x128xf32>
    tpu.vector_store %arg21[%c0_150, %c0_151, %c0_152], %434 {strides = array<i32>} : memref<2x2x128xf32, #tpu.memory_space<vmem>>, vector<1x2x128xf32>,
    %c1 = arith.constant 1 : index
    %c0_153 = arith.constant 0 : index
    %c0_154 = arith.constant 0 : index
    %435 = vector.load %arg2[%c1, %c0_153, %c0_154] : memref<2x1x32xf32, #tpu.memory_space<vmem>>, vector<1x1x32xf32>
    %436 = vector.shape_cast %435 : vector<1x1x32xf32> to vector<1x32xf32>
    %c1_155 = arith.constant 1 : index
    %c0_156 = arith.constant 0 : index
    %c0_157 = arith.constant 0 : index
    %437 = vector.load %arg3[%c1_155, %c0_156, %c0_157] : memref<2x1x32xf32, #tpu.memory_space<vmem>>, vector<1x1x32xf32>
    %438 = vector.shape_cast %437 : vector<1x1x32xf32> to vector<1x32xf32>
    %c1_158 = arith.constant 1 : index
    %c0_159 = arith.constant 0 : index
    %c0_160 = arith.constant 0 : index
    %439 = vector.load %arg8[%c1_158, %c0_159, %c0_160] : memref<2x1x32xf32, #tpu.memory_space<vmem>>, vector<1x1x32xf32>
    %440 = vector.shape_cast %439 : vector<1x1x32xf32> to vector<1x32xf32>
    %c1_161 = arith.constant 1 : index
    %c0_162 = arith.constant 0 : index
    %c0_163 = arith.constant 0 : index
    %441 = vector.load %arg9[%c1_161, %c0_162, %c0_163] : memref<2x1x32xf32, #tpu.memory_space<vmem>>, vector<1x1x32xf32>
    %442 = vector.shape_cast %441 : vector<1x1x32xf32> to vector<1x32xf32>
    %c1_164 = arith.constant 1 : index
    %c0_165 = arith.constant 0 : index
    %c0_166 = arith.constant 0 : index
    %443 = vector.load %arg4[%c1_164, %c0_165, %c0_166] : memref<2x32x96xf32, #tpu.memory_space<vmem>>, vector<1x32x96xf32>
    %444 = vector.shape_cast %443 : vector<1x32x96xf32> to vector<32x96xf32>
    %c1_167 = arith.constant 1 : index
    %c0_168 = arith.constant 0 : index
    %c0_169 = arith.constant 0 : index
    %445 = vector.load %arg5[%c1_167, %c0_168, %c0_169] : memref<2x1x96xf32, #tpu.memory_space<vmem>>, vector<1x1x96xf32>
    %446 = vector.shape_cast %445 : vector<1x1x96xf32> to vector<1x96xf32>
    %c1_170 = arith.constant 1 : index
    %c0_171 = arith.constant 0 : index
    %c0_172 = arith.constant 0 : index
    %447 = vector.load %arg6[%c1_170, %c0_171, %c0_172] : memref<2x32x32xf32, #tpu.memory_space<vmem>>, vector<1x32x32xf32>
    %448 = vector.shape_cast %447 : vector<1x32x32xf32> to vector<32x32xf32>
    %c1_173 = arith.constant 1 : index
    %c0_174 = arith.constant 0 : index
    %c0_175 = arith.constant 0 : index
    %449 = vector.load %arg7[%c1_173, %c0_174, %c0_175] : memref<2x1x32xf32, #tpu.memory_space<vmem>>, vector<1x1x32xf32>
    %450 = vector.shape_cast %449 : vector<1x1x32xf32> to vector<1x32xf32>
    %c1_176 = arith.constant 1 : index
    %c0_177 = arith.constant 0 : index
    %c0_178 = arith.constant 0 : index
    %451 = vector.load %arg10[%c1_176, %c0_177, %c0_178] : memref<2x32x128xf32, #tpu.memory_space<vmem>>, vector<1x32x128xf32>
    %452 = vector.shape_cast %451 : vector<1x32x128xf32> to vector<32x128xf32>
    %c1_179 = arith.constant 1 : index
    %c0_180 = arith.constant 0 : index
    %c0_181 = arith.constant 0 : index
    %453 = vector.load %arg11[%c1_179, %c0_180, %c0_181] : memref<2x1x128xf32, #tpu.memory_space<vmem>>, vector<1x1x128xf32>
    %454 = vector.shape_cast %453 : vector<1x1x128xf32> to vector<1x128xf32>
    %c1_182 = arith.constant 1 : index
    %c0_183 = arith.constant 0 : index
    %c0_184 = arith.constant 0 : index
    %455 = vector.load %arg12[%c1_182, %c0_183, %c0_184] : memref<2x128x32xf32, #tpu.memory_space<vmem>>, vector<1x128x32xf32>
    %456 = vector.shape_cast %455 : vector<1x128x32xf32> to vector<128x32xf32>
    %c1_185 = arith.constant 1 : index
    %c0_186 = arith.constant 0 : index
    %c0_187 = arith.constant 0 : index
    %457 = vector.load %arg13[%c1_185, %c0_186, %c0_187] : memref<2x1x32xf32, #tpu.memory_space<vmem>>, vector<1x1x32xf32>
    %458 = vector.shape_cast %457 : vector<1x1x32xf32> to vector<1x32xf32>
    %cst_188 = arith.constant dense<0.000000e+00> : vector<8xf32>
    %459 = vector.multi_reduction <add>, %353, %cst_188 [1] : vector<8x32xf32> to vector<8xf32>
    %460 = vector.shape_cast %459 : vector<8xf32> to vector<8x1xf32>
    %cst_189 = arith.constant 3.200000e+01 : f32
    %461 = vector.broadcast %cst_189 : f32 to vector<8x1xf32>
    %462 = arith.divf %460, %461 : vector<8x1xf32>
    %463 = vector.broadcast %462 : vector<8x1xf32> to vector<8x32xf32>
    %464 = arith.subf %353, %463 : vector<8x32xf32>
    %465 = arith.mulf %464, %464 : vector<8x32xf32>
    %cst_190 = arith.constant dense<0.000000e+00> : vector<8xf32>
    %466 = vector.multi_reduction <add>, %465, %cst_190 [1] : vector<8x32xf32> to vector<8xf32>
    %467 = vector.shape_cast %466 : vector<8xf32> to vector<8x1xf32>
    %cst_191 = arith.constant 3.200000e+01 : f32
    %468 = vector.broadcast %cst_191 : f32 to vector<8x1xf32>
    %469 = arith.divf %467, %468 : vector<8x1xf32>
    %470 = vector.broadcast %462 : vector<8x1xf32> to vector<8x32xf32>
    %471 = arith.subf %353, %470 : vector<8x32xf32>
    %cst_192 = arith.constant 9.99999974E-6 : f32
    %472 = vector.broadcast %cst_192 : f32 to vector<8x1xf32>
    %473 = arith.addf %469, %472 : vector<8x1xf32>
    %474 = math.rsqrt %473 : vector<8x1xf32>
    %475 = vector.broadcast %474 : vector<8x1xf32> to vector<8x32xf32>
    %476 = arith.mulf %471, %475 : vector<8x32xf32>
    %477 = vector.broadcast %436 : vector<1x32xf32> to vector<8x32xf32>
    %478 = arith.mulf %476, %477 : vector<8x32xf32>
    %479 = vector.broadcast %438 : vector<1x32xf32> to vector<8x32xf32>
    %480 = arith.addf %478, %479 : vector<8x32xf32>
    %cst_193 = arith.constant dense<0.000000e+00> : vector<8x96xf32>
    %481 = tpu.matmul %480, %444, %cst_193 {dimension_numbers = #tpu.dot_dimension_numbers<[1], [0], [0], [1], [0, 0, 1, 1], [], []>} : vector<8x32xf32>, vector<32x96xf32>, vector<8x96xf32> -> vector<8x96xf32>
    %482 = vector.broadcast %446 : vector<1x96xf32> to vector<8x96xf32>
    %483 = arith.addf %481, %482 : vector<8x96xf32>
    %484 = vector.extract_strided_slice %483 {offsets = [0, 0], sizes = [8, 8], strides = [1, 1]} : vector<8x96xf32> to vector<8x8xf32>
    %485 = vector.extract_strided_slice %483 {offsets = [0, 32], sizes = [8, 8], strides = [1, 1]} : vector<8x96xf32> to vector<8x8xf32>
    %486 = vector.extract_strided_slice %483 {offsets = [0, 64], sizes = [8, 8], strides = [1, 1]} : vector<8x96xf32> to vector<8x8xf32>
    %cst_194 = arith.constant dense<0.000000e+00> : vector<8x8xf32>
    %487 = tpu.matmul %484, %485, %cst_194 {dimension_numbers = #tpu.dot_dimension_numbers<[1], [1], [0], [0], [0, 0, 1, 0], [], []>} : vector<8x8xf32>, vector<8x8xf32>, vector<8x8xf32> -> vector<8x8xf32>
    %cst_195 = arith.constant 0.353553385 : f32
    %488 = vector.broadcast %cst_195 : f32 to vector<8x8xf32>
    %489 = arith.mulf %487, %488 : vector<8x8xf32>
    %cst_196 = arith.constant -3.40282347E+38 : f32
    %490 = vector.broadcast %cst_196 : f32 to vector<8x8xf32>
    %491 = arith.select %2, %489, %490 : vector<8x8xi1>, vector<8x8xf32>
    %492 = vector.broadcast %4 : vector<1x8xf32> to vector<8x8xf32>
    %493 = arith.addf %491, %492 : vector<8x8xf32>
    %cst_197 = arith.constant dense<0xFF800000> : vector<8xf32>
    %494 = vector.multi_reduction <maximumf>, %493, %cst_197 [1] : vector<8x8xf32> to vector<8xf32>
    %495 = vector.shape_cast %494 : vector<8xf32> to vector<8x1xf32>
    %496 = vector.broadcast %495 : vector<8x1xf32> to vector<8x8xf32>
    %497 = arith.subf %493, %496 : vector<8x8xf32>
    %498 = math.exp %497 : vector<8x8xf32>
    %cst_198 = arith.constant dense<0.000000e+00> : vector<8xf32>
    %499 = vector.multi_reduction <add>, %498, %cst_198 [1] : vector<8x8xf32> to vector<8xf32>
    %500 = vector.shape_cast %499 : vector<8xf32> to vector<8x1xf32>
    %501 = tpu.reciprocal %500 {approx = true} : vector<8x1xf32> -> vector<8x1xf32>
    %502 = vector.broadcast %501 : vector<8x1xf32> to vector<8x8xf32>
    %503 = arith.mulf %498, %502 : vector<8x8xf32>
    %cst_199 = arith.constant dense<0.000000e+00> : vector<8x8xf32>
    %504 = tpu.matmul %503, %486, %cst_199 {dimension_numbers = #tpu.dot_dimension_numbers<[1], [0], [0], [1], [0, 0, 1, 1], [], []>} : vector<8x8xf32>, vector<8x8xf32>, vector<8x8xf32> -> vector<8x8xf32>
    %505 = vector.extract_strided_slice %483 {offsets = [0, 8], sizes = [8, 8], strides = [1, 1]} : vector<8x96xf32> to vector<8x8xf32>
    %506 = vector.extract_strided_slice %483 {offsets = [0, 40], sizes = [8, 8], strides = [1, 1]} : vector<8x96xf32> to vector<8x8xf32>
    %507 = vector.extract_strided_slice %483 {offsets = [0, 72], sizes = [8, 8], strides = [1, 1]} : vector<8x96xf32> to vector<8x8xf32>
    %cst_200 = arith.constant dense<0.000000e+00> : vector<8x8xf32>
    %508 = tpu.matmul %505, %506, %cst_200 {dimension_numbers = #tpu.dot_dimension_numbers<[1], [1], [0], [0], [0, 0, 1, 0], [], []>} : vector<8x8xf32>, vector<8x8xf32>, vector<8x8xf32> -> vector<8x8xf32>
    %cst_201 = arith.constant 0.353553385 : f32
    %509 = vector.broadcast %cst_201 : f32 to vector<8x8xf32>
    %510 = arith.mulf %508, %509 : vector<8x8xf32>
    %cst_202 = arith.constant -3.40282347E+38 : f32
    %511 = vector.broadcast %cst_202 : f32 to vector<8x8xf32>
    %512 = arith.select %2, %510, %511 : vector<8x8xi1>, vector<8x8xf32>
    %513 = vector.broadcast %4 : vector<1x8xf32> to vector<8x8xf32>
    %514 = arith.addf %512, %513 : vector<8x8xf32>
    %cst_203 = arith.constant dense<0xFF800000> : vector<8xf32>
    %515 = vector.multi_reduction <maximumf>, %514, %cst_203 [1] : vector<8x8xf32> to vector<8xf32>
    %516 = vector.shape_cast %515 : vector<8xf32> to vector<8x1xf32>
    %517 = vector.broadcast %516 : vector<8x1xf32> to vector<8x8xf32>
    %518 = arith.subf %514, %517 : vector<8x8xf32>
    %519 = math.exp %518 : vector<8x8xf32>
    %cst_204 = arith.constant dense<0.000000e+00> : vector<8xf32>
    %520 = vector.multi_reduction <add>, %519, %cst_204 [1] : vector<8x8xf32> to vector<8xf32>
    %521 = vector.shape_cast %520 : vector<8xf32> to vector<8x1xf32>
    %522 = tpu.reciprocal %521 {approx = true} : vector<8x1xf32> -> vector<8x1xf32>
    %523 = vector.broadcast %522 : vector<8x1xf32> to vector<8x8xf32>
    %524 = arith.mulf %519, %523 : vector<8x8xf32>
    %cst_205 = arith.constant dense<0.000000e+00> : vector<8x8xf32>
    %525 = tpu.matmul %524, %507, %cst_205 {dimension_numbers = #tpu.dot_dimension_numbers<[1], [0], [0], [1], [0, 0, 1, 1], [], []>} : vector<8x8xf32>, vector<8x8xf32>, vector<8x8xf32> -> vector<8x8xf32>
    %526 = vector.extract_strided_slice %483 {offsets = [0, 16], sizes = [8, 8], strides = [1, 1]} : vector<8x96xf32> to vector<8x8xf32>
    %527 = vector.extract_strided_slice %483 {offsets = [0, 48], sizes = [8, 8], strides = [1, 1]} : vector<8x96xf32> to vector<8x8xf32>
    %528 = vector.extract_strided_slice %483 {offsets = [0, 80], sizes = [8, 8], strides = [1, 1]} : vector<8x96xf32> to vector<8x8xf32>
    %cst_206 = arith.constant dense<0.000000e+00> : vector<8x8xf32>
    %529 = tpu.matmul %526, %527, %cst_206 {dimension_numbers = #tpu.dot_dimension_numbers<[1], [1], [0], [0], [0, 0, 1, 0], [], []>} : vector<8x8xf32>, vector<8x8xf32>, vector<8x8xf32> -> vector<8x8xf32>
    %cst_207 = arith.constant 0.353553385 : f32
    %530 = vector.broadcast %cst_207 : f32 to vector<8x8xf32>
    %531 = arith.mulf %529, %530 : vector<8x8xf32>
    %cst_208 = arith.constant -3.40282347E+38 : f32
    %532 = vector.broadcast %cst_208 : f32 to vector<8x8xf32>
    %533 = arith.select %2, %531, %532 : vector<8x8xi1>, vector<8x8xf32>
    %534 = vector.broadcast %4 : vector<1x8xf32> to vector<8x8xf32>
    %535 = arith.addf %533, %534 : vector<8x8xf32>
    %cst_209 = arith.constant dense<0xFF800000> : vector<8xf32>
    %536 = vector.multi_reduction <maximumf>, %535, %cst_209 [1] : vector<8x8xf32> to vector<8xf32>
    %537 = vector.shape_cast %536 : vector<8xf32> to vector<8x1xf32>
    %538 = vector.broadcast %537 : vector<8x1xf32> to vector<8x8xf32>
    %539 = arith.subf %535, %538 : vector<8x8xf32>
    %540 = math.exp %539 : vector<8x8xf32>
    %cst_210 = arith.constant dense<0.000000e+00> : vector<8xf32>
    %541 = vector.multi_reduction <add>, %540, %cst_210 [1] : vector<8x8xf32> to vector<8xf32>
    %542 = vector.shape_cast %541 : vector<8xf32> to vector<8x1xf32>
    %543 = tpu.reciprocal %542 {approx = true} : vector<8x1xf32> -> vector<8x1xf32>
    %544 = vector.broadcast %543 : vector<8x1xf32> to vector<8x8xf32>
    %545 = arith.mulf %540, %544 : vector<8x8xf32>
    %cst_211 = arith.constant dense<0.000000e+00> : vector<8x8xf32>
    %546 = tpu.matmul %545, %528, %cst_211 {dimension_numbers = #tpu.dot_dimension_numbers<[1], [0], [0], [1], [0, 0, 1, 1], [], []>} : vector<8x8xf32>, vector<8x8xf32>, vector<8x8xf32> -> vector<8x8xf32>
    %547 = vector.extract_strided_slice %483 {offsets = [0, 24], sizes = [8, 8], strides = [1, 1]} : vector<8x96xf32> to vector<8x8xf32>
    %548 = vector.extract_strided_slice %483 {offsets = [0, 56], sizes = [8, 8], strides = [1, 1]} : vector<8x96xf32> to vector<8x8xf32>
    %549 = vector.extract_strided_slice %483 {offsets = [0, 88], sizes = [8, 8], strides = [1, 1]} : vector<8x96xf32> to vector<8x8xf32>
    %cst_212 = arith.constant dense<0.000000e+00> : vector<8x8xf32>
    %550 = tpu.matmul %547, %548, %cst_212 {dimension_numbers = #tpu.dot_dimension_numbers<[1], [1], [0], [0], [0, 0, 1, 0], [], []>} : vector<8x8xf32>, vector<8x8xf32>, vector<8x8xf32> -> vector<8x8xf32>
    %cst_213 = arith.constant 0.353553385 : f32
    %551 = vector.broadcast %cst_213 : f32 to vector<8x8xf32>
    %552 = arith.mulf %550, %551 : vector<8x8xf32>
    %cst_214 = arith.constant -3.40282347E+38 : f32
    %553 = vector.broadcast %cst_214 : f32 to vector<8x8xf32>
    %554 = arith.select %2, %552, %553 : vector<8x8xi1>, vector<8x8xf32>
    %555 = vector.broadcast %4 : vector<1x8xf32> to vector<8x8xf32>
    %556 = arith.addf %554, %555 : vector<8x8xf32>
    %cst_215 = arith.constant dense<0xFF800000> : vector<8xf32>
    %557 = vector.multi_reduction <maximumf>, %556, %cst_215 [1] : vector<8x8xf32> to vector<8xf32>
    %558 = vector.shape_cast %557 : vector<8xf32> to vector<8x1xf32>
    %559 = vector.broadcast %558 : vector<8x1xf32> to vector<8x8xf32>
    %560 = arith.subf %556, %559 : vector<8x8xf32>
    %561 = math.exp %560 : vector<8x8xf32>
    %cst_216 = arith.constant dense<0.000000e+00> : vector<8xf32>
    %562 = vector.multi_reduction <add>, %561, %cst_216 [1] : vector<8x8xf32> to vector<8xf32>
    %563 = vector.shape_cast %562 : vector<8xf32> to vector<8x1xf32>
    %564 = tpu.reciprocal %563 {approx = true} : vector<8x1xf32> -> vector<8x1xf32>
    %565 = vector.broadcast %564 : vector<8x1xf32> to vector<8x8xf32>
    %566 = arith.mulf %561, %565 : vector<8x8xf32>
    %cst_217 = arith.constant dense<0.000000e+00> : vector<8x8xf32>
    %567 = tpu.matmul %566, %549, %cst_217 {dimension_numbers = #tpu.dot_dimension_numbers<[1], [0], [0], [1], [0, 0, 1, 1], [], []>} : vector<8x8xf32>, vector<8x8xf32>, vector<8x8xf32> -> vector<8x8xf32>
    %568 = tpu.concatenate %504, %525, %546, %567 in 1 : vector<8x8xf32>, vector<8x8xf32>, vector<8x8xf32>, vector<8x8xf32> -> vector<8x32xf32>
    %cst_218 = arith.constant dense<0.000000e+00> : vector<8x32xf32>
    %569 = tpu.matmul %568, %448, %cst_218 {dimension_numbers = #tpu.dot_dimension_numbers<[1], [0], [0], [1], [0, 0, 1, 1], [], []>} : vector<8x32xf32>, vector<32x32xf32>, vector<8x32xf32> -> vector<8x32xf32>
    %570 = vector.broadcast %450 : vector<1x32xf32> to vector<8x32xf32>
    %571 = arith.addf %569, %570 : vector<8x32xf32>
    %572 = arith.addf %353, %571 : vector<8x32xf32>
    %573 = vector.extract_strided_slice %481 {offsets = [0, 0], sizes = [8, 32], strides = [1, 1]} : vector<8x96xf32> to vector<8x32xf32>
    %574 = vector.extract_strided_slice %481 {offsets = [0, 32], sizes = [8, 32], strides = [1, 1]} : vector<8x96xf32> to vector<8x32xf32>
    %575 = vector.extract_strided_slice %481 {offsets = [0, 64], sizes = [8, 32], strides = [1, 1]} : vector<8x96xf32> to vector<8x32xf32>
    %c1_219 = arith.constant 1 : index
    %c0_220 = arith.constant 0 : index
    %c0_221 = arith.constant 0 : index
    %576 = vector.load %arg14[%c1_219, %c0_220, %c0_221] : memref<2x4x32xf32, #tpu.memory_space<vmem>>, vector<1x4x32xf32>
    %577 = vector.shape_cast %576 : vector<1x4x32xf32> to vector<4x32xf32>
    %cst_222 = arith.constant dense<0.000000e+00> : vector<4x8xf32>
    %578 = tpu.matmul %577, %480, %cst_222 {dimension_numbers = #tpu.dot_dimension_numbers<[1], [1], [0], [0], [0, 0, 1, 0], [], []>} : vector<4x32xf32>, vector<8x32xf32>, vector<4x8xf32> -> vector<4x8xf32>
    %c1_223 = arith.constant 1 : index
    %c0_224 = arith.constant 0 : index
    %c0_225 = arith.constant 0 : index
    %579 = vector.load %arg15[%c1_223, %c0_224, %c0_225] : memref<2x1x32xf32, #tpu.memory_space<vmem>>, vector<1x1x32xf32>
    %580 = vector.shape_cast %579 : vector<1x1x32xf32> to vector<1x32xf32>
    %581 = vector.broadcast %580 : vector<1x32xf32> to vector<8x32xf32>
    %582 = arith.mulf %573, %581 : vector<8x32xf32>
    %c1_226 = arith.constant 1 : index
    %c0_227 = arith.constant 0 : index
    %c0_228 = arith.constant 0 : index
    %583 = vector.load %arg16[%c1_226, %c0_227, %c0_228] : memref<2x4x1xf32, #tpu.memory_space<vmem>>, vector<1x4x1xf32>
    %584 = vector.shape_cast %583 : vector<1x4x1xf32> to vector<4x1xf32>
    %585 = vector.extract_strided_slice %573 {offsets = [0, 0], sizes = [8, 8], strides = [1, 1]} : vector<8x32xf32> to vector<8x8xf32>
    %586 = vector.extract_strided_slice %574 {offsets = [0, 0], sizes = [8, 8], strides = [1, 1]} : vector<8x32xf32> to vector<8x8xf32>
    %cst_229 = arith.constant dense<0.000000e+00> : vector<8x8xf32>
    %587 = tpu.matmul %585, %586, %cst_229 {dimension_numbers = #tpu.dot_dimension_numbers<[1], [1], [0], [0], [0, 0, 1, 0], [], []>} : vector<8x8xf32>, vector<8x8xf32>, vector<8x8xf32> -> vector<8x8xf32>
    %588 = vector.extract_strided_slice %578 {offsets = [0, 0], sizes = [1, 8], strides = [1, 1]} : vector<4x8xf32> to vector<1x8xf32>
    %589 = vector.extract_strided_slice %582 {offsets = [0, 0], sizes = [8, 8], strides = [1, 1]} : vector<8x32xf32> to vector<8x8xf32>
    %cst_230 = arith.constant dense<0.000000e+00> : vector<8xf32>
    %590 = vector.multi_reduction <add>, %589, %cst_230 [1] : vector<8x8xf32> to vector<8xf32>
    %591 = vector.shape_cast %590 : vector<8xf32> to vector<8x1xf32>
    %592 = vector.broadcast %588 : vector<1x8xf32> to vector<8x8xf32>
    %593 = arith.addf %587, %592 : vector<8x8xf32>
    %594 = vector.broadcast %591 : vector<8x1xf32> to vector<8x8xf32>
    %595 = arith.addf %593, %594 : vector<8x8xf32>
    %596 = vector.extract_strided_slice %584 {offsets = [0, 0], sizes = [1, 1], strides = [1, 1]} : vector<4x1xf32> to vector<1x1xf32>
    %597 = vector.broadcast %596 : vector<1x1xf32> to vector<8x8xf32>
    %598 = arith.addf %595, %597 : vector<8x8xf32>
    %cst_231 = arith.constant 0.353553385 : f32
    %599 = vector.broadcast %cst_231 : f32 to vector<8x8xf32>
    %600 = arith.mulf %598, %599 : vector<8x8xf32>
    %cst_232 = arith.constant -3.40282347E+38 : f32
    %601 = vector.broadcast %cst_232 : f32 to vector<8x8xf32>
    %602 = arith.select %2, %600, %601 : vector<8x8xi1>, vector<8x8xf32>
    %cst_233 = arith.constant dense<0xFF800000> : vector<8xf32>
    %603 = vector.multi_reduction <maximumf>, %602, %cst_233 [1] : vector<8x8xf32> to vector<8xf32>
    %604 = vector.shape_cast %603 : vector<8xf32> to vector<8x1xf32>
    %605 = vector.broadcast %604 : vector<8x1xf32> to vector<8x8xf32>
    %606 = arith.subf %602, %605 : vector<8x8xf32>
    %607 = math.exp %606 : vector<8x8xf32>
    %cst_234 = arith.constant dense<0.000000e+00> : vector<8xf32>
    %608 = vector.multi_reduction <add>, %607, %cst_234 [1] : vector<8x8xf32> to vector<8xf32>
    %609 = vector.shape_cast %608 : vector<8xf32> to vector<8x1xf32>
    %610 = tpu.reciprocal %609 {approx = true} : vector<8x1xf32> -> vector<8x1xf32>
    %611 = vector.broadcast %610 : vector<8x1xf32> to vector<8x8xf32>
    %612 = arith.mulf %607, %611 : vector<8x8xf32>
    %613 = vector.extract_strided_slice %575 {offsets = [0, 0], sizes = [8, 8], strides = [1, 1]} : vector<8x32xf32> to vector<8x8xf32>
    %cst_235 = arith.constant dense<0.000000e+00> : vector<8x8xf32>
    %614 = tpu.matmul %612, %613, %cst_235 {dimension_numbers = #tpu.dot_dimension_numbers<[1], [0], [0], [1], [0, 0, 1, 1], [], []>} : vector<8x8xf32>, vector<8x8xf32>, vector<8x8xf32> -> vector<8x8xf32>
    %615 = vector.extract_strided_slice %573 {offsets = [0, 8], sizes = [8, 8], strides = [1, 1]} : vector<8x32xf32> to vector<8x8xf32>
    %616 = vector.extract_strided_slice %574 {offsets = [0, 8], sizes = [8, 8], strides = [1, 1]} : vector<8x32xf32> to vector<8x8xf32>
    %cst_236 = arith.constant dense<0.000000e+00> : vector<8x8xf32>
    %617 = tpu.matmul %615, %616, %cst_236 {dimension_numbers = #tpu.dot_dimension_numbers<[1], [1], [0], [0], [0, 0, 1, 0], [], []>} : vector<8x8xf32>, vector<8x8xf32>, vector<8x8xf32> -> vector<8x8xf32>
    %618 = vector.extract_strided_slice %578 {offsets = [1, 0], sizes = [1, 8], strides = [1, 1]} : vector<4x8xf32> to vector<1x8xf32>
    %619 = vector.extract_strided_slice %582 {offsets = [0, 8], sizes = [8, 8], strides = [1, 1]} : vector<8x32xf32> to vector<8x8xf32>
    %cst_237 = arith.constant dense<0.000000e+00> : vector<8xf32>
    %620 = vector.multi_reduction <add>, %619, %cst_237 [1] : vector<8x8xf32> to vector<8xf32>
    %621 = vector.shape_cast %620 : vector<8xf32> to vector<8x1xf32>
    %622 = vector.broadcast %618 : vector<1x8xf32> to vector<8x8xf32>
    %623 = arith.addf %617, %622 : vector<8x8xf32>
    %624 = vector.broadcast %621 : vector<8x1xf32> to vector<8x8xf32>
    %625 = arith.addf %623, %624 : vector<8x8xf32>
    %626 = vector.extract_strided_slice %584 {offsets = [1, 0], sizes = [1, 1], strides = [1, 1]} : vector<4x1xf32> to vector<1x1xf32>
    %627 = vector.broadcast %626 : vector<1x1xf32> to vector<8x8xf32>
    %628 = arith.addf %625, %627 : vector<8x8xf32>
    %cst_238 = arith.constant 0.353553385 : f32
    %629 = vector.broadcast %cst_238 : f32 to vector<8x8xf32>
    %630 = arith.mulf %628, %629 : vector<8x8xf32>
    %cst_239 = arith.constant -3.40282347E+38 : f32
    %631 = vector.broadcast %cst_239 : f32 to vector<8x8xf32>
    %632 = arith.select %2, %630, %631 : vector<8x8xi1>, vector<8x8xf32>
    %cst_240 = arith.constant dense<0xFF800000> : vector<8xf32>
    %633 = vector.multi_reduction <maximumf>, %632, %cst_240 [1] : vector<8x8xf32> to vector<8xf32>
    %634 = vector.shape_cast %633 : vector<8xf32> to vector<8x1xf32>
    %635 = vector.broadcast %634 : vector<8x1xf32> to vector<8x8xf32>
    %636 = arith.subf %632, %635 : vector<8x8xf32>
    %637 = math.exp %636 : vector<8x8xf32>
    %cst_241 = arith.constant dense<0.000000e+00> : vector<8xf32>
    %638 = vector.multi_reduction <add>, %637, %cst_241 [1] : vector<8x8xf32> to vector<8xf32>
    %639 = vector.shape_cast %638 : vector<8xf32> to vector<8x1xf32>
    %640 = tpu.reciprocal %639 {approx = true} : vector<8x1xf32> -> vector<8x1xf32>
    %641 = vector.broadcast %640 : vector<8x1xf32> to vector<8x8xf32>
    %642 = arith.mulf %637, %641 : vector<8x8xf32>
    %643 = vector.extract_strided_slice %575 {offsets = [0, 8], sizes = [8, 8], strides = [1, 1]} : vector<8x32xf32> to vector<8x8xf32>
    %cst_242 = arith.constant dense<0.000000e+00> : vector<8x8xf32>
    %644 = tpu.matmul %642, %643, %cst_242 {dimension_numbers = #tpu.dot_dimension_numbers<[1], [0], [0], [1], [0, 0, 1, 1], [], []>} : vector<8x8xf32>, vector<8x8xf32>, vector<8x8xf32> -> vector<8x8xf32>
    %645 = vector.extract_strided_slice %573 {offsets = [0, 16], sizes = [8, 8], strides = [1, 1]} : vector<8x32xf32> to vector<8x8xf32>
    %646 = vector.extract_strided_slice %574 {offsets = [0, 16], sizes = [8, 8], strides = [1, 1]} : vector<8x32xf32> to vector<8x8xf32>
    %cst_243 = arith.constant dense<0.000000e+00> : vector<8x8xf32>
    %647 = tpu.matmul %645, %646, %cst_243 {dimension_numbers = #tpu.dot_dimension_numbers<[1], [1], [0], [0], [0, 0, 1, 0], [], []>} : vector<8x8xf32>, vector<8x8xf32>, vector<8x8xf32> -> vector<8x8xf32>
    %648 = vector.extract_strided_slice %578 {offsets = [2, 0], sizes = [1, 8], strides = [1, 1]} : vector<4x8xf32> to vector<1x8xf32>
    %649 = vector.extract_strided_slice %582 {offsets = [0, 16], sizes = [8, 8], strides = [1, 1]} : vector<8x32xf32> to vector<8x8xf32>
    %cst_244 = arith.constant dense<0.000000e+00> : vector<8xf32>
    %650 = vector.multi_reduction <add>, %649, %cst_244 [1] : vector<8x8xf32> to vector<8xf32>
    %651 = vector.shape_cast %650 : vector<8xf32> to vector<8x1xf32>
    %652 = vector.broadcast %648 : vector<1x8xf32> to vector<8x8xf32>
    %653 = arith.addf %647, %652 : vector<8x8xf32>
    %654 = vector.broadcast %651 : vector<8x1xf32> to vector<8x8xf32>
    %655 = arith.addf %653, %654 : vector<8x8xf32>
    %656 = vector.extract_strided_slice %584 {offsets = [2, 0], sizes = [1, 1], strides = [1, 1]} : vector<4x1xf32> to vector<1x1xf32>
    %657 = vector.broadcast %656 : vector<1x1xf32> to vector<8x8xf32>
    %658 = arith.addf %655, %657 : vector<8x8xf32>
    %cst_245 = arith.constant 0.353553385 : f32
    %659 = vector.broadcast %cst_245 : f32 to vector<8x8xf32>
    %660 = arith.mulf %658, %659 : vector<8x8xf32>
    %cst_246 = arith.constant -3.40282347E+38 : f32
    %661 = vector.broadcast %cst_246 : f32 to vector<8x8xf32>
    %662 = arith.select %2, %660, %661 : vector<8x8xi1>, vector<8x8xf32>
    %cst_247 = arith.constant dense<0xFF800000> : vector<8xf32>
    %663 = vector.multi_reduction <maximumf>, %662, %cst_247 [1] : vector<8x8xf32> to vector<8xf32>
    %664 = vector.shape_cast %663 : vector<8xf32> to vector<8x1xf32>
    %665 = vector.broadcast %664 : vector<8x1xf32> to vector<8x8xf32>
    %666 = arith.subf %662, %665 : vector<8x8xf32>
    %667 = math.exp %666 : vector<8x8xf32>
    %cst_248 = arith.constant dense<0.000000e+00> : vector<8xf32>
    %668 = vector.multi_reduction <add>, %667, %cst_248 [1] : vector<8x8xf32> to vector<8xf32>
    %669 = vector.shape_cast %668 : vector<8xf32> to vector<8x1xf32>
    %670 = tpu.reciprocal %669 {approx = true} : vector<8x1xf32> -> vector<8x1xf32>
    %671 = vector.broadcast %670 : vector<8x1xf32> to vector<8x8xf32>
    %672 = arith.mulf %667, %671 : vector<8x8xf32>
    %673 = vector.extract_strided_slice %575 {offsets = [0, 16], sizes = [8, 8], strides = [1, 1]} : vector<8x32xf32> to vector<8x8xf32>
    %cst_249 = arith.constant dense<0.000000e+00> : vector<8x8xf32>
    %674 = tpu.matmul %672, %673, %cst_249 {dimension_numbers = #tpu.dot_dimension_numbers<[1], [0], [0], [1], [0, 0, 1, 1], [], []>} : vector<8x8xf32>, vector<8x8xf32>, vector<8x8xf32> -> vector<8x8xf32>
    %675 = vector.extract_strided_slice %573 {offsets = [0, 24], sizes = [8, 8], strides = [1, 1]} : vector<8x32xf32> to vector<8x8xf32>
    %676 = vector.extract_strided_slice %574 {offsets = [0, 24], sizes = [8, 8], strides = [1, 1]} : vector<8x32xf32> to vector<8x8xf32>
    %cst_250 = arith.constant dense<0.000000e+00> : vector<8x8xf32>
    %677 = tpu.matmul %675, %676, %cst_250 {dimension_numbers = #tpu.dot_dimension_numbers<[1], [1], [0], [0], [0, 0, 1, 0], [], []>} : vector<8x8xf32>, vector<8x8xf32>, vector<8x8xf32> -> vector<8x8xf32>
    %678 = vector.extract_strided_slice %578 {offsets = [3, 0], sizes = [1, 8], strides = [1, 1]} : vector<4x8xf32> to vector<1x8xf32>
    %679 = vector.extract_strided_slice %582 {offsets = [0, 24], sizes = [8, 8], strides = [1, 1]} : vector<8x32xf32> to vector<8x8xf32>
    %cst_251 = arith.constant dense<0.000000e+00> : vector<8xf32>
    %680 = vector.multi_reduction <add>, %679, %cst_251 [1] : vector<8x8xf32> to vector<8xf32>
    %681 = vector.shape_cast %680 : vector<8xf32> to vector<8x1xf32>
    %682 = vector.broadcast %678 : vector<1x8xf32> to vector<8x8xf32>
    %683 = arith.addf %677, %682 : vector<8x8xf32>
    %684 = vector.broadcast %681 : vector<8x1xf32> to vector<8x8xf32>
    %685 = arith.addf %683, %684 : vector<8x8xf32>
    %686 = vector.extract_strided_slice %584 {offsets = [3, 0], sizes = [1, 1], strides = [1, 1]} : vector<4x1xf32> to vector<1x1xf32>
    %687 = vector.broadcast %686 : vector<1x1xf32> to vector<8x8xf32>
    %688 = arith.addf %685, %687 : vector<8x8xf32>
    %cst_252 = arith.constant 0.353553385 : f32
    %689 = vector.broadcast %cst_252 : f32 to vector<8x8xf32>
    %690 = arith.mulf %688, %689 : vector<8x8xf32>
    %cst_253 = arith.constant -3.40282347E+38 : f32
    %691 = vector.broadcast %cst_253 : f32 to vector<8x8xf32>
    %692 = arith.select %2, %690, %691 : vector<8x8xi1>, vector<8x8xf32>
    %cst_254 = arith.constant dense<0xFF800000> : vector<8xf32>
    %693 = vector.multi_reduction <maximumf>, %692, %cst_254 [1] : vector<8x8xf32> to vector<8xf32>
    %694 = vector.shape_cast %693 : vector<8xf32> to vector<8x1xf32>
    %695 = vector.broadcast %694 : vector<8x1xf32> to vector<8x8xf32>
    %696 = arith.subf %692, %695 : vector<8x8xf32>
    %697 = math.exp %696 : vector<8x8xf32>
    %cst_255 = arith.constant dense<0.000000e+00> : vector<8xf32>
    %698 = vector.multi_reduction <add>, %697, %cst_255 [1] : vector<8x8xf32> to vector<8xf32>
    %699 = vector.shape_cast %698 : vector<8xf32> to vector<8x1xf32>
    %700 = tpu.reciprocal %699 {approx = true} : vector<8x1xf32> -> vector<8x1xf32>
    %701 = vector.broadcast %700 : vector<8x1xf32> to vector<8x8xf32>
    %702 = arith.mulf %697, %701 : vector<8x8xf32>
    %703 = vector.extract_strided_slice %575 {offsets = [0, 24], sizes = [8, 8], strides = [1, 1]} : vector<8x32xf32> to vector<8x8xf32>
    %cst_256 = arith.constant dense<0.000000e+00> : vector<8x8xf32>
    %704 = tpu.matmul %702, %703, %cst_256 {dimension_numbers = #tpu.dot_dimension_numbers<[1], [0], [0], [1], [0, 0, 1, 1], [], []>} : vector<8x8xf32>, vector<8x8xf32>, vector<8x8xf32> -> vector<8x8xf32>
    %705 = tpu.concatenate %614, %644, %674, %704 in 1 : vector<8x8xf32>, vector<8x8xf32>, vector<8x8xf32>, vector<8x8xf32> -> vector<8x32xf32>
    %cst_257 = arith.constant dense<0.000000e+00> : vector<8x32xf32>
    %706 = tpu.matmul %705, %448, %cst_257 {dimension_numbers = #tpu.dot_dimension_numbers<[1], [0], [0], [1], [0, 0, 1, 1], [], []>} : vector<8x32xf32>, vector<32x32xf32>, vector<8x32xf32> -> vector<8x32xf32>
    %c1_258 = arith.constant 1 : index
    %c0_259 = arith.constant 0 : index
    %c0_260 = arith.constant 0 : index
    %707 = vector.load %arg17[%c1_258, %c0_259, %c0_260] : memref<2x1x32xf32, #tpu.memory_space<vmem>>, vector<1x1x32xf32>
    %708 = vector.shape_cast %707 : vector<1x1x32xf32> to vector<1x32xf32>
    %709 = vector.broadcast %708 : vector<1x32xf32> to vector<8x32xf32>
    %710 = arith.addf %706, %709 : vector<8x32xf32>
    %711 = arith.addf %353, %710 : vector<8x32xf32>
    %712 = vector.broadcast %450 : vector<1x32xf32> to vector<8x32xf32>
    %713 = arith.addf %711, %712 : vector<8x32xf32>
    %cst_261 = arith.constant dense<0.000000e+00> : vector<8xf32>
    %714 = vector.multi_reduction <add>, %572, %cst_261 [1] : vector<8x32xf32> to vector<8xf32>
    %715 = vector.shape_cast %714 : vector<8xf32> to vector<8x1xf32>
    %cst_262 = arith.constant 3.200000e+01 : f32
    %716 = vector.broadcast %cst_262 : f32 to vector<8x1xf32>
    %717 = arith.divf %715, %716 : vector<8x1xf32>
    %718 = vector.broadcast %717 : vector<8x1xf32> to vector<8x32xf32>
    %719 = arith.subf %572, %718 : vector<8x32xf32>
    %720 = arith.mulf %719, %719 : vector<8x32xf32>
    %cst_263 = arith.constant dense<0.000000e+00> : vector<8xf32>
    %721 = vector.multi_reduction <add>, %720, %cst_263 [1] : vector<8x32xf32> to vector<8xf32>
    %722 = vector.shape_cast %721 : vector<8xf32> to vector<8x1xf32>
    %cst_264 = arith.constant 3.200000e+01 : f32
    %723 = vector.broadcast %cst_264 : f32 to vector<8x1xf32>
    %724 = arith.divf %722, %723 : vector<8x1xf32>
    %725 = vector.broadcast %717 : vector<8x1xf32> to vector<8x32xf32>
    %726 = arith.subf %572, %725 : vector<8x32xf32>
    %cst_265 = arith.constant 9.99999974E-6 : f32
    %727 = vector.broadcast %cst_265 : f32 to vector<8x1xf32>
    %728 = arith.addf %724, %727 : vector<8x1xf32>
    %729 = math.rsqrt %728 : vector<8x1xf32>
    %730 = vector.broadcast %729 : vector<8x1xf32> to vector<8x32xf32>
    %731 = arith.mulf %726, %730 : vector<8x32xf32>
    %732 = vector.broadcast %440 : vector<1x32xf32> to vector<8x32xf32>
    %733 = arith.mulf %731, %732 : vector<8x32xf32>
    %734 = vector.broadcast %442 : vector<1x32xf32> to vector<8x32xf32>
    %735 = arith.addf %733, %734 : vector<8x32xf32>
    %cst_266 = arith.constant dense<0.000000e+00> : vector<8xf32>
    %736 = vector.multi_reduction <add>, %713, %cst_266 [1] : vector<8x32xf32> to vector<8xf32>
    %737 = vector.shape_cast %736 : vector<8xf32> to vector<8x1xf32>
    %cst_267 = arith.constant 3.200000e+01 : f32
    %738 = vector.broadcast %cst_267 : f32 to vector<8x1xf32>
    %739 = arith.divf %737, %738 : vector<8x1xf32>
    %740 = vector.broadcast %739 : vector<8x1xf32> to vector<8x32xf32>
    %741 = arith.subf %713, %740 : vector<8x32xf32>
    %742 = arith.mulf %741, %741 : vector<8x32xf32>
    %cst_268 = arith.constant dense<0.000000e+00> : vector<8xf32>
    %743 = vector.multi_reduction <add>, %742, %cst_268 [1] : vector<8x32xf32> to vector<8xf32>
    %744 = vector.shape_cast %743 : vector<8xf32> to vector<8x1xf32>
    %cst_269 = arith.constant 3.200000e+01 : f32
    %745 = vector.broadcast %cst_269 : f32 to vector<8x1xf32>
    %746 = arith.divf %744, %745 : vector<8x1xf32>
    %747 = vector.broadcast %739 : vector<8x1xf32> to vector<8x32xf32>
    %748 = arith.subf %713, %747 : vector<8x32xf32>
    %cst_270 = arith.constant 9.99999974E-6 : f32
    %749 = vector.broadcast %cst_270 : f32 to vector<8x1xf32>
    %750 = arith.addf %746, %749 : vector<8x1xf32>
    %751 = math.rsqrt %750 : vector<8x1xf32>
    %752 = vector.broadcast %751 : vector<8x1xf32> to vector<8x32xf32>
    %753 = arith.mulf %748, %752 : vector<8x32xf32>
    %754 = vector.broadcast %440 : vector<1x32xf32> to vector<8x32xf32>
    %755 = arith.mulf %753, %754 : vector<8x32xf32>
    %756 = vector.broadcast %442 : vector<1x32xf32> to vector<8x32xf32>
    %757 = arith.addf %755, %756 : vector<8x32xf32>
    %758 = tpu.concatenate %735, %757 in 0 : vector<8x32xf32>, vector<8x32xf32> -> vector<16x32xf32>
    %cst_271 = arith.constant dense<0.000000e+00> : vector<16x128xf32>
    %759 = tpu.matmul %758, %452, %cst_271 {dimension_numbers = #tpu.dot_dimension_numbers<[1], [0], [0], [1], [0, 0, 1, 1], [], []>} : vector<16x32xf32>, vector<32x128xf32>, vector<16x128xf32> -> vector<16x128xf32>
    %760 = vector.broadcast %454 : vector<1x128xf32> to vector<16x128xf32>
    %761 = arith.addf %759, %760 : vector<16x128xf32>
    %cst_272 = arith.constant 5.000000e-01 : f32
    %762 = vector.broadcast %cst_272 : f32 to vector<16x128xf32>
    %763 = arith.mulf %762, %761 : vector<16x128xf32>
    %cst_273 = arith.constant 4.471500e-02 : f32
    %764 = vector.broadcast %cst_273 : f32 to vector<16x128xf32>
    %765 = arith.mulf %764, %761 : vector<16x128xf32>
    %766 = arith.mulf %765, %761 : vector<16x128xf32>
    %767 = arith.mulf %766, %761 : vector<16x128xf32>
    %768 = arith.addf %761, %767 : vector<16x128xf32>
    %cst_274 = arith.constant 0.797884583 : f32
    %769 = vector.broadcast %cst_274 : f32 to vector<16x128xf32>
    %770 = arith.mulf %769, %768 : vector<16x128xf32>
    %771 = math.tanh %770 : vector<16x128xf32>
    %cst_275 = arith.constant 1.000000e+00 : f32
    %772 = vector.broadcast %cst_275 : f32 to vector<16x128xf32>
    %773 = arith.addf %772, %771 : vector<16x128xf32>
    %774 = arith.mulf %763, %773 : vector<16x128xf32>
    %cst_276 = arith.constant dense<0.000000e+00> : vector<16x32xf32>
    %775 = tpu.matmul %774, %456, %cst_276 {dimension_numbers = #tpu.dot_dimension_numbers<[1], [0], [0], [1], [0, 0, 1, 1], [], []>} : vector<16x128xf32>, vector<128x32xf32>, vector<16x32xf32> -> vector<16x32xf32>
    %776 = vector.extract_strided_slice %775 {offsets = [0, 0], sizes = [8, 32], strides = [1, 1]} : vector<16x32xf32> to vector<8x32xf32>
    %777 = arith.addf %572, %776 : vector<8x32xf32>
    %778 = vector.broadcast %458 : vector<1x32xf32> to vector<8x32xf32>
    %779 = arith.addf %777, %778 : vector<8x32xf32>
    %780 = vector.extract_strided_slice %775 {offsets = [8, 0], sizes = [8, 32], strides = [1, 1]} : vector<16x32xf32> to vector<8x32xf32>
    %781 = arith.addf %713, %780 : vector<8x32xf32>
    %782 = vector.broadcast %458 : vector<1x32xf32> to vector<8x32xf32>
    %783 = arith.addf %781, %782 : vector<8x32xf32>
    %784 = vector.extract_strided_slice %783 {offsets = [7, 0], sizes = [1, 32], strides = [1, 1]} : vector<8x32xf32> to vector<1x32xf32>
    %cst_277 = arith.constant dense<0.000000e+00> : vector<8xf32>
    %785 = vector.multi_reduction <add>, %779, %cst_277 [1] : vector<8x32xf32> to vector<8xf32>
    %786 = vector.shape_cast %785 : vector<8xf32> to vector<8x1xf32>
    %cst_278 = arith.constant 3.200000e+01 : f32
    %787 = vector.broadcast %cst_278 : f32 to vector<8x1xf32>
    %788 = arith.divf %786, %787 : vector<8x1xf32>
    %789 = vector.broadcast %788 : vector<8x1xf32> to vector<8x32xf32>
    %790 = arith.subf %779, %789 : vector<8x32xf32>
    %791 = arith.mulf %790, %790 : vector<8x32xf32>
    %cst_279 = arith.constant dense<0.000000e+00> : vector<8xf32>
    %792 = vector.multi_reduction <add>, %791, %cst_279 [1] : vector<8x32xf32> to vector<8xf32>
    %793 = vector.shape_cast %792 : vector<8xf32> to vector<8x1xf32>
    %cst_280 = arith.constant 3.200000e+01 : f32
    %794 = vector.broadcast %cst_280 : f32 to vector<8x1xf32>
    %795 = arith.divf %793, %794 : vector<8x1xf32>
    %796 = vector.broadcast %788 : vector<8x1xf32> to vector<8x32xf32>
    %797 = arith.subf %779, %796 : vector<8x32xf32>
    %cst_281 = arith.constant 9.99999974E-6 : f32
    %798 = vector.broadcast %cst_281 : f32 to vector<8x1xf32>
    %799 = arith.addf %795, %798 : vector<8x1xf32>
    %800 = math.rsqrt %799 : vector<8x1xf32>
    %801 = vector.broadcast %800 : vector<8x1xf32> to vector<8x32xf32>
    %802 = arith.mulf %797, %801 : vector<8x32xf32>
    %803 = vector.broadcast %5 : vector<1x32xf32> to vector<8x32xf32>
    %804 = arith.mulf %802, %803 : vector<8x32xf32>
    %805 = vector.broadcast %6 : vector<1x32xf32> to vector<8x32xf32>
    %806 = arith.addf %804, %805 : vector<8x32xf32>
    %cst_282 = arith.constant dense<0.000000e+00> : vector<1xf32>
    %807 = vector.multi_reduction <add>, %784, %cst_282 [1] : vector<1x32xf32> to vector<1xf32>
    %808 = vector.shape_cast %807 : vector<1xf32> to vector<1x1xf32>
    %cst_283 = arith.constant 3.200000e+01 : f32
    %809 = vector.broadcast %cst_283 : f32 to vector<1x1xf32>
    %810 = arith.divf %808, %809 : vector<1x1xf32>
    %811 = vector.broadcast %810 : vector<1x1xf32> to vector<1x32xf32>
    %812 = arith.subf %784, %811 : vector<1x32xf32>
    %813 = arith.mulf %812, %812 : vector<1x32xf32>
    %cst_284 = arith.constant dense<0.000000e+00> : vector<1xf32>
    %814 = vector.multi_reduction <add>, %813, %cst_284 [1] : vector<1x32xf32> to vector<1xf32>
    %815 = vector.shape_cast %814 : vector<1xf32> to vector<1x1xf32>
    %cst_285 = arith.constant 3.200000e+01 : f32
    %816 = vector.broadcast %cst_285 : f32 to vector<1x1xf32>
    %817 = arith.divf %815, %816 : vector<1x1xf32>
    %818 = vector.broadcast %810 : vector<1x1xf32> to vector<1x32xf32>
    %819 = arith.subf %784, %818 : vector<1x32xf32>
    %cst_286 = arith.constant 9.99999974E-6 : f32
    %820 = vector.broadcast %cst_286 : f32 to vector<1x1xf32>
    %821 = arith.addf %817, %820 : vector<1x1xf32>
    %822 = math.rsqrt %821 : vector<1x1xf32>
    %823 = vector.broadcast %822 : vector<1x1xf32> to vector<1x32xf32>
    %824 = arith.mulf %819, %823 : vector<1x32xf32>
    %825 = arith.mulf %824, %5 : vector<1x32xf32>
    %826 = arith.addf %825, %6 : vector<1x32xf32>
    %827 = tpu.concatenate %806, %826 in 0 : vector<8x32xf32>, vector<1x32xf32> -> vector<9x32xf32>
    %cst_287 = arith.constant dense<0.000000e+00> : vector<9x64xf32>
    %828 = tpu.matmul %827, %7, %cst_287 {dimension_numbers = #tpu.dot_dimension_numbers<[1], [0], [0], [1], [0, 0, 1, 1], [], []>} : vector<9x32xf32>, vector<32x64xf32>, vector<9x64xf32> -> vector<9x64xf32>
    %829 = vector.extract_strided_slice %828 {offsets = [7, 0], sizes = [1, 64], strides = [1, 1]} : vector<9x64xf32> to vector<1x64xf32>
    %830 = vector.extract_strided_slice %828 {offsets = [8, 0], sizes = [1, 64], strides = [1, 1]} : vector<9x64xf32> to vector<1x64xf32>
    %831 = vector.extract_strided_slice %806 {offsets = [7, 0], sizes = [1, 32], strides = [1, 1]} : vector<8x32xf32> to vector<1x32xf32>
    %cst_288 = arith.constant dense<0.000000e+00> : vector<1x64xf32>
    %832 = tpu.matmul %831, %7, %cst_288 {dimension_numbers = #tpu.dot_dimension_numbers<[1], [0], [0], [1], [0, 0, 1, 1], [], []>} : vector<1x32xf32>, vector<32x64xf32>, vector<1x64xf32> -> vector<1x64xf32>
    %833 = arith.subf %829, %832 : vector<1x64xf32>
    %834 = arith.mulf %833, %833 : vector<1x64xf32>
    %cst_289 = arith.constant dense<0.000000e+00> : vector<1xf32>
    %835 = vector.multi_reduction <add>, %834, %cst_289 [1] : vector<1x64xf32> to vector<1xf32>
    %836 = vector.shape_cast %835 : vector<1xf32> to vector<1x1xf32>
    %cst_290 = arith.constant 1.562500e-02 : f32
    %837 = vector.broadcast %cst_290 : f32 to vector<1x1xf32>
    %838 = arith.mulf %836, %837 : vector<1x1xf32>
    %839 = arith.subf %829, %830 : vector<1x64xf32>
    %840 = arith.mulf %839, %839 : vector<1x64xf32>
    %cst_291 = arith.constant dense<0.000000e+00> : vector<1xf32>
    %841 = vector.multi_reduction <add>, %840, %cst_291 [1] : vector<1x64xf32> to vector<1xf32>
    %842 = vector.shape_cast %841 : vector<1xf32> to vector<1x1xf32>
    %cst_292 = arith.constant 1.562500e-02 : f32
    %843 = vector.broadcast %cst_292 : f32 to vector<1x1xf32>
    %844 = arith.mulf %842, %843 : vector<1x1xf32>
    %845 = tpu.concatenate %829, %830 in 1 : vector<1x64xf32>, vector<1x64xf32> -> vector<1x128xf32>
    %c0_i32_293 = arith.constant 0 : i32
    %846 = vector.broadcast %c0_i32_293 : i32 to vector<1x128xi32>
    %847 = arith.cmpi eq, %3, %846 : vector<1x128xi32>
    %c1_i32_294 = arith.constant 1 : i32
    %848 = vector.broadcast %c1_i32_294 : i32 to vector<1x128xi32>
    %849 = arith.cmpi eq, %3, %848 : vector<1x128xi32>
    %cst_295 = arith.constant 0.000000e+00 : f32
    %850 = vector.shape_cast %844 : vector<1x1xf32> to vector<1x1xf32>
    %851 = vector.broadcast %850 : vector<1x1xf32> to vector<1x128xf32>
    %852 = vector.broadcast %cst_295 : f32 to vector<1x128xf32>
    %853 = arith.select %849, %851, %852 : vector<1x128xi1>, vector<1x128xf32>
    %854 = vector.shape_cast %838 : vector<1x1xf32> to vector<1x1xf32>
    %855 = vector.broadcast %854 : vector<1x1xf32> to vector<1x128xf32>
    %856 = arith.select %847, %855, %853 : vector<1x128xi1>, vector<1x128xf32>
    %857 = tpu.concatenate %845, %856 in 0 : vector<1x128xf32>, vector<1x128xf32> -> vector<2x128xf32>
    %c1_296 = arith.constant 1 : index
    %c0_297 = arith.constant 0 : index
    %c0_298 = arith.constant 0 : index
    %858 = vector.load %arg21[%c1_296, %c0_297, %c0_298] : memref<2x2x128xf32, #tpu.memory_space<vmem>>, vector<1x2x128xf32>
    %859 = vector.shape_cast %858 : vector<1x2x128xf32> to vector<2x128xf32>
    %860 = vector.shape_cast %857 : vector<2x128xf32> to vector<1x2x128xf32>
    tpu.vector_store %arg21[%c1_296, %c0_297, %c0_298], %860 {strides = array<i32>} : memref<2x2x128xf32, #tpu.memory_space<vmem>>, vector<1x2x128xf32>,
    return
  }
}

</mosaic_0001>

<llo_original>
// kernel: tpu_custom_call.1
$region0: #{tpu_custom_call.1}
  #allocation0 [shape = 'u32[]', space=smem, size = 0x4, offset = 0x4, fixed_abs, tag = 'smem constant byte address 0x4 - core index']
  #allocation1 [shape = 'u32[144,128]{1,0:T(1,128)}', space=vmem, size = 0x12000, scoped, tag = 'internal scratch']
  %s0 = inlined_call_operand.vmem [shape: f32[8,32], index: 0, kind: input, shape index: {}]
  %s1 = inlined_call_operand.vmem [shape: f32[1,8], index: 1, kind: input, shape index: {}]
  %s2 = inlined_call_operand.vmem [shape: f32[2,1,32], index: 2, kind: input, shape index: {}]
  %s3 = inlined_call_operand.vmem [shape: f32[2,1,32], index: 3, kind: input, shape index: {}]
  %s4 = inlined_call_operand.vmem [shape: f32[2,32,96], index: 4, kind: input, shape index: {}]
  %s5 = inlined_call_operand.vmem [shape: f32[2,1,96], index: 5, kind: input, shape index: {}]
  %s6 = inlined_call_operand.vmem [shape: f32[2,32,32], index: 6, kind: input, shape index: {}]
  %s7 = inlined_call_operand.vmem [shape: f32[2,1,32], index: 7, kind: input, shape index: {}]
  %s8 = inlined_call_operand.vmem [shape: f32[2,1,32], index: 8, kind: input, shape index: {}]
  %s9 = inlined_call_operand.vmem [shape: f32[2,1,32], index: 9, kind: input, shape index: {}]
  %s10 = inlined_call_operand.vmem [shape: f32[2,32,128], index: 10, kind: input, shape index: {}]
  %s11 = inlined_call_operand.vmem [shape: f32[2,1,128], index: 11, kind: input, shape index: {}]
  %s12 = inlined_call_operand.vmem [shape: f32[2,128,32], index: 12, kind: input, shape index: {}]
  %s13 = inlined_call_operand.vmem [shape: f32[2,1,32], index: 13, kind: input, shape index: {}]
  %s14 = inlined_call_operand.vmem [shape: f32[2,4,32], index: 14, kind: input, shape index: {}]
  %s15 = inlined_call_operand.vmem [shape: f32[2,1,32], index: 15, kind: input, shape index: {}]
  %s16 = inlined_call_operand.vmem [shape: f32[2,4,1], index: 16, kind: input, shape index: {}]
  %s17 = inlined_call_operand.vmem [shape: f32[2,1,32], index: 17, kind: input, shape index: {}]
  %s18 = inlined_call_operand.vmem [shape: f32[1,32], index: 18, kind: input, shape index: {}]
  %s19 = inlined_call_operand.vmem [shape: f32[1,32], index: 19, kind: input, shape index: {}]
  %s20 = inlined_call_operand.vmem [shape: f32[32,64], index: 20, kind: input, shape index: {}]
  %s21 = inlined_call_operand.hbm [shape: f32[2,2,128], index: 21, kind: output, shape index: {}]
  %s22 = sld [smem:[#allocation0]]
  $region94: #{tpu_custom_call.1} parent=0
    _
  %s24 = ssub.s32 1, %s22
  %s25 = scalar_select 0, %s24, %s22
  $region1: #{tpu_custom_call.1} parent=0
    #allocation2 [shape = 'u8[2048]{0}', space=vmem, size = 0x800, scoped, tag = 'output window, operand 0, single buffered']
    #allocation3 [shape = 's32[1]{0}', space=sflag, size = 0x4, scoped, tag = 'scoped memory for tpu_custom_call.1']
    %26 = vsyncpa [#allocation3], 0
    // Predicated region
    $region2: #{tpu_custom_call.1} parent=1 // pred_check
      _
    $region3: #{tpu_custom_call.1} parent=1 // pred_check_branch
      %28 = sbr.rel (0) target = $region5
    $region4: #{tpu_custom_call.1} parent=1 // pred_region
      _
    $region5: #{tpu_custom_call.1} parent=1 // pred_fallthru
      _
    // Predicated region
    $region6: #{tpu_custom_call.1} parent=1 // pred_check
      _
    $region7: #{tpu_custom_call.1} parent=1 // pred_check_branch
      %30 = sbr.rel (0) target = $region9
    $region8: #{tpu_custom_call.1} parent=1 // pred_region
      _
    $region9: #{tpu_custom_call.1} parent=1 // pred_fallthru
      _
    // Predicated region
    $region10: #{tpu_custom_call.1} parent=1 // pred_check
      _
    $region11: #{tpu_custom_call.1} parent=1 // pred_check_branch
      %32 = sbr.rel (0) target = $region13
    $region12: #{tpu_custom_call.1} parent=1 // pred_region
      _
    $region13: #{tpu_custom_call.1} parent=1 // pred_fallthru
      _
    // Predicated region
    $region14: #{tpu_custom_call.1} parent=1 // pred_check
      _
    $region15: #{tpu_custom_call.1} parent=1 // pred_check_branch
      %34 = sbr.rel (0) target = $region17
    $region16: #{tpu_custom_call.1} parent=1 // pred_region
      _
    $region17: #{tpu_custom_call.1} parent=1 // pred_fallthru
      _
    // Predicated region
    $region18: #{tpu_custom_call.1} parent=1 // pred_check
      _
    $region19: #{tpu_custom_call.1} parent=1 // pred_check_branch
      %36 = sbr.rel (0) target = $region21
    $region20: #{tpu_custom_call.1} parent=1 // pred_region
      _
    $region21: #{tpu_custom_call.1} parent=1 // pred_fallthru
      _
    // Predicated region
    $region22: #{tpu_custom_call.1} parent=1 // pred_check
      _
    $region23: #{tpu_custom_call.1} parent=1 // pred_check_branch
      %38 = sbr.rel (0) target = $region25
    $region24: #{tpu_custom_call.1} parent=1 // pred_region
      _
    $region25: #{tpu_custom_call.1} parent=1 // pred_fallthru
      _
    // Predicated region
    $region26: #{tpu_custom_call.1} parent=1 // pred_check
      _
    $region27: #{tpu_custom_call.1} parent=1 // pred_check_branch
      %40 = sbr.rel (0) target = $region29
    $region28: #{tpu_custom_call.1} parent=1 // pred_region
      _
    $region29: #{tpu_custom_call.1} parent=1 // pred_fallthru
      _
    // Predicated region
    $region30: #{tpu_custom_call.1} parent=1 // pred_check
      _
    $region31: #{tpu_custom_call.1} parent=1 // pred_check_branch
      %42 = sbr.rel (0) target = $region33
    $region32: #{tpu_custom_call.1} parent=1 // pred_region
      _
    $region33: #{tpu_custom_call.1} parent=1 // pred_fallthru
      _
    // Predicated region
    $region34: #{tpu_custom_call.1} parent=1 // pred_check
      _
    $region35: #{tpu_custom_call.1} parent=1 // pred_check_branch
      %44 = sbr.rel (0) target = $region37
    $region36: #{tpu_custom_call.1} parent=1 // pred_region
      _
    $region37: #{tpu_custom_call.1} parent=1 // pred_fallthru
      _
    // Predicated region
    $region38: #{tpu_custom_call.1} parent=1 // pred_check
      _
    $region39: #{tpu_custom_call.1} parent=1 // pred_check_branch
      %46 = sbr.rel (0) target = $region41
    $region40: #{tpu_custom_call.1} parent=1 // pred_region
      _
    $region41: #{tpu_custom_call.1} parent=1 // pred_fallthru
      _
    // Predicated region
    $region42: #{tpu_custom_call.1} parent=1 // pred_check
      _
    $region43: #{tpu_custom_call.1} parent=1 // pred_check_branch
      %48 = sbr.rel (0) target = $region45
    $region44: #{tpu_custom_call.1} parent=1 // pred_region
      _
    $region45: #{tpu_custom_call.1} parent=1 // pred_fallthru
      _
    // Predicated region
    $region46: #{tpu_custom_call.1} parent=1 // pred_check
      _
    $region47: #{tpu_custom_call.1} parent=1 // pred_check_branch
      %50 = sbr.rel (0) target = $region49
    $region48: #{tpu_custom_call.1} parent=1 // pred_region
      _
    $region49: #{tpu_custom_call.1} parent=1 // pred_fallthru
      _
    // Predicated region
    $region50: #{tpu_custom_call.1} parent=1 // pred_check
      _
    $region51: #{tpu_custom_call.1} parent=1 // pred_check_branch
      %52 = sbr.rel (0) target = $region53
    $region52: #{tpu_custom_call.1} parent=1 // pred_region
      _
    $region53: #{tpu_custom_call.1} parent=1 // pred_fallthru
      _
    // Predicated region
    $region54: #{tpu_custom_call.1} parent=1 // pred_check
      _
    $region55: #{tpu_custom_call.1} parent=1 // pred_check_branch
      %54 = sbr.rel (0) target = $region57
    $region56: #{tpu_custom_call.1} parent=1 // pred_region
      _
    $region57: #{tpu_custom_call.1} parent=1 // pred_fallthru
      _
    // Predicated region
    $region58: #{tpu_custom_call.1} parent=1 // pred_check
      _
    $region59: #{tpu_custom_call.1} parent=1 // pred_check_branch
      %56 = sbr.rel (0) target = $region61
    $region60: #{tpu_custom_call.1} parent=1 // pred_region
      _
    $region61: #{tpu_custom_call.1} parent=1 // pred_fallthru
      _
    // Predicated region
    $region62: #{tpu_custom_call.1} parent=1 // pred_check
      _
    $region63: #{tpu_custom_call.1} parent=1 // pred_check_branch
      %58 = sbr.rel (0) target = $region65
    $region64: #{tpu_custom_call.1} parent=1 // pred_region
      _
    $region65: #{tpu_custom_call.1} parent=1 // pred_fallthru
      _
    // Predicated region
    $region66: #{tpu_custom_call.1} parent=1 // pred_check
      _
    $region67: #{tpu_custom_call.1} parent=1 // pred_check_branch
      %60 = sbr.rel (0) target = $region69
    $region68: #{tpu_custom_call.1} parent=1 // pred_region
      _
    $region69: #{tpu_custom_call.1} parent=1 // pred_fallthru
      _
    // Predicated region
    $region70: #{tpu_custom_call.1} parent=1 // pred_check
      _
    $region71: #{tpu_custom_call.1} parent=1 // pred_check_branch
      %62 = sbr.rel (0) target = $region73
    $region72: #{tpu_custom_call.1} parent=1 // pred_region
      _
    $region73: #{tpu_custom_call.1} parent=1 // pred_fallthru
      _
    // Predicated region
    $region74: #{tpu_custom_call.1} parent=1 // pred_check
      _
    $region75: #{tpu_custom_call.1} parent=1 // pred_check_branch
      %64 = sbr.rel (0) target = $region77
    $region76: #{tpu_custom_call.1} parent=1 // pred_region
      _
    $region77: #{tpu_custom_call.1} parent=1 // pred_fallthru
      _
    // Predicated region
    $region78: #{tpu_custom_call.1} parent=1 // pred_check
      _
    $region79: #{tpu_custom_call.1} parent=1 // pred_check_branch
      %66 = sbr.rel (0) target = $region81
    $region80: #{tpu_custom_call.1} parent=1 // pred_region
      _
    $region81: #{tpu_custom_call.1} parent=1 // pred_fallthru
      _
    // Predicated region
    $region82: #{tpu_custom_call.1} parent=1 // pred_check
      _
    $region83: #{tpu_custom_call.1} parent=1 // pred_check_branch
      %68 = sbr.rel (0) target = $region85
    $region84: #{tpu_custom_call.1} parent=1 // pred_region
      _
    $region85: #{tpu_custom_call.1} parent=1 // pred_fallthru
      _
    %v69 = vlaneseq
    %v70 = vshrl.u32 %v69, 7
    %v71 = vlaneseq
    %v72 = vand.u32 %v71, 127
    %vm73 = vcmp.le.s32.totalorder %v72, %v70
    %v74 = vld [vmem:[%s1] sm:$0x1]
    %v75 = vld [vmem:[%s18] sm:$0x1]
    %v76 = vld [vmem:[%s19] sm:$0x1]
    %v77 = vld [vmem:[%s20] sm:$0xff]
    %v78 = vld [vmem:[%s20 + $0x8] sm:$0xff]
    %v79 = vld [vmem:[%s20 + $0x10] sm:$0xff]
    %v80 = vld [vmem:[%s20 + $0x18] sm:$0xff]
    %v81 = vld [vmem:[%s0] sm:$0xff]
    %v82 = vld [vmem:[%s2] sm:$0x1]
    %v83 = vld [vmem:[%s3] sm:$0x1]
    %v84 = vld [vmem:[%s8] sm:$0x1]
    %v85 = vld [vmem:[%s9] sm:$0x1]
    %v86 = vld [vmem:[%s4] sm:$0xff]
    %v87 = vld [vmem:[%s4 + $0x8] sm:$0xff]
    %v88 = vld [vmem:[%s4 + $0x10] sm:$0xff]
    %v89 = vld [vmem:[%s4 + $0x18] sm:$0xff]
    %v90 = vld [vmem:[%s5] sm:$0x1]
    %v91 = vld [vmem:[%s6] sm:$0xff]
    %v92 = vld [vmem:[%s6 + $0x8] sm:$0xff]
    %v93 = vld [vmem:[%s6 + $0x10] sm:$0xff]
    %v94 = vld [vmem:[%s6 + $0x18] sm:$0xff]
    %v95 = vld [vmem:[%s7] sm:$0x1]
    %v96 = vld [vmem:[%s10] sm:$0xff]
    %v97 = vld [vmem:[%s10 + $0x8] sm:$0xff]
    %v98 = vld [vmem:[%s10 + $0x10] sm:$0xff]
    %v99 = vld [vmem:[%s10 + $0x18] sm:$0xff]
    %v100 = vld [vmem:[%s11] sm:$0x1]
    %v101 = vld [vmem:[%s12] sm:$0xff]
    %v102 = vld [vmem:[%s12 + $0x8] sm:$0xff]
    %v103 = vld [vmem:[%s12 + $0x10] sm:$0xff]
    %v104 = vld [vmem:[%s12 + $0x18] sm:$0xff]
    %v105 = vld [vmem:[%s12 + $0x20] sm:$0xff]
    %v106 = vld [vmem:[%s12 + $0x28] sm:$0xff]
    %v107 = vld [vmem:[%s12 + $0x30] sm:$0xff]
    %v108 = vld [vmem:[%s12 + $0x38] sm:$0xff]
    %v109 = vld [vmem:[%s12 + $0x40] sm:$0xff]
    %v110 = vld [vmem:[%s12 + $0x48] sm:$0xff]
    %v111 = vld [vmem:[%s12 + $0x50] sm:$0xff]
    %v112 = vld [vmem:[%s12 + $0x58] sm:$0xff]
    %v113 = vld [vmem:[%s12 + $0x60] sm:$0xff]
    %v114 = vld [vmem:[%s12 + $0x68] sm:$0xff]
    %v115 = vld [vmem:[%s12 + $0x70] sm:$0xff]
    %v116 = vld [vmem:[%s12 + $0x78] sm:$0xff]
    %v117 = vld [vmem:[%s13] sm:$0x1]
    %vm118 = vcmask 261120
    %v119 = vsel %vm118, %v81, 0.0
    %120 = vadd.xlane.f32.xlu0 %v119
    %v121 = vpop.xlane.xlu0 %120
    %v122 = vrcp.pop 32.0
    %v123 = vmul.f32 %v121, %v122
    %v124 = vsub.f32 %v81, %v123
    %v125 = vmul.f32 %v124, %v124
    %v126 = vsel %vm118, %v125, 0.0
    %127 = vadd.xlane.f32.xlu0 %v126
    %v128 = vpop.xlane.xlu0 %127
    %v129 = vmul.f32 %v128, %v122
    %v130 = vadd.f32 %v129, 1e-05
    %v131 = vrsqrt.pop %v130
    %v132 = vmul.f32 %v124, %v131
    %v134 = vlaneseq
    %v135 = vshrl.u32 %v134, 7
    %v136 = vsub.s32 0, %v135
    %v137 = vrot.slane %v82, %v136
    %v139 = vmul.f32 %v132, %v137
    %v141 = vlaneseq
    %v142 = vshrl.u32 %v141, 7
    %v143 = vsub.s32 0, %v142
    %v144 = vrot.slane %v83, %v143
    %v146 = vadd.f32 %v139, %v144
    %v148 = vsel %vm118, %v146, 0
    %150 = vmatprep.subr.mxu0 0.0
    %151 = vmatpush1.msra.mxu0 %v86
    %152 = vmatprep.subr.mxu0 0.0
    %153 = vmatpush1.msra.mxu0 %v87
    %154 = vmatprep.subr.mxu0 0.0
    %155 = vmatpush1.msra.mxu0 %v88
    %156 = vmatprep.subr.mxu0 0.0
    %157 = vmatpush1.msra.mxu0 %v89
    %158 = vmatprep.subr.mxu0 0.0
    %159 = vmatpush1.msra.mxu0 0.0
    %160 = vmatprep.subr.mxu0 0.0
    %161 = vmatpush1.msra.mxu0 0.0
    %162 = vmatprep.subr.mxu0 0.0
    %163 = vmatpush1.msra.mxu0 0.0
    %164 = vmatprep.subr.mxu0 0.0
    %165 = vmatpush1.msra.mxu0 0.0
    %166 = vmatprep.subr.mxu0 0.0
    %167 = vmatpush1.msra.mxu0 0.0
    %168 = vmatprep.subr.mxu0 0.0
    %169 = vmatpush1.msra.mxu0 0.0
    %170 = vmatprep.subr.mxu0 0.0
    %171 = vmatpush1.msra.mxu0 0.0
    %172 = vmatprep.subr.mxu0 0.0
    %173 = vmatpush1.msra.mxu0 0.0
    %174 = vmatprep.subr.mxu0 0.0
    %175 = vmatpush1.msra.mxu0 0.0
    %176 = vmatprep.subr.mxu0 0.0
    %177 = vmatpush1.msra.mxu0 0.0
    %178 = vmatprep.subr.mxu0 0.0
    %179 = vmatpush1.msra.mxu0 0.0
    %180 = vmatprep.subr.mxu0 0.0
    %181 = vmatpush1.msra.mxu0 0.0
    %182 = vmatprep.subr.mxu0 0.0
    %183 = vmatpush1.msra.mxu0 0.0
    %184 = vmatprep.subr.mxu0 0.0
    %185 = vmatpush1.msra.mxu0 0.0
    %186 = vmatprep.subr.mxu0 0.0
    %187 = vmatpush1.msra.mxu0 0.0
    %188 = vmatprep.subr.mxu0 0.0
    %189 = vmatpush1.msra.mxu0 0.0
    %190 = vmatprep.subr.mxu0 0.0
    %191 = vmatpush1.msra.mxu0 0.0
    %192 = vmatprep.subr.mxu0 0.0
    %193 = vmatpush1.msra.mxu0 0.0
    %194 = vmatprep.subr.mxu0 0.0
    %195 = vmatpush1.msra.mxu0 0.0
    %196 = vmatprep.subr.mxu0 0.0
    %197 = vmatpush1.msra.mxu0 0.0
    %198 = vmatprep.subr.mxu0 0.0
    %199 = vmatpush1.msra.mxu0 0.0
    %200 = vmatprep.subr.mxu0 0.0
    %201 = vmatpush1.msra.mxu0 0.0
    %202 = vmatprep.subr.mxu0 0.0
    %203 = vmatpush1.msra.mxu0 0.0
    %204 = vmatprep.subr.mxu0 0.0
    %205 = vmatpush1.msra.mxu0 0.0
    %206 = vmatprep.subr.mxu0 0.0
    %207 = vmatpush1.msra.mxu0 0.0
    %208 = vmatprep.subr.mxu0 0.0
    %209 = vmatpush1.msra.mxu0 0.0
    %210 = vmatprep.subr.mxu0 0.0
    %211 = vmatpush1.msra.mxu0 0.0
    %212 = vmatprep.subr.mxu0 0.0
    %213 = vmatpush1.msra.mxu0 0.0
    %214 = vmatprep.mubr.f32.mxu0 0.0
    %215 = vmatmul.mubr.f32.gmra.mrb[0].mxu0 %v148
    %v216 = vpop.f32.mrb[0].mxu0
    %v217 = vadd.f32 0.0, %v216
    %v218 = vpop.f32.mrb[0].mxu0
    %219 = vdwg.mxu0
    %v221 = vlaneseq
    %v222 = vshrl.u32 %v221, 7
    %v223 = vsub.s32 0, %v222
    %v224 = vrot.slane %v90, %v223
    %v226 = vadd.f32 %v217, %v224
    %228 = vrot.lane.b32.xlu0 %v226, 96
    %v229 = vpop.permute.xlu0 %228
    %vm230 = vcmask 64512
    %v231 = vsel %vm230, %v226, 0
    %v233 = vsel %vm230, %v229, 0
    %235 = vmatprep.subr.mxu0 0.0
    %236 = vmatpush1.xpose.msra.mxu0 %v233
    %237 = vmatprep.subr.mxu0 0.0
    %238 = vmatpush1.xpose.msra.mxu0 0.0
    %239 = vmatprep.subr.mxu0 0.0
    %240 = vmatpush1.xpose.msra.mxu0 0.0
    %241 = vmatprep.subr.mxu0 0.0
    %242 = vmatpush1.xpose.msra.mxu0 0.0
    %243 = vmatprep.subr.mxu0 0.0
    %244 = vmatpush1.xpose.msra.mxu0 0.0
    %245 = vmatprep.subr.mxu0 0.0
    %246 = vmatpush1.xpose.msra.mxu0 0.0
    %247 = vmatprep.subr.mxu0 0.0
    %248 = vmatpush1.xpose.msra.mxu0 0.0
    %249 = vmatprep.subr.mxu0 0.0
    %250 = vmatpush1.xpose.msra.mxu0 0.0
    %251 = vmatprep.subr.mxu0 0.0
    %252 = vmatpush1.xpose.msra.mxu0 0.0
    %253 = vmatprep.subr.mxu0 0.0
    %254 = vmatpush1.xpose.msra.mxu0 0.0
    %255 = vmatprep.subr.mxu0 0.0
    %256 = vmatpush1.xpose.msra.mxu0 0.0
    %257 = vmatprep.subr.mxu0 0.0
    %258 = vmatpush1.xpose.msra.mxu0 0.0
    %259 = vmatprep.subr.mxu0 0.0
    %260 = vmatpush1.xpose.msra.mxu0 0.0
    %261 = vmatprep.subr.mxu0 0.0
    %262 = vmatpush1.xpose.msra.mxu0 0.0
    %263 = vmatprep.subr.mxu0 0.0
    %264 = vmatpush1.xpose.msra.mxu0 0.0
    %265 = vmatprep.subr.mxu0 0.0
    %266 = vmatpush1.xpose.msra.mxu0 0.0
    %267 = vmatprep.subr.mxu0 0.0
    %268 = vmatpush1.xpose.msra.mxu0 0.0
    %269 = vmatprep.subr.mxu0 0.0
    %270 = vmatpush1.xpose.msra.mxu0 0.0
    %271 = vmatprep.subr.mxu0 0.0
    %272 = vmatpush1.xpose.msra.mxu0 0.0
    %273 = vmatprep.subr.mxu0 0.0
    %274 = vmatpush1.xpose.msra.mxu0 0.0
    %275 = vmatprep.subr.mxu0 0.0
    %276 = vmatpush1.xpose.msra.mxu0 0.0
    %277 = vmatprep.subr.mxu0 0.0
    %278 = vmatpush1.xpose.msra.mxu0 0.0
    %279 = vmatprep.subr.mxu0 0.0
    %280 = vmatpush1.xpose.msra.mxu0 0.0
    %281 = vmatprep.subr.mxu0 0.0
    %282 = vmatpush1.xpose.msra.mxu0 0.0
    %283 = vmatprep.subr.mxu0 0.0
    %284 = vmatpush1.xpose.msra.mxu0 0.0
    %285 = vmatprep.subr.mxu0 0.0
    %286 = vmatpush1.xpose.msra.mxu0 0.0
    %287 = vmatprep.subr.mxu0 0.0
    %288 = vmatpush1.xpose.msra.mxu0 0.0
    %289 = vmatprep.subr.mxu0 0.0
    %290 = vmatpush1.xpose.msra.mxu0 0.0
    %291 = vmatprep.subr.mxu0 0.0
    %292 = vmatpush1.xpose.msra.mxu0 0.0
    %293 = vmatprep.subr.mxu0 0.0
    %294 = vmatpush1.xpose.msra.mxu0 0.0
    %295 = vmatprep.subr.mxu0 0.0
    %296 = vmatpush1.xpose.msra.mxu0 0.0
    %297 = vmatprep.subr.mxu0 0.0
    %298 = vmatpush1.xpose.msra.mxu0 0.0
    %299 = vmatprep.mubr.f32.mxu0 0.0
    %300 = vmatmul.mubr.f32.gmra.mrb[0].mxu0 %v231
    %v301 = vpop.f32.mrb[0].mxu0
    %v302 = vadd.f32 0.0, %v301
    %v303 = vpop.f32.mrb[0].mxu0
    %304 = vdwg.mxu0
    %v305 = vmul.f32 %v302, 0.35355338
    %v306 = vsel %vm73, %v305, -3.4028235e+38
    %v308 = vlaneseq
    %v309 = vshrl.u32 %v308, 7
    %v310 = vsub.s32 0, %v309
    %v311 = vrot.slane %v74, %v310
    %v313 = vadd.f32 %v306, %v311
    %v314 = vsel %vm230, %v313, -inf
    %315 = vmax.xlane.f32.xlu0 %v314
    %v316 = vpop.xlane.xlu0 %315
    %v317 = vsub.f32 %v313, %v316
    %v318 = vmul.f32 %v317, 1.442695
    %v319 = vpow.pop %v318
    %v320 = vsel %vm230, %v319, 0.0
    %321 = vadd.xlane.f32.xlu0 %v320
    %v322 = vpop.xlane.xlu0 %321
    %v323 = vrcp.pop %v322
    %v324 = vmul.f32 %v319, %v323
    %325 = vrot.lane.b32.xlu0 %v226, 64
    %v326 = vpop.permute.xlu0 %325
    %v329 = vsel %vm230, %v324, 0
    %331 = vmatprep.subr.mxu0 0.0
    %332 = vmatpush1.msra.mxu0 %v326
    %333 = vmatprep.subr.mxu0 0.0
    %334 = vmatpush1.msra.mxu0 0.0
    %335 = vmatprep.subr.mxu0 0.0
    %336 = vmatpush1.msra.mxu0 0.0
    %337 = vmatprep.subr.mxu0 0.0
    %338 = vmatpush1.msra.mxu0 0.0
    %339 = vmatprep.subr.mxu0 0.0
    %340 = vmatpush1.msra.mxu0 0.0
    %341 = vmatprep.subr.mxu0 0.0
    %342 = vmatpush1.msra.mxu0 0.0
    %343 = vmatprep.subr.mxu0 0.0
    %344 = vmatpush1.msra.mxu0 0.0
    %345 = vmatprep.subr.mxu0 0.0
    %346 = vmatpush1.msra.mxu0 0.0
    %347 = vmatprep.subr.mxu0 0.0
    %348 = vmatpush1.msra.mxu0 0.0
    %349 = vmatprep.subr.mxu0 0.0
    %350 = vmatpush1.msra.mxu0 0.0
    %351 = vmatprep.subr.mxu0 0.0
    %352 = vmatpush1.msra.mxu0 0.0
    %353 = vmatprep.subr.mxu0 0.0
    %354 = vmatpush1.msra.mxu0 0.0
    %355 = vmatprep.subr.mxu0 0.0
    %356 = vmatpush1.msra.mxu0 0.0
    %357 = vmatprep.subr.mxu0 0.0
    %358 = vmatpush1.msra.mxu0 0.0
    %359 = vmatprep.subr.mxu0 0.0
    %360 = vmatpush1.msra.mxu0 0.0
    %361 = vmatprep.subr.mxu0 0.0
    %362 = vmatpush1.msra.mxu0 0.0
    %363 = vmatprep.subr.mxu0 0.0
    %364 = vmatpush1.msra.mxu0 0.0
    %365 = vmatprep.subr.mxu0 0.0
    %366 = vmatpush1.msra.mxu0 0.0
    %367 = vmatprep.subr.mxu0 0.0
    %368 = vmatpush1.msra.mxu0 0.0
    %369 = vmatprep.subr.mxu0 0.0
    %370 = vmatpush1.msra.mxu0 0.0
    %371 = vmatprep.subr.mxu0 0.0
    %372 = vmatpush1.msra.mxu0 0.0
    %373 = vmatprep.subr.mxu0 0.0
    %374 = vmatpush1.msra.mxu0 0.0
    %375 = vmatprep.subr.mxu0 0.0
    %376 = vmatpush1.msra.mxu0 0.0
    %377 = vmatprep.subr.mxu0 0.0
    %378 = vmatpush1.msra.mxu0 0.0
    %379 = vmatprep.subr.mxu0 0.0
    %380 = vmatpush1.msra.mxu0 0.0
    %381 = vmatprep.subr.mxu0 0.0
    %382 = vmatpush1.msra.mxu0 0.0
    %383 = vmatprep.subr.mxu0 0.0
    %384 = vmatpush1.msra.mxu0 0.0
    %385 = vmatprep.subr.mxu0 0.0
    %386 = vmatpush1.msra.mxu0 0.0
    %387 = vmatprep.subr.mxu0 0.0
    %388 = vmatpush1.msra.mxu0 0.0
    %389 = vmatprep.subr.mxu0 0.0
    %390 = vmatpush1.msra.mxu0 0.0
    %391 = vmatprep.subr.mxu0 0.0
    %392 = vmatpush1.msra.mxu0 0.0
    %393 = vmatprep.subr.mxu0 0.0
    %394 = vmatpush1.msra.mxu0 0.0
    %395 = vmatprep.mubr.f32.mxu0 0.0
    %396 = vmatmul.mubr.f32.gmra.mrb[0].mxu0 %v329
    %v397 = vpop.f32.mrb[0].mxu0
    %v398 = vadd.f32 0.0, %v397
    %v399 = vpop.f32.mrb[0].mxu0
    %400 = vdwg.mxu0
    %401 = vrot.lane.b32.xlu0 %v226, 120
    %v402 = vpop.permute.xlu0 %401
    %403 = vrot.lane.b32.xlu0 %v226, 88
    %v404 = vpop.permute.xlu0 %403
    %v405 = vsel %vm230, %v402, 0
    %v407 = vsel %vm230, %v404, 0
    %409 = vmatprep.subr.mxu0 0.0
    %410 = vmatpush1.xpose.msra.mxu0 %v407
    %411 = vmatprep.subr.mxu0 0.0
    %412 = vmatpush1.xpose.msra.mxu0 0.0
    %413 = vmatprep.subr.mxu0 0.0
    %414 = vmatpush1.xpose.msra.mxu0 0.0
    %415 = vmatprep.subr.mxu0 0.0
    %416 = vmatpush1.xpose.msra.mxu0 0.0
    %417 = vmatprep.subr.mxu0 0.0
    %418 = vmatpush1.xpose.msra.mxu0 0.0
    %419 = vmatprep.subr.mxu0 0.0
    %420 = vmatpush1.xpose.msra.mxu0 0.0
    %421 = vmatprep.subr.mxu0 0.0
    %422 = vmatpush1.xpose.msra.mxu0 0.0
    %423 = vmatprep.subr.mxu0 0.0
    %424 = vmatpush1.xpose.msra.mxu0 0.0
    %425 = vmatprep.subr.mxu0 0.0
    %426 = vmatpush1.xpose.msra.mxu0 0.0
    %427 = vmatprep.subr.mxu0 0.0
    %428 = vmatpush1.xpose.msra.mxu0 0.0
    %429 = vmatprep.subr.mxu0 0.0
    %430 = vmatpush1.xpose.msra.mxu0 0.0
    %431 = vmatprep.subr.mxu0 0.0
    %432 = vmatpush1.xpose.msra.mxu0 0.0
    %433 = vmatprep.subr.mxu0 0.0
    %434 = vmatpush1.xpose.msra.mxu0 0.0
    %435 = vmatprep.subr.mxu0 0.0
    %436 = vmatpush1.xpose.msra.mxu0 0.0
    %437 = vmatprep.subr.mxu0 0.0
    %438 = vmatpush1.xpose.msra.mxu0 0.0
    %439 = vmatprep.subr.mxu0 0.0
    %440 = vmatpush1.xpose.msra.mxu0 0.0
    %441 = vmatprep.subr.mxu0 0.0
    %442 = vmatpush1.xpose.msra.mxu0 0.0
    %443 = vmatprep.subr.mxu0 0.0
    %444 = vmatpush1.xpose.msra.mxu0 0.0
    %445 = vmatprep.subr.mxu0 0.0
    %446 = vmatpush1.xpose.msra.mxu0 0.0
    %447 = vmatprep.subr.mxu0 0.0
    %448 = vmatpush1.xpose.msra.mxu0 0.0
    %449 = vmatprep.subr.mxu0 0.0
    %450 = vmatpush1.xpose.msra.mxu0 0.0
    %451 = vmatprep.subr.mxu0 0.0
    %452 = vmatpush1.xpose.msra.mxu0 0.0
    %453 = vmatprep.subr.mxu0 0.0
    %454 = vmatpush1.xpose.msra.mxu0 0.0
    %455 = vmatprep.subr.mxu0 0.0
    %456 = vmatpush1.xpose.msra.mxu0 0.0
    %457 = vmatprep.subr.mxu0 0.0
    %458 = vmatpush1.xpose.msra.mxu0 0.0
    %459 = vmatprep.subr.mxu0 0.0
    %460 = vmatpush1.xpose.msra.mxu0 0.0
    %461 = vmatprep.subr.mxu0 0.0
    %462 = vmatpush1.xpose.msra.mxu0 0.0
    %463 = vmatprep.subr.mxu0 0.0
    %464 = vmatpush1.xpose.msra.mxu0 0.0
    %465 = vmatprep.subr.mxu0 0.0
    %466 = vmatpush1.xpose.msra.mxu0 0.0
    %467 = vmatprep.subr.mxu0 0.0
    %468 = vmatpush1.xpose.msra.mxu0 0.0
    %469 = vmatprep.subr.mxu0 0.0
    %470 = vmatpush1.xpose.msra.mxu0 0.0
    %471 = vmatprep.subr.mxu0 0.0
    %472 = vmatpush1.xpose.msra.mxu0 0.0
    %473 = vmatprep.mubr.f32.mxu0 0.0
    %474 = vmatmul.mubr.f32.gmra.mrb[0].mxu0 %v405
    %v475 = vpop.f32.mrb[0].mxu0
    %v476 = vadd.f32 0.0, %v475
    %v477 = vpop.f32.mrb[0].mxu0
    %478 = vdwg.mxu0
    %v479 = vmul.f32 %v476, 0.35355338
    %v480 = vsel %vm73, %v479, -3.4028235e+38
    %v481 = vadd.f32 %v480, %v311
    %v482 = vsel %vm230, %v481, -inf
    %483 = vmax.xlane.f32.xlu0 %v482
    %v484 = vpop.xlane.xlu0 %483
    %v485 = vsub.f32 %v481, %v484
    %v486 = vmul.f32 %v485, 1.442695
    %v487 = vpow.pop %v486
    %v488 = vsel %vm230, %v487, 0.0
    %489 = vadd.xlane.f32.xlu0 %v488
    %v490 = vpop.xlane.xlu0 %489
    %v491 = vrcp.pop %v490
    %v492 = vmul.f32 %v487, %v491
    %493 = vrot.lane.b32.xlu0 %v226, 56
    %v494 = vpop.permute.xlu0 %493
    %v497 = vsel %vm230, %v492, 0
    %499 = vmatprep.subr.mxu0 0.0
    %500 = vmatpush1.msra.mxu0 %v494
    %501 = vmatprep.subr.mxu0 0.0
    %502 = vmatpush1.msra.mxu0 0.0
    %503 = vmatprep.subr.mxu0 0.0
    %504 = vmatpush1.msra.mxu0 0.0
    %505 = vmatprep.subr.mxu0 0.0
    %506 = vmatpush1.msra.mxu0 0.0
    %507 = vmatprep.subr.mxu0 0.0
    %508 = vmatpush1.msra.mxu0 0.0
    %509 = vmatprep.subr.mxu0 0.0
    %510 = vmatpush1.msra.mxu0 0.0
    %511 = vmatprep.subr.mxu0 0.0
    %512 = vmatpush1.msra.mxu0 0.0
    %513 = vmatprep.subr.mxu0 0.0
    %514 = vmatpush1.msra.mxu0 0.0
    %515 = vmatprep.subr.mxu0 0.0
    %516 = vmatpush1.msra.mxu0 0.0
    %517 = vmatprep.subr.mxu0 0.0
    %518 = vmatpush1.msra.mxu0 0.0
    %519 = vmatprep.subr.mxu0 0.0
    %520 = vmatpush1.msra.mxu0 0.0
    %521 = vmatprep.subr.mxu0 0.0
    %522 = vmatpush1.msra.mxu0 0.0
    %523 = vmatprep.subr.mxu0 0.0
    %524 = vmatpush1.msra.mxu0 0.0
    %525 = vmatprep.subr.mxu0 0.0
    %526 = vmatpush1.msra.mxu0 0.0
    %527 = vmatprep.subr.mxu0 0.0
    %528 = vmatpush1.msra.mxu0 0.0
    %529 = vmatprep.subr.mxu0 0.0
    %530 = vmatpush1.msra.mxu0 0.0
    %531 = vmatprep.subr.mxu0 0.0
    %532 = vmatpush1.msra.mxu0 0.0
    %533 = vmatprep.subr.mxu0 0.0
    %534 = vmatpush1.msra.mxu0 0.0
    %535 = vmatprep.subr.mxu0 0.0
    %536 = vmatpush1.msra.mxu0 0.0
    %537 = vmatprep.subr.mxu0 0.0
    %538 = vmatpush1.msra.mxu0 0.0
    %539 = vmatprep.subr.mxu0 0.0
    %540 = vmatpush1.msra.mxu0 0.0
    %541 = vmatprep.subr.mxu0 0.0
    %542 = vmatpush1.msra.mxu0 0.0
    %543 = vmatprep.subr.mxu0 0.0
    %544 = vmatpush1.msra.mxu0 0.0
    %545 = vmatprep.subr.mxu0 0.0
    %546 = vmatpush1.msra.mxu0 0.0
    %547 = vmatprep.subr.mxu0 0.0
    %548 = vmatpush1.msra.mxu0 0.0
    %549 = vmatprep.subr.mxu0 0.0
    %550 = vmatpush1.msra.mxu0 0.0
    %551 = vmatprep.subr.mxu0 0.0
    %552 = vmatpush1.msra.mxu0 0.0
    %553 = vmatprep.subr.mxu0 0.0
    %554 = vmatpush1.msra.mxu0 0.0
    %555 = vmatprep.subr.mxu0 0.0
    %556 = vmatpush1.msra.mxu0 0.0
    %557 = vmatprep.subr.mxu0 0.0
    %558 = vmatpush1.msra.mxu0 0.0
    %559 = vmatprep.subr.mxu0 0.0
    %560 = vmatpush1.msra.mxu0 0.0
    %561 = vmatprep.subr.mxu0 0.0
    %562 = vmatpush1.msra.mxu0 0.0
    %563 = vmatprep.mubr.f32.mxu0 0.0
    %564 = vmatmul.mubr.f32.gmra.mrb[0].mxu0 %v497
    %v565 = vpop.f32.mrb[0].mxu0
    %v566 = vadd.f32 0.0, %v565
    %v567 = vpop.f32.mrb[0].mxu0
    %568 = vdwg.mxu0
    %569 = vrot.lane.b32.xlu0 %v226, 112
    %v570 = vpop.permute.xlu0 %569
    %571 = vrot.lane.b32.xlu0 %v226, 80
    %v572 = vpop.permute.xlu0 %571
    %v573 = vsel %vm230, %v570, 0
    %v575 = vsel %vm230, %v572, 0
    %577 = vmatprep.subr.mxu0 0.0
    %578 = vmatpush1.xpose.msra.mxu0 %v575
    %579 = vmatprep.subr.mxu0 0.0
    %580 = vmatpush1.xpose.msra.mxu0 0.0
    %581 = vmatprep.subr.mxu0 0.0
    %582 = vmatpush1.xpose.msra.mxu0 0.0
    %583 = vmatprep.subr.mxu0 0.0
    %584 = vmatpush1.xpose.msra.mxu0 0.0
    %585 = vmatprep.subr.mxu0 0.0
    %586 = vmatpush1.xpose.msra.mxu0 0.0
    %587 = vmatprep.subr.mxu0 0.0
    %588 = vmatpush1.xpose.msra.mxu0 0.0
    %589 = vmatprep.subr.mxu0 0.0
    %590 = vmatpush1.xpose.msra.mxu0 0.0
    %591 = vmatprep.subr.mxu0 0.0
    %592 = vmatpush1.xpose.msra.mxu0 0.0
    %593 = vmatprep.subr.mxu0 0.0
    %594 = vmatpush1.xpose.msra.mxu0 0.0
    %595 = vmatprep.subr.mxu0 0.0
    %596 = vmatpush1.xpose.msra.mxu0 0.0
    %597 = vmatprep.subr.mxu0 0.0
    %598 = vmatpush1.xpose.msra.mxu0 0.0
    %599 = vmatprep.subr.mxu0 0.0
    %600 = vmatpush1.xpose.msra.mxu0 0.0
    %601 = vmatprep.subr.mxu0 0.0
    %602 = vmatpush1.xpose.msra.mxu0 0.0
    %603 = vmatprep.subr.mxu0 0.0
    %604 = vmatpush1.xpose.msra.mxu0 0.0
    %605 = vmatprep.subr.mxu0 0.0
    %606 = vmatpush1.xpose.msra.mxu0 0.0
    %607 = vmatprep.subr.mxu0 0.0
    %608 = vmatpush1.xpose.msra.mxu0 0.0
    %609 = vmatprep.subr.mxu0 0.0
    %610 = vmatpush1.xpose.msra.mxu0 0.0
    %611 = vmatprep.subr.mxu0 0.0
    %612 = vmatpush1.xpose.msra.mxu0 0.0
    %613 = vmatprep.subr.mxu0 0.0
    %614 = vmatpush1.xpose.msra.mxu0 0.0
    %615 = vmatprep.subr.mxu0 0.0
    %616 = vmatpush1.xpose.msra.mxu0 0.0
    %617 = vmatprep.subr.mxu0 0.0
    %618 = vmatpush1.xpose.msra.mxu0 0.0
    %619 = vmatprep.subr.mxu0 0.0
    %620 = vmatpush1.xpose.msra.mxu0 0.0
    %621 = vmatprep.subr.mxu0 0.0
    %622 = vmatpush1.xpose.msra.mxu0 0.0
    %623 = vmatprep.subr.mxu0 0.0
    %624 = vmatpush1.xpose.msra.mxu0 0.0
    %625 = vmatprep.subr.mxu0 0.0
    %626 = vmatpush1.xpose.msra.mxu0 0.0
    %627 = vmatprep.subr.mxu0 0.0
    %628 = vmatpush1.xpose.msra.mxu0 0.0
    %629 = vmatprep.subr.mxu0 0.0
    %630 = vmatpush1.xpose.msra.mxu0 0.0
    %631 = vmatprep.subr.mxu0 0.0
    %632 = vmatpush1.xpose.msra.mxu0 0.0
    %633 = vmatprep.subr.mxu0 0.0
    %634 = vmatpush1.xpose.msra.mxu0 0.0
    %635 = vmatprep.subr.mxu0 0.0
    %636 = vmatpush1.xpose.msra.mxu0 0.0
    %637 = vmatprep.subr.mxu0 0.0
    %638 = vmatpush1.xpose.msra.mxu0 0.0
    %639 = vmatprep.subr.mxu0 0.0
    %640 = vmatpush1.xpose.msra.mxu0 0.0
    %641 = vmatprep.mubr.f32.mxu0 0.0
    %642 = vmatmul.mubr.f32.gmra.mrb[0].mxu0 %v573
    %v643 = vpop.f32.mrb[0].mxu0
    %v644 = vadd.f32 0.0, %v643
    %v645 = vpop.f32.mrb[0].mxu0
    %646 = vdwg.mxu0
    %v647 = vmul.f32 %v644, 0.35355338
    %v648 = vsel %vm73, %v647, -3.4028235e+38
    %v649 = vadd.f32 %v648, %v311
    %v650 = vsel %vm230, %v649, -inf
    %651 = vmax.xlane.f32.xlu0 %v650
    %v652 = vpop.xlane.xlu0 %651
    %v653 = vsub.f32 %v649, %v652
    %v654 = vmul.f32 %v653, 1.442695
    %v655 = vpow.pop %v654
    %v656 = vsel %vm230, %v655, 0.0
    %657 = vadd.xlane.f32.xlu0 %v656
    %v658 = vpop.xlane.xlu0 %657
    %v659 = vrcp.pop %v658
    %v660 = vmul.f32 %v655, %v659
    %661 = vrot.lane.b32.xlu0 %v226, 48
    %v662 = vpop.permute.xlu0 %661
    %v665 = vsel %vm230, %v660, 0
    %667 = vmatprep.subr.mxu0 0.0
    %668 = vmatpush1.msra.mxu0 %v662
    %669 = vmatprep.subr.mxu0 0.0
    %670 = vmatpush1.msra.mxu0 0.0
    %671 = vmatprep.subr.mxu0 0.0
    %672 = vmatpush1.msra.mxu0 0.0
    %673 = vmatprep.subr.mxu0 0.0
    %674 = vmatpush1.msra.mxu0 0.0
    %675 = vmatprep.subr.mxu0 0.0
    %676 = vmatpush1.msra.mxu0 0.0
    %677 = vmatprep.subr.mxu0 0.0
    %678 = vmatpush1.msra.mxu0 0.0
    %679 = vmatprep.subr.mxu0 0.0
    %680 = vmatpush1.msra.mxu0 0.0
    %681 = vmatprep.subr.mxu0 0.0
    %682 = vmatpush1.msra.mxu0 0.0
    %683 = vmatprep.subr.mxu0 0.0
    %684 = vmatpush1.msra.mxu0 0.0
    %685 = vmatprep.subr.mxu0 0.0
    %686 = vmatpush1.msra.mxu0 0.0
    %687 = vmatprep.subr.mxu0 0.0
    %688 = vmatpush1.msra.mxu0 0.0
    %689 = vmatprep.subr.mxu0 0.0
    %690 = vmatpush1.msra.mxu0 0.0
    %691 = vmatprep.subr.mxu0 0.0
    %692 = vmatpush1.msra.mxu0 0.0
    %693 = vmatprep.subr.mxu0 0.0
    %694 = vmatpush1.msra.mxu0 0.0
    %695 = vmatprep.subr.mxu0 0.0
    %696 = vmatpush1.msra.mxu0 0.0
    %697 = vmatprep.subr.mxu0 0.0
    %698 = vmatpush1.msra.mxu0 0.0
    %699 = vmatprep.subr.mxu0 0.0
    %700 = vmatpush1.msra.mxu0 0.0
    %701 = vmatprep.subr.mxu0 0.0
    %702 = vmatpush1.msra.mxu0 0.0
    %703 = vmatprep.subr.mxu0 0.0
    %704 = vmatpush1.msra.mxu0 0.0
    %705 = vmatprep.subr.mxu0 0.0
    %706 = vmatpush1.msra.mxu0 0.0
    %707 = vmatprep.subr.mxu0 0.0
    %708 = vmatpush1.msra.mxu0 0.0
    %709 = vmatprep.subr.mxu0 0.0
    %710 = vmatpush1.msra.mxu0 0.0
    %711 = vmatprep.subr.mxu0 0.0
    %712 = vmatpush1.msra.mxu0 0.0
    %713 = vmatprep.subr.mxu0 0.0
    %714 = vmatpush1.msra.mxu0 0.0
    %715 = vmatprep.subr.mxu0 0.0
    %716 = vmatpush1.msra.mxu0 0.0
    %717 = vmatprep.subr.mxu0 0.0
    %718 = vmatpush1.msra.mxu0 0.0
    %719 = vmatprep.subr.mxu0 0.0
    %720 = vmatpush1.msra.mxu0 0.0
    %721 = vmatprep.subr.mxu0 0.0
    %722 = vmatpush1.msra.mxu0 0.0
    %723 = vmatprep.subr.mxu0 0.0
    %724 = vmatpush1.msra.mxu0 0.0
    %725 = vmatprep.subr.mxu0 0.0
    %726 = vmatpush1.msra.mxu0 0.0
    %727 = vmatprep.subr.mxu0 0.0
    %728 = vmatpush1.msra.mxu0 0.0
    %729 = vmatprep.subr.mxu0 0.0
    %730 = vmatpush1.msra.mxu0 0.0
    %731 = vmatprep.mubr.f32.mxu0 0.0
    %732 = vmatmul.mubr.f32.gmra.mrb[0].mxu0 %v665
    %v733 = vpop.f32.mrb[0].mxu0
    %v734 = vadd.f32 0.0, %v733
    %v735 = vpop.f32.mrb[0].mxu0
    %736 = vdwg.mxu0
    %737 = vrot.lane.b32.xlu0 %v226, 104
    %v738 = vpop.permute.xlu0 %737
    %739 = vrot.lane.b32.xlu0 %v226, 72
    %v740 = vpop.permute.xlu0 %739
    %v741 = vsel %vm230, %v738, 0
    %v743 = vsel %vm230, %v740, 0
    %745 = vmatprep.subr.mxu0 0.0
    %746 = vmatpush1.xpose.msra.mxu0 %v743
    %747 = vmatprep.subr.mxu0 0.0
    %748 = vmatpush1.xpose.msra.mxu0 0.0
    %749 = vmatprep.subr.mxu0 0.0
    %750 = vmatpush1.xpose.msra.mxu0 0.0
    %751 = vmatprep.subr.mxu0 0.0
    %752 = vmatpush1.xpose.msra.mxu0 0.0
    %753 = vmatprep.subr.mxu0 0.0
    %754 = vmatpush1.xpose.msra.mxu0 0.0
    %755 = vmatprep.subr.mxu0 0.0
    %756 = vmatpush1.xpose.msra.mxu0 0.0
    %757 = vmatprep.subr.mxu0 0.0
    %758 = vmatpush1.xpose.msra.mxu0 0.0
    %759 = vmatprep.subr.mxu0 0.0
    %760 = vmatpush1.xpose.msra.mxu0 0.0
    %761 = vmatprep.subr.mxu0 0.0
    %762 = vmatpush1.xpose.msra.mxu0 0.0
    %763 = vmatprep.subr.mxu0 0.0
    %764 = vmatpush1.xpose.msra.mxu0 0.0
    %765 = vmatprep.subr.mxu0 0.0
    %766 = vmatpush1.xpose.msra.mxu0 0.0
    %767 = vmatprep.subr.mxu0 0.0
    %768 = vmatpush1.xpose.msra.mxu0 0.0
    %769 = vmatprep.subr.mxu0 0.0
    %770 = vmatpush1.xpose.msra.mxu0 0.0
    %771 = vmatprep.subr.mxu0 0.0
    %772 = vmatpush1.xpose.msra.mxu0 0.0
    %773 = vmatprep.subr.mxu0 0.0
    %774 = vmatpush1.xpose.msra.mxu0 0.0
    %775 = vmatprep.subr.mxu0 0.0
    %776 = vmatpush1.xpose.msra.mxu0 0.0
    %777 = vmatprep.subr.mxu0 0.0
    %778 = vmatpush1.xpose.msra.mxu0 0.0
    %779 = vmatprep.subr.mxu0 0.0
    %780 = vmatpush1.xpose.msra.mxu0 0.0
    %781 = vmatprep.subr.mxu0 0.0
    %782 = vmatpush1.xpose.msra.mxu0 0.0
    %783 = vmatprep.subr.mxu0 0.0
    %784 = vmatpush1.xpose.msra.mxu0 0.0
    %785 = vmatprep.subr.mxu0 0.0
    %786 = vmatpush1.xpose.msra.mxu0 0.0
    %787 = vmatprep.subr.mxu0 0.0
    %788 = vmatpush1.xpose.msra.mxu0 0.0
    %789 = vmatprep.subr.mxu0 0.0
    %790 = vmatpush1.xpose.msra.mxu0 0.0
    %791 = vmatprep.subr.mxu0 0.0
    %792 = vmatpush1.xpose.msra.mxu0 0.0
    %793 = vmatprep.subr.mxu0 0.0
    %794 = vmatpush1.xpose.msra.mxu0 0.0
    %795 = vmatprep.subr.mxu0 0.0
    %796 = vmatpush1.xpose.msra.mxu0 0.0
    %797 = vmatprep.subr.mxu0 0.0
    %798 = vmatpush1.xpose.msra.mxu0 0.0
    %799 = vmatprep.subr.mxu0 0.0
    %800 = vmatpush1.xpose.msra.mxu0 0.0
    %801 = vmatprep.subr.mxu0 0.0
    %802 = vmatpush1.xpose.msra.mxu0 0.0
    %803 = vmatprep.subr.mxu0 0.0
    %804 = vmatpush1.xpose.msra.mxu0 0.0
    %805 = vmatprep.subr.mxu0 0.0
    %806 = vmatpush1.xpose.msra.mxu0 0.0
    %807 = vmatprep.subr.mxu0 0.0
    %808 = vmatpush1.xpose.msra.mxu0 0.0
    %809 = vmatprep.mubr.f32.mxu0 0.0
    %810 = vmatmul.mubr.f32.gmra.mrb[0].mxu0 %v741
    %v811 = vpop.f32.mrb[0].mxu0
    %v812 = vadd.f32 0.0, %v811
    %v813 = vpop.f32.mrb[0].mxu0
    %814 = vdwg.mxu0
    %v815 = vmul.f32 %v812, 0.35355338
    %v816 = vsel %vm73, %v815, -3.4028235e+38
    %v817 = vadd.f32 %v816, %v311
    %v818 = vsel %vm230, %v817, -inf
    %819 = vmax.xlane.f32.xlu0 %v818
    %v820 = vpop.xlane.xlu0 %819
    %v821 = vsub.f32 %v817, %v820
    %v822 = vmul.f32 %v821, 1.442695
    %v823 = vpow.pop %v822
    %v824 = vsel %vm230, %v823, 0.0
    %825 = vadd.xlane.f32.xlu0 %v824
    %v826 = vpop.xlane.xlu0 %825
    %v827 = vrcp.pop %v826
    %v828 = vmul.f32 %v823, %v827
    %829 = vrot.lane.b32.xlu0 %v226, 40
    %v830 = vpop.permute.xlu0 %829
    %v833 = vsel %vm230, %v828, 0
    %835 = vmatprep.subr.mxu0 0.0
    %836 = vmatpush1.msra.mxu0 %v830
    %837 = vmatprep.subr.mxu0 0.0
    %838 = vmatpush1.msra.mxu0 0.0
    %839 = vmatprep.subr.mxu0 0.0
    %840 = vmatpush1.msra.mxu0 0.0
    %841 = vmatprep.subr.mxu0 0.0
    %842 = vmatpush1.msra.mxu0 0.0
    %843 = vmatprep.subr.mxu0 0.0
    %844 = vmatpush1.msra.mxu0 0.0
    %845 = vmatprep.subr.mxu0 0.0
    %846 = vmatpush1.msra.mxu0 0.0
    %847 = vmatprep.subr.mxu0 0.0
    %848 = vmatpush1.msra.mxu0 0.0
    %849 = vmatprep.subr.mxu0 0.0
    %850 = vmatpush1.msra.mxu0 0.0
    %851 = vmatprep.subr.mxu0 0.0
    %852 = vmatpush1.msra.mxu0 0.0
    %853 = vmatprep.subr.mxu0 0.0
    %854 = vmatpush1.msra.mxu0 0.0
    %855 = vmatprep.subr.mxu0 0.0
    %856 = vmatpush1.msra.mxu0 0.0
    %857 = vmatprep.subr.mxu0 0.0
    %858 = vmatpush1.msra.mxu0 0.0
    %859 = vmatprep.subr.mxu0 0.0
    %860 = vmatpush1.msra.mxu0 0.0
    %861 = vmatprep.subr.mxu0 0.0
    %862 = vmatpush1.msra.mxu0 0.0
    %863 = vmatprep.subr.mxu0 0.0
    %864 = vmatpush1.msra.mxu0 0.0
    %865 = vmatprep.subr.mxu0 0.0
    %866 = vmatpush1.msra.mxu0 0.0
    %867 = vmatprep.subr.mxu0 0.0
    %868 = vmatpush1.msra.mxu0 0.0
    %869 = vmatprep.subr.mxu0 0.0
    %870 = vmatpush1.msra.mxu0 0.0
    %871 = vmatprep.subr.mxu0 0.0
    %872 = vmatpush1.msra.mxu0 0.0
    %873 = vmatprep.subr.mxu0 0.0
    %874 = vmatpush1.msra.mxu0 0.0
    %875 = vmatprep.subr.mxu0 0.0
    %876 = vmatpush1.msra.mxu0 0.0
    %877 = vmatprep.subr.mxu0 0.0
    %878 = vmatpush1.msra.mxu0 0.0
    %879 = vmatprep.subr.mxu0 0.0
    %880 = vmatpush1.msra.mxu0 0.0
    %881 = vmatprep.subr.mxu0 0.0
    %882 = vmatpush1.msra.mxu0 0.0
    %883 = vmatprep.subr.mxu0 0.0
    %884 = vmatpush1.msra.mxu0 0.0
    %885 = vmatprep.subr.mxu0 0.0
    %886 = vmatpush1.msra.mxu0 0.0
    %887 = vmatprep.subr.mxu0 0.0
    %888 = vmatpush1.msra.mxu0 0.0
    %889 = vmatprep.subr.mxu0 0.0
    %890 = vmatpush1.msra.mxu0 0.0
    %891 = vmatprep.subr.mxu0 0.0
    %892 = vmatpush1.msra.mxu0 0.0
    %893 = vmatprep.subr.mxu0 0.0
    %894 = vmatpush1.msra.mxu0 0.0
    %895 = vmatprep.subr.mxu0 0.0
    %896 = vmatpush1.msra.mxu0 0.0
    %897 = vmatprep.subr.mxu0 0.0
    %898 = vmatpush1.msra.mxu0 0.0
    %899 = vmatprep.mubr.f32.mxu0 0.0
    %900 = vmatmul.mubr.f32.gmra.mrb[0].mxu0 %v833
    %v901 = vpop.f32.mrb[0].mxu0
    %v902 = vadd.f32 0.0, %v901
    %v903 = vpop.f32.mrb[0].mxu0
    %904 = vdwg.mxu0
    %906 = vrot.lane.b32.xlu0 %v566, 8
    %v907 = vpop.permute.xlu0 %906
    %910 = vrot.lane.b32.xlu0 %v734, 16
    %v911 = vpop.permute.xlu0 %910
    %914 = vrot.lane.b32.xlu0 %v902, 24
    %v915 = vpop.permute.xlu0 %914
    %v917 = vsel %vm230, %v398, %v907
    %vm918 = vcmask 130048
    %v919 = vsel %vm918, %v917, %v911
    %vm920 = vcmask 195584
    %v921 = vsel %vm920, %v919, %v915
    %v923 = vlaneseq
    %v924 = vshrl.u32 %v923, 7
    %v925 = vsub.s32 0, %v924
    %v926 = vrot.slane %v95, %v925
    %v929 = vsel %vm118, %v921, 0
    %931 = vmatprep.subr.mxu0 0.0
    %932 = vmatpush1.msra.mxu0 %v91
    %933 = vmatprep.subr.mxu0 0.0
    %934 = vmatpush1.msra.mxu0 %v92
    %935 = vmatprep.subr.mxu0 0.0
    %936 = vmatpush1.msra.mxu0 %v93
    %937 = vmatprep.subr.mxu0 0.0
    %938 = vmatpush1.msra.mxu0 %v94
    %939 = vmatprep.subr.mxu0 0.0
    %940 = vmatpush1.msra.mxu0 0.0
    %941 = vmatprep.subr.mxu0 0.0
    %942 = vmatpush1.msra.mxu0 0.0
    %943 = vmatprep.subr.mxu0 0.0
    %944 = vmatpush1.msra.mxu0 0.0
    %945 = vmatprep.subr.mxu0 0.0
    %946 = vmatpush1.msra.mxu0 0.0
    %947 = vmatprep.subr.mxu0 0.0
    %948 = vmatpush1.msra.mxu0 0.0
    %949 = vmatprep.subr.mxu0 0.0
    %950 = vmatpush1.msra.mxu0 0.0
    %951 = vmatprep.subr.mxu0 0.0
    %952 = vmatpush1.msra.mxu0 0.0
    %953 = vmatprep.subr.mxu0 0.0
    %954 = vmatpush1.msra.mxu0 0.0
    %955 = vmatprep.subr.mxu0 0.0
    %956 = vmatpush1.msra.mxu0 0.0
    %957 = vmatprep.subr.mxu0 0.0
    %958 = vmatpush1.msra.mxu0 0.0
    %959 = vmatprep.subr.mxu0 0.0
    %960 = vmatpush1.msra.mxu0 0.0
    %961 = vmatprep.subr.mxu0 0.0
    %962 = vmatpush1.msra.mxu0 0.0
    %963 = vmatprep.subr.mxu0 0.0
    %964 = vmatpush1.msra.mxu0 0.0
    %965 = vmatprep.subr.mxu0 0.0
    %966 = vmatpush1.msra.mxu0 0.0
    %967 = vmatprep.subr.mxu0 0.0
    %968 = vmatpush1.msra.mxu0 0.0
    %969 = vmatprep.subr.mxu0 0.0
    %970 = vmatpush1.msra.mxu0 0.0
    %971 = vmatprep.subr.mxu0 0.0
    %972 = vmatpush1.msra.mxu0 0.0
    %973 = vmatprep.subr.mxu0 0.0
    %974 = vmatpush1.msra.mxu0 0.0
    %975 = vmatprep.subr.mxu0 0.0
    %976 = vmatpush1.msra.mxu0 0.0
    %977 = vmatprep.subr.mxu0 0.0
    %978 = vmatpush1.msra.mxu0 0.0
    %979 = vmatprep.subr.mxu0 0.0
    %980 = vmatpush1.msra.mxu0 0.0
    %981 = vmatprep.subr.mxu0 0.0
    %982 = vmatpush1.msra.mxu0 0.0
    %983 = vmatprep.subr.mxu0 0.0
    %984 = vmatpush1.msra.mxu0 0.0
    %985 = vmatprep.subr.mxu0 0.0
    %986 = vmatpush1.msra.mxu0 0.0
    %987 = vmatprep.subr.mxu0 0.0
    %988 = vmatpush1.msra.mxu0 0.0
    %989 = vmatprep.subr.mxu0 0.0
    %990 = vmatpush1.msra.mxu0 0.0
    %991 = vmatprep.subr.mxu0 0.0
    %992 = vmatpush1.msra.mxu0 0.0
    %993 = vmatprep.subr.mxu0 0.0
    %994 = vmatpush1.msra.mxu0 0.0
    %995 = vmatprep.mubr.f32.mxu0 0.0
    %996 = vmatmul.mubr.f32.gmra.mrb[0].mxu0 %v929
    %v997 = vpop.f32.mrb[0].mxu0
    %v998 = vadd.f32 %v926, %v997
    %v999 = vpop.f32.mrb[0].mxu0
    %1000 = vdwg.mxu0
    %v1001 = vadd.f32 %v81, %v998
    %v1002 = vld [vmem:[%s14] sm:$0xf]
    %v1004 = vsel %vm118, %v1002, 0
    %1006 = vmatprep.subr.mxu0 0.0
    %1007 = vmatpush1.xpose.msra.mxu0 %v148
    %1008 = vmatprep.subr.mxu0 0.0
    %1009 = vmatpush1.xpose.msra.mxu0 0.0
    %1010 = vmatprep.subr.mxu0 0.0
    %1011 = vmatpush1.xpose.msra.mxu0 0.0
    %1012 = vmatprep.subr.mxu0 0.0
    %1013 = vmatpush1.xpose.msra.mxu0 0.0
    %1014 = vmatprep.subr.mxu0 0.0
    %1015 = vmatpush1.xpose.msra.mxu0 0.0
    %1016 = vmatprep.subr.mxu0 0.0
    %1017 = vmatpush1.xpose.msra.mxu0 0.0
    %1018 = vmatprep.subr.mxu0 0.0
    %1019 = vmatpush1.xpose.msra.mxu0 0.0
    %1020 = vmatprep.subr.mxu0 0.0
    %1021 = vmatpush1.xpose.msra.mxu0 0.0
    %1022 = vmatprep.subr.mxu0 0.0
    %1023 = vmatpush1.xpose.msra.mxu0 0.0
    %1024 = vmatprep.subr.mxu0 0.0
    %1025 = vmatpush1.xpose.msra.mxu0 0.0
    %1026 = vmatprep.subr.mxu0 0.0
    %1027 = vmatpush1.xpose.msra.mxu0 0.0
    %1028 = vmatprep.subr.mxu0 0.0
    %1029 = vmatpush1.xpose.msra.mxu0 0.0
    %1030 = vmatprep.subr.mxu0 0.0
    %1031 = vmatpush1.xpose.msra.mxu0 0.0
    %1032 = vmatprep.subr.mxu0 0.0
    %1033 = vmatpush1.xpose.msra.mxu0 0.0
    %1034 = vmatprep.subr.mxu0 0.0
    %1035 = vmatpush1.xpose.msra.mxu0 0.0
    %1036 = vmatprep.subr.mxu0 0.0
    %1037 = vmatpush1.xpose.msra.mxu0 0.0
    %1038 = vmatprep.subr.mxu0 0.0
    %1039 = vmatpush1.xpose.msra.mxu0 0.0
    %1040 = vmatprep.subr.mxu0 0.0
    %1041 = vmatpush1.xpose.msra.mxu0 0.0
    %1042 = vmatprep.subr.mxu0 0.0
    %1043 = vmatpush1.xpose.msra.mxu0 0.0
    %1044 = vmatprep.subr.mxu0 0.0
    %1045 = vmatpush1.xpose.msra.mxu0 0.0
    %1046 = vmatprep.subr.mxu0 0.0
    %1047 = vmatpush1.xpose.msra.mxu0 0.0
    %1048 = vmatprep.subr.mxu0 0.0
    %1049 = vmatpush1.xpose.msra.mxu0 0.0
    %1050 = vmatprep.subr.mxu0 0.0
    %1051 = vmatpush1.xpose.msra.mxu0 0.0
    %1052 = vmatprep.subr.mxu0 0.0
    %1053 = vmatpush1.xpose.msra.mxu0 0.0
    %1054 = vmatprep.subr.mxu0 0.0
    %1055 = vmatpush1.xpose.msra.mxu0 0.0
    %1056 = vmatprep.subr.mxu0 0.0
    %1057 = vmatpush1.xpose.msra.mxu0 0.0
    %1058 = vmatprep.subr.mxu0 0.0
    %1059 = vmatpush1.xpose.msra.mxu0 0.0
    %1060 = vmatprep.subr.mxu0 0.0
    %1061 = vmatpush1.xpose.msra.mxu0 0.0
    %1062 = vmatprep.subr.mxu0 0.0
    %1063 = vmatpush1.xpose.msra.mxu0 0.0
    %1064 = vmatprep.subr.mxu0 0.0
    %1065 = vmatpush1.xpose.msra.mxu0 0.0
    %1066 = vmatprep.subr.mxu0 0.0
    %1067 = vmatpush1.xpose.msra.mxu0 0.0
    %1068 = vmatprep.subr.mxu0 0.0
    %1069 = vmatpush1.xpose.msra.mxu0 0.0
    %1070 = vmatprep.mubr.f32.mxu0 0.0
    %1071 = vmatmul.mubr.f32.gmra.mrb[0].mxu0 %v1004
    %v1072 = vpop.f32.mrb[0].mxu0
    %v1073 = vadd.f32 0.0, %v1072
    %v1074 = vpop.f32.mrb[0].mxu0
    %1075 = vdwg.mxu0
    %v1076 = vld [vmem:[%s15] sm:$0x1]
    %v1078 = vlaneseq
    %v1079 = vshrl.u32 %v1078, 7
    %v1080 = vsub.s32 0, %v1079
    %v1081 = vrot.slane %v1076, %v1080
    %v1083 = vmul.f32 %v217, %v1081
    %v1084 = vld [vmem:[%s16] sm:$0xf]
    %v1085 = vsel %vm230, %v1083, 0.0
    %1086 = vadd.xlane.f32.xlu0 %v1085
    %v1087 = vpop.xlane.xlu0 %1086
    %v1088 = vlaneseq
    %v1089 = vshrl.u32 %v1088, 7
    %v1090 = vsub.s32 0, %v1089
    %v1091 = vrot.slane %v1073, %v1090
    %1093 = vrot.lane.b32.xlu0 %v217, 96
    %v1094 = vpop.permute.xlu0 %1093
    %v1095 = vsel %vm230, %v217, 0
    %v1097 = vsel %vm230, %v1094, 0
    %1099 = vmatprep.subr.mxu0 0.0
    %1100 = vmatpush1.xpose.msra.mxu0 %v1097
    %1101 = vmatprep.subr.mxu0 0.0
    %1102 = vmatpush1.xpose.msra.mxu0 0.0
    %1103 = vmatprep.subr.mxu0 0.0
    %1104 = vmatpush1.xpose.msra.mxu0 0.0
    %1105 = vmatprep.subr.mxu0 0.0
    %1106 = vmatpush1.xpose.msra.mxu0 0.0
    %1107 = vmatprep.subr.mxu0 0.0
    %1108 = vmatpush1.xpose.msra.mxu0 0.0
    %1109 = vmatprep.subr.mxu0 0.0
    %1110 = vmatpush1.xpose.msra.mxu0 0.0
    %1111 = vmatprep.subr.mxu0 0.0
    %1112 = vmatpush1.xpose.msra.mxu0 0.0
    %1113 = vmatprep.subr.mxu0 0.0
    %1114 = vmatpush1.xpose.msra.mxu0 0.0
    %1115 = vmatprep.subr.mxu0 0.0
    %1116 = vmatpush1.xpose.msra.mxu0 0.0
    %1117 = vmatprep.subr.mxu0 0.0
    %1118 = vmatpush1.xpose.msra.mxu0 0.0
    %1119 = vmatprep.subr.mxu0 0.0
    %1120 = vmatpush1.xpose.msra.mxu0 0.0
    %1121 = vmatprep.subr.mxu0 0.0
    %1122 = vmatpush1.xpose.msra.mxu0 0.0
    %1123 = vmatprep.subr.mxu0 0.0
    %1124 = vmatpush1.xpose.msra.mxu0 0.0
    %1125 = vmatprep.subr.mxu0 0.0
    %1126 = vmatpush1.xpose.msra.mxu0 0.0
    %1127 = vmatprep.subr.mxu0 0.0
    %1128 = vmatpush1.xpose.msra.mxu0 0.0
    %1129 = vmatprep.subr.mxu0 0.0
    %1130 = vmatpush1.xpose.msra.mxu0 0.0
    %1131 = vmatprep.subr.mxu0 0.0
    %1132 = vmatpush1.xpose.msra.mxu0 0.0
    %1133 = vmatprep.subr.mxu0 0.0
    %1134 = vmatpush1.xpose.msra.mxu0 0.0
    %1135 = vmatprep.subr.mxu0 0.0
    %1136 = vmatpush1.xpose.msra.mxu0 0.0
    %1137 = vmatprep.subr.mxu0 0.0
    %1138 = vmatpush1.xpose.msra.mxu0 0.0
    %1139 = vmatprep.subr.mxu0 0.0
    %1140 = vmatpush1.xpose.msra.mxu0 0.0
    %1141 = vmatprep.subr.mxu0 0.0
    %1142 = vmatpush1.xpose.msra.mxu0 0.0
    %1143 = vmatprep.subr.mxu0 0.0
    %1144 = vmatpush1.xpose.msra.mxu0 0.0
    %1145 = vmatprep.subr.mxu0 0.0
    %1146 = vmatpush1.xpose.msra.mxu0 0.0
    %1147 = vmatprep.subr.mxu0 0.0
    %1148 = vmatpush1.xpose.msra.mxu0 0.0
    %1149 = vmatprep.subr.mxu0 0.0
    %1150 = vmatpush1.xpose.msra.mxu0 0.0
    %1151 = vmatprep.subr.mxu0 0.0
    %1152 = vmatpush1.xpose.msra.mxu0 0.0
    %1153 = vmatprep.subr.mxu0 0.0
    %1154 = vmatpush1.xpose.msra.mxu0 0.0
    %1155 = vmatprep.subr.mxu0 0.0
    %1156 = vmatpush1.xpose.msra.mxu0 0.0
    %1157 = vmatprep.subr.mxu0 0.0
    %1158 = vmatpush1.xpose.msra.mxu0 0.0
    %1159 = vmatprep.subr.mxu0 0.0
    %1160 = vmatpush1.xpose.msra.mxu0 0.0
    %1161 = vmatprep.subr.mxu0 0.0
    %1162 = vmatpush1.xpose.msra.mxu0 0.0
    %1163 = vmatprep.mubr.f32.mxu0 0.0
    %1164 = vmatmul.mubr.f32.gmra.mrb[0].mxu0 %v1095
    %v1165 = vpop.f32.mrb[0].mxu0
    %v1166 = vadd.f32 %v1091, %v1165
    %v1167 = vpop.f32.mrb[0].mxu0
    %1168 = vdwg.mxu0
    %v1169 = vadd.f32 %v1166, %v1087
    %s1171 = vtos %v1084
    %v1172 = vstv %s1171
    %v1174 = vadd.f32 %v1169, %v1172
    %v1175 = vmul.f32 %v1174, 0.35355338
    %v1176 = vsel %vm73, %v1175, -3.4028235e+38
    %v1177 = vsel %vm230, %v1176, -inf
    %1178 = vmax.xlane.f32.xlu0 %v1177
    %v1179 = vpop.xlane.xlu0 %1178
    %v1180 = vsub.f32 %v1176, %v1179
    %v1181 = vmul.f32 %v1180, 1.442695
    %v1182 = vpow.pop %v1181
    %v1183 = vsel %vm230, %v1182, 0.0
    %1184 = vadd.xlane.f32.xlu0 %v1183
    %v1185 = vpop.xlane.xlu0 %1184
    %v1186 = vrcp.pop %v1185
    %v1187 = vmul.f32 %v1182, %v1186
    %1188 = vrot.lane.b32.xlu0 %v217, 64
    %v1189 = vpop.permute.xlu0 %1188
    %v1192 = vsel %vm230, %v1187, 0
    %1194 = vmatprep.subr.mxu0 0.0
    %1195 = vmatpush1.msra.mxu0 %v1189
    %1196 = vmatprep.subr.mxu0 0.0
    %1197 = vmatpush1.msra.mxu0 0.0
    %1198 = vmatprep.subr.mxu0 0.0
    %1199 = vmatpush1.msra.mxu0 0.0
    %1200 = vmatprep.subr.mxu0 0.0
    %1201 = vmatpush1.msra.mxu0 0.0
    %1202 = vmatprep.subr.mxu0 0.0
    %1203 = vmatpush1.msra.mxu0 0.0
    %1204 = vmatprep.subr.mxu0 0.0
    %1205 = vmatpush1.msra.mxu0 0.0
    %1206 = vmatprep.subr.mxu0 0.0
    %1207 = vmatpush1.msra.mxu0 0.0
    %1208 = vmatprep.subr.mxu0 0.0
    %1209 = vmatpush1.msra.mxu0 0.0
    %1210 = vmatprep.subr.mxu0 0.0
    %1211 = vmatpush1.msra.mxu0 0.0
    %1212 = vmatprep.subr.mxu0 0.0
    %1213 = vmatpush1.msra.mxu0 0.0
    %1214 = vmatprep.subr.mxu0 0.0
    %1215 = vmatpush1.msra.mxu0 0.0
    %1216 = vmatprep.subr.mxu0 0.0
    %1217 = vmatpush1.msra.mxu0 0.0
    %1218 = vmatprep.subr.mxu0 0.0
    %1219 = vmatpush1.msra.mxu0 0.0
    %1220 = vmatprep.subr.mxu0 0.0
    %1221 = vmatpush1.msra.mxu0 0.0
    %1222 = vmatprep.subr.mxu0 0.0
    %1223 = vmatpush1.msra.mxu0 0.0
    %1224 = vmatprep.subr.mxu0 0.0
    %1225 = vmatpush1.msra.mxu0 0.0
    %1226 = vmatprep.subr.mxu0 0.0
    %1227 = vmatpush1.msra.mxu0 0.0
    %1228 = vmatprep.subr.mxu0 0.0
    %1229 = vmatpush1.msra.mxu0 0.0
    %1230 = vmatprep.subr.mxu0 0.0
    %1231 = vmatpush1.msra.mxu0 0.0
    %1232 = vmatprep.subr.mxu0 0.0
    %1233 = vmatpush1.msra.mxu0 0.0
    %1234 = vmatprep.subr.mxu0 0.0
    %1235 = vmatpush1.msra.mxu0 0.0
    %1236 = vmatprep.subr.mxu0 0.0
    %1237 = vmatpush1.msra.mxu0 0.0
    %1238 = vmatprep.subr.mxu0 0.0
    %1239 = vmatpush1.msra.mxu0 0.0
    %1240 = vmatprep.subr.mxu0 0.0
    %1241 = vmatpush1.msra.mxu0 0.0
    %1242 = vmatprep.subr.mxu0 0.0
    %1243 = vmatpush1.msra.mxu0 0.0
    %1244 = vmatprep.subr.mxu0 0.0
    %1245 = vmatpush1.msra.mxu0 0.0
    %1246 = vmatprep.subr.mxu0 0.0
    %1247 = vmatpush1.msra.mxu0 0.0
    %1248 = vmatprep.subr.mxu0 0.0
    %1249 = vmatpush1.msra.mxu0 0.0
    %1250 = vmatprep.subr.mxu0 0.0
    %1251 = vmatpush1.msra.mxu0 0.0
    %1252 = vmatprep.subr.mxu0 0.0
    %1253 = vmatpush1.msra.mxu0 0.0
    %1254 = vmatprep.subr.mxu0 0.0
    %1255 = vmatpush1.msra.mxu0 0.0
    %1256 = vmatprep.subr.mxu0 0.0
    %1257 = vmatpush1.msra.mxu0 0.0
    %1258 = vmatprep.mubr.f32.mxu0 0.0
    %1259 = vmatmul.mubr.f32.gmra.mrb[0].mxu0 %v1192
    %v1260 = vpop.f32.mrb[0].mxu0
    %v1261 = vadd.f32 0.0, %v1260
    %v1262 = vpop.f32.mrb[0].mxu0
    %1263 = vdwg.mxu0
    %1265 = vrot.lane.b32.xlu0 %v1083, 120
    %v1266 = vpop.permute.xlu0 %1265
    %v1268 = vsel %vm230, %v1266, 0.0
    %1269 = vadd.xlane.f32.xlu0 %v1268
    %v1270 = vpop.xlane.xlu0 %1269
    %v1271 = vlaneseq
    %v1272 = vshrl.u32 %v1271, 7
    %v1273 = vsub.s32 1, %v1272
    %v1274 = vrot.slane %v1073, %v1273
    %1275 = vrot.lane.b32.xlu0 %v217, 120
    %v1276 = vpop.permute.xlu0 %1275
    %1277 = vrot.lane.b32.xlu0 %v217, 88
    %v1278 = vpop.permute.xlu0 %1277
    %v1279 = vsel %vm230, %v1276, 0
    %v1281 = vsel %vm230, %v1278, 0
    %1283 = vmatprep.subr.mxu0 0.0
    %1284 = vmatpush1.xpose.msra.mxu0 %v1281
    %1285 = vmatprep.subr.mxu0 0.0
    %1286 = vmatpush1.xpose.msra.mxu0 0.0
    %1287 = vmatprep.subr.mxu0 0.0
    %1288 = vmatpush1.xpose.msra.mxu0 0.0
    %1289 = vmatprep.subr.mxu0 0.0
    %1290 = vmatpush1.xpose.msra.mxu0 0.0
    %1291 = vmatprep.subr.mxu0 0.0
    %1292 = vmatpush1.xpose.msra.mxu0 0.0
    %1293 = vmatprep.subr.mxu0 0.0
    %1294 = vmatpush1.xpose.msra.mxu0 0.0
    %1295 = vmatprep.subr.mxu0 0.0
    %1296 = vmatpush1.xpose.msra.mxu0 0.0
    %1297 = vmatprep.subr.mxu0 0.0
    %1298 = vmatpush1.xpose.msra.mxu0 0.0
    %1299 = vmatprep.subr.mxu0 0.0
    %1300 = vmatpush1.xpose.msra.mxu0 0.0
    %1301 = vmatprep.subr.mxu0 0.0
    %1302 = vmatpush1.xpose.msra.mxu0 0.0
    %1303 = vmatprep.subr.mxu0 0.0
    %1304 = vmatpush1.xpose.msra.mxu0 0.0
    %1305 = vmatprep.subr.mxu0 0.0
    %1306 = vmatpush1.xpose.msra.mxu0 0.0
    %1307 = vmatprep.subr.mxu0 0.0
    %1308 = vmatpush1.xpose.msra.mxu0 0.0
    %1309 = vmatprep.subr.mxu0 0.0
    %1310 = vmatpush1.xpose.msra.mxu0 0.0
    %1311 = vmatprep.subr.mxu0 0.0
    %1312 = vmatpush1.xpose.msra.mxu0 0.0
    %1313 = vmatprep.subr.mxu0 0.0
    %1314 = vmatpush1.xpose.msra.mxu0 0.0
    %1315 = vmatprep.subr.mxu0 0.0
    %1316 = vmatpush1.xpose.msra.mxu0 0.0
    %1317 = vmatprep.subr.mxu0 0.0
    %1318 = vmatpush1.xpose.msra.mxu0 0.0
    %1319 = vmatprep.subr.mxu0 0.0
    %1320 = vmatpush1.xpose.msra.mxu0 0.0
    %1321 = vmatprep.subr.mxu0 0.0
    %1322 = vmatpush1.xpose.msra.mxu0 0.0
    %1323 = vmatprep.subr.mxu0 0.0
    %1324 = vmatpush1.xpose.msra.mxu0 0.0
    %1325 = vmatprep.subr.mxu0 0.0
    %1326 = vmatpush1.xpose.msra.mxu0 0.0
    %1327 = vmatprep.subr.mxu0 0.0
    %1328 = vmatpush1.xpose.msra.mxu0 0.0
    %1329 = vmatprep.subr.mxu0 0.0
    %1330 = vmatpush1.xpose.msra.mxu0 0.0
    %1331 = vmatprep.subr.mxu0 0.0
    %1332 = vmatpush1.xpose.msra.mxu0 0.0
    %1333 = vmatprep.subr.mxu0 0.0
    %1334 = vmatpush1.xpose.msra.mxu0 0.0
    %1335 = vmatprep.subr.mxu0 0.0
    %1336 = vmatpush1.xpose.msra.mxu0 0.0
    %1337 = vmatprep.subr.mxu0 0.0
    %1338 = vmatpush1.xpose.msra.mxu0 0.0
    %1339 = vmatprep.subr.mxu0 0.0
    %1340 = vmatpush1.xpose.msra.mxu0 0.0
    %1341 = vmatprep.subr.mxu0 0.0
    %1342 = vmatpush1.xpose.msra.mxu0 0.0
    %1343 = vmatprep.subr.mxu0 0.0
    %1344 = vmatpush1.xpose.msra.mxu0 0.0
    %1345 = vmatprep.subr.mxu0 0.0
    %1346 = vmatpush1.xpose.msra.mxu0 0.0
    %1347 = vmatprep.mubr.f32.mxu0 0.0
    %1348 = vmatmul.mubr.f32.gmra.mrb[0].mxu0 %v1279
    %v1349 = vpop.f32.mrb[0].mxu0
    %v1350 = vadd.f32 %v1274, %v1349
    %v1351 = vpop.f32.mrb[0].mxu0
    %1352 = vdwg.mxu0
    %v1353 = vadd.f32 %v1350, %v1270
    %v1354 = vrot.slane %v1084, 1
    %s1355 = vtos %v1354
    %v1356 = vstv %s1355
    %v1358 = vadd.f32 %v1353, %v1356
    %v1359 = vmul.f32 %v1358, 0.35355338
    %v1360 = vsel %vm73, %v1359, -3.4028235e+38
    %v1361 = vsel %vm230, %v1360, -inf
    %1362 = vmax.xlane.f32.xlu0 %v1361
    %v1363 = vpop.xlane.xlu0 %1362
    %v1364 = vsub.f32 %v1360, %v1363
    %v1365 = vmul.f32 %v1364, 1.442695
    %v1366 = vpow.pop %v1365
    %v1367 = vsel %vm230, %v1366, 0.0
    %1368 = vadd.xlane.f32.xlu0 %v1367
    %v1369 = vpop.xlane.xlu0 %1368
    %v1370 = vrcp.pop %v1369
    %v1371 = vmul.f32 %v1366, %v1370
    %1372 = vrot.lane.b32.xlu0 %v217, 56
    %v1373 = vpop.permute.xlu0 %1372
    %v1376 = vsel %vm230, %v1371, 0
    %1378 = vmatprep.subr.mxu0 0.0
    %1379 = vmatpush1.msra.mxu0 %v1373
    %1380 = vmatprep.subr.mxu0 0.0
    %1381 = vmatpush1.msra.mxu0 0.0
    %1382 = vmatprep.subr.mxu0 0.0
    %1383 = vmatpush1.msra.mxu0 0.0
    %1384 = vmatprep.subr.mxu0 0.0
    %1385 = vmatpush1.msra.mxu0 0.0
    %1386 = vmatprep.subr.mxu0 0.0
    %1387 = vmatpush1.msra.mxu0 0.0
    %1388 = vmatprep.subr.mxu0 0.0
    %1389 = vmatpush1.msra.mxu0 0.0
    %1390 = vmatprep.subr.mxu0 0.0
    %1391 = vmatpush1.msra.mxu0 0.0
    %1392 = vmatprep.subr.mxu0 0.0
    %1393 = vmatpush1.msra.mxu0 0.0
    %1394 = vmatprep.subr.mxu0 0.0
    %1395 = vmatpush1.msra.mxu0 0.0
    %1396 = vmatprep.subr.mxu0 0.0
    %1397 = vmatpush1.msra.mxu0 0.0
    %1398 = vmatprep.subr.mxu0 0.0
    %1399 = vmatpush1.msra.mxu0 0.0
    %1400 = vmatprep.subr.mxu0 0.0
    %1401 = vmatpush1.msra.mxu0 0.0
    %1402 = vmatprep.subr.mxu0 0.0
    %1403 = vmatpush1.msra.mxu0 0.0
    %1404 = vmatprep.subr.mxu0 0.0
    %1405 = vmatpush1.msra.mxu0 0.0
    %1406 = vmatprep.subr.mxu0 0.0
    %1407 = vmatpush1.msra.mxu0 0.0
    %1408 = vmatprep.subr.mxu0 0.0
    %1409 = vmatpush1.msra.mxu0 0.0
    %1410 = vmatprep.subr.mxu0 0.0
    %1411 = vmatpush1.msra.mxu0 0.0
    %1412 = vmatprep.subr.mxu0 0.0
    %1413 = vmatpush1.msra.mxu0 0.0
    %1414 = vmatprep.subr.mxu0 0.0
    %1415 = vmatpush1.msra.mxu0 0.0
    %1416 = vmatprep.subr.mxu0 0.0
    %1417 = vmatpush1.msra.mxu0 0.0
    %1418 = vmatprep.subr.mxu0 0.0
    %1419 = vmatpush1.msra.mxu0 0.0
    %1420 = vmatprep.subr.mxu0 0.0
    %1421 = vmatpush1.msra.mxu0 0.0
    %1422 = vmatprep.subr.mxu0 0.0
    %1423 = vmatpush1.msra.mxu0 0.0
    %1424 = vmatprep.subr.mxu0 0.0
    %1425 = vmatpush1.msra.mxu0 0.0
    %1426 = vmatprep.subr.mxu0 0.0
    %1427 = vmatpush1.msra.mxu0 0.0
    %1428 = vmatprep.subr.mxu0 0.0
    %1429 = vmatpush1.msra.mxu0 0.0
    %1430 = vmatprep.subr.mxu0 0.0
    %1431 = vmatpush1.msra.mxu0 0.0
    %1432 = vmatprep.subr.mxu0 0.0
    %1433 = vmatpush1.msra.mxu0 0.0
    %1434 = vmatprep.subr.mxu0 0.0
    %1435 = vmatpush1.msra.mxu0 0.0
    %1436 = vmatprep.subr.mxu0 0.0
    %1437 = vmatpush1.msra.mxu0 0.0
    %1438 = vmatprep.subr.mxu0 0.0
    %1439 = vmatpush1.msra.mxu0 0.0
    %1440 = vmatprep.subr.mxu0 0.0
    %1441 = vmatpush1.msra.mxu0 0.0
    %1442 = vmatprep.mubr.f32.mxu0 0.0
    %1443 = vmatmul.mubr.f32.gmra.mrb[0].mxu0 %v1376
    %v1444 = vpop.f32.mrb[0].mxu0
    %v1445 = vadd.f32 0.0, %v1444
    %v1446 = vpop.f32.mrb[0].mxu0
    %1447 = vdwg.mxu0
    %1448 = vrot.lane.b32.xlu0 %v1083, 112
    %v1449 = vpop.permute.xlu0 %1448
    %v1451 = vsel %vm230, %v1449, 0.0
    %1452 = vadd.xlane.f32.xlu0 %v1451
    %v1453 = vpop.xlane.xlu0 %1452
    %v1454 = vlaneseq
    %v1455 = vshrl.u32 %v1454, 7
    %v1456 = vsub.s32 2, %v1455
    %v1457 = vrot.slane %v1073, %v1456
    %1458 = vrot.lane.b32.xlu0 %v217, 112
    %v1459 = vpop.permute.xlu0 %1458
    %1460 = vrot.lane.b32.xlu0 %v217, 80
    %v1461 = vpop.permute.xlu0 %1460
    %v1462 = vsel %vm230, %v1459, 0
    %v1464 = vsel %vm230, %v1461, 0
    %1466 = vmatprep.subr.mxu0 0.0
    %1467 = vmatpush1.xpose.msra.mxu0 %v1464
    %1468 = vmatprep.subr.mxu0 0.0
    %1469 = vmatpush1.xpose.msra.mxu0 0.0
    %1470 = vmatprep.subr.mxu0 0.0
    %1471 = vmatpush1.xpose.msra.mxu0 0.0
    %1472 = vmatprep.subr.mxu0 0.0
    %1473 = vmatpush1.xpose.msra.mxu0 0.0
    %1474 = vmatprep.subr.mxu0 0.0
    %1475 = vmatpush1.xpose.msra.mxu0 0.0
    %1476 = vmatprep.subr.mxu0 0.0
    %1477 = vmatpush1.xpose.msra.mxu0 0.0
    %1478 = vmatprep.subr.mxu0 0.0
    %1479 = vmatpush1.xpose.msra.mxu0 0.0
    %1480 = vmatprep.subr.mxu0 0.0
    %1481 = vmatpush1.xpose.msra.mxu0 0.0
    %1482 = vmatprep.subr.mxu0 0.0
    %1483 = vmatpush1.xpose.msra.mxu0 0.0
    %1484 = vmatprep.subr.mxu0 0.0
    %1485 = vmatpush1.xpose.msra.mxu0 0.0
    %1486 = vmatprep.subr.mxu0 0.0
    %1487 = vmatpush1.xpose.msra.mxu0 0.0
    %1488 = vmatprep.subr.mxu0 0.0
    %1489 = vmatpush1.xpose.msra.mxu0 0.0
    %1490 = vmatprep.subr.mxu0 0.0
    %1491 = vmatpush1.xpose.msra.mxu0 0.0
    %1492 = vmatprep.subr.mxu0 0.0
    %1493 = vmatpush1.xpose.msra.mxu0 0.0
    %1494 = vmatprep.subr.mxu0 0.0
    %1495 = vmatpush1.xpose.msra.mxu0 0.0
    %1496 = vmatprep.subr.mxu0 0.0
    %1497 = vmatpush1.xpose.msra.mxu0 0.0
    %1498 = vmatprep.subr.mxu0 0.0
    %1499 = vmatpush1.xpose.msra.mxu0 0.0
    %1500 = vmatprep.subr.mxu0 0.0
    %1501 = vmatpush1.xpose.msra.mxu0 0.0
    %1502 = vmatprep.subr.mxu0 0.0
    %1503 = vmatpush1.xpose.msra.mxu0 0.0
    %1504 = vmatprep.subr.mxu0 0.0
    %1505 = vmatpush1.xpose.msra.mxu0 0.0
    %1506 = vmatprep.subr.mxu0 0.0
    %1507 = vmatpush1.xpose.msra.mxu0 0.0
    %1508 = vmatprep.subr.mxu0 0.0
    %1509 = vmatpush1.xpose.msra.mxu0 0.0
    %1510 = vmatprep.subr.mxu0 0.0
    %1511 = vmatpush1.xpose.msra.mxu0 0.0
    %1512 = vmatprep.subr.mxu0 0.0
    %1513 = vmatpush1.xpose.msra.mxu0 0.0
    %1514 = vmatprep.subr.mxu0 0.0
    %1515 = vmatpush1.xpose.msra.mxu0 0.0
    %1516 = vmatprep.subr.mxu0 0.0
    %1517 = vmatpush1.xpose.msra.mxu0 0.0
    %1518 = vmatprep.subr.mxu0 0.0
    %1519 = vmatpush1.xpose.msra.mxu0 0.0
    %1520 = vmatprep.subr.mxu0 0.0
    %1521 = vmatpush1.xpose.msra.mxu0 0.0
    %1522 = vmatprep.subr.mxu0 0.0
    %1523 = vmatpush1.xpose.msra.mxu0 0.0
    %1524 = vmatprep.subr.mxu0 0.0
    %1525 = vmatpush1.xpose.msra.mxu0 0.0
    %1526 = vmatprep.subr.mxu0 0.0
    %1527 = vmatpush1.xpose.msra.mxu0 0.0
    %1528 = vmatprep.subr.mxu0 0.0
    %1529 = vmatpush1.xpose.msra.mxu0 0.0
    %1530 = vmatprep.mubr.f32.mxu0 0.0
    %1531 = vmatmul.mubr.f32.gmra.mrb[0].mxu0 %v1462
    %v1532 = vpop.f32.mrb[0].mxu0
    %v1533 = vadd.f32 %v1457, %v1532
    %v1534 = vpop.f32.mrb[0].mxu0
    %1535 = vdwg.mxu0
    %v1536 = vadd.f32 %v1533, %v1453
    %v1537 = vrot.slane %v1084, 2
    %s1538 = vtos %v1537
    %v1539 = vstv %s1538
    %v1541 = vadd.f32 %v1536, %v1539
    %v1542 = vmul.f32 %v1541, 0.35355338
    %v1543 = vsel %vm73, %v1542, -3.4028235e+38
    %v1544 = vsel %vm230, %v1543, -inf
    %1545 = vmax.xlane.f32.xlu0 %v1544
    %v1546 = vpop.xlane.xlu0 %1545
    %v1547 = vsub.f32 %v1543, %v1546
    %v1548 = vmul.f32 %v1547, 1.442695
    %v1549 = vpow.pop %v1548
    %v1550 = vsel %vm230, %v1549, 0.0
    %1551 = vadd.xlane.f32.xlu0 %v1550
    %v1552 = vpop.xlane.xlu0 %1551
    %v1553 = vrcp.pop %v1552
    %v1554 = vmul.f32 %v1549, %v1553
    %1555 = vrot.lane.b32.xlu0 %v217, 48
    %v1556 = vpop.permute.xlu0 %1555
    %v1559 = vsel %vm230, %v1554, 0
    %1561 = vmatprep.subr.mxu0 0.0
    %1562 = vmatpush1.msra.mxu0 %v1556
    %1563 = vmatprep.subr.mxu0 0.0
    %1564 = vmatpush1.msra.mxu0 0.0
    %1565 = vmatprep.subr.mxu0 0.0
    %1566 = vmatpush1.msra.mxu0 0.0
    %1567 = vmatprep.subr.mxu0 0.0
    %1568 = vmatpush1.msra.mxu0 0.0
    %1569 = vmatprep.subr.mxu0 0.0
    %1570 = vmatpush1.msra.mxu0 0.0
    %1571 = vmatprep.subr.mxu0 0.0
    %1572 = vmatpush1.msra.mxu0 0.0
    %1573 = vmatprep.subr.mxu0 0.0
    %1574 = vmatpush1.msra.mxu0 0.0
    %1575 = vmatprep.subr.mxu0 0.0
    %1576 = vmatpush1.msra.mxu0 0.0
    %1577 = vmatprep.subr.mxu0 0.0
    %1578 = vmatpush1.msra.mxu0 0.0
    %1579 = vmatprep.subr.mxu0 0.0
    %1580 = vmatpush1.msra.mxu0 0.0
    %1581 = vmatprep.subr.mxu0 0.0
    %1582 = vmatpush1.msra.mxu0 0.0
    %1583 = vmatprep.subr.mxu0 0.0
    %1584 = vmatpush1.msra.mxu0 0.0
    %1585 = vmatprep.subr.mxu0 0.0
    %1586 = vmatpush1.msra.mxu0 0.0
    %1587 = vmatprep.subr.mxu0 0.0
    %1588 = vmatpush1.msra.mxu0 0.0
    %1589 = vmatprep.subr.mxu0 0.0
    %1590 = vmatpush1.msra.mxu0 0.0
    %1591 = vmatprep.subr.mxu0 0.0
    %1592 = vmatpush1.msra.mxu0 0.0
    %1593 = vmatprep.subr.mxu0 0.0
    %1594 = vmatpush1.msra.mxu0 0.0
    %1595 = vmatprep.subr.mxu0 0.0
    %1596 = vmatpush1.msra.mxu0 0.0
    %1597 = vmatprep.subr.mxu0 0.0
    %1598 = vmatpush1.msra.mxu0 0.0
    %1599 = vmatprep.subr.mxu0 0.0
    %1600 = vmatpush1.msra.mxu0 0.0
    %1601 = vmatprep.subr.mxu0 0.0
    %1602 = vmatpush1.msra.mxu0 0.0
    %1603 = vmatprep.subr.mxu0 0.0
    %1604 = vmatpush1.msra.mxu0 0.0
    %1605 = vmatprep.subr.mxu0 0.0
    %1606 = vmatpush1.msra.mxu0 0.0
    %1607 = vmatprep.subr.mxu0 0.0
    %1608 = vmatpush1.msra.mxu0 0.0
    %1609 = vmatprep.subr.mxu0 0.0
    %1610 = vmatpush1.msra.mxu0 0.0
    %1611 = vmatprep.subr.mxu0 0.0
    %1612 = vmatpush1.msra.mxu0 0.0
    %1613 = vmatprep.subr.mxu0 0.0
    %1614 = vmatpush1.msra.mxu0 0.0
    %1615 = vmatprep.subr.mxu0 0.0
    %1616 = vmatpush1.msra.mxu0 0.0
    %1617 = vmatprep.subr.mxu0 0.0
    %1618 = vmatpush1.msra.mxu0 0.0
    %1619 = vmatprep.subr.mxu0 0.0
    %1620 = vmatpush1.msra.mxu0 0.0
    %1621 = vmatprep.subr.mxu0 0.0
    %1622 = vmatpush1.msra.mxu0 0.0
    %1623 = vmatprep.subr.mxu0 0.0
    %1624 = vmatpush1.msra.mxu0 0.0
    %1625 = vmatprep.mubr.f32.mxu0 0.0
    %1626 = vmatmul.mubr.f32.gmra.mrb[0].mxu0 %v1559
    %v1627 = vpop.f32.mrb[0].mxu0
    %v1628 = vadd.f32 0.0, %v1627
    %v1629 = vpop.f32.mrb[0].mxu0
    %1630 = vdwg.mxu0
    %1631 = vrot.lane.b32.xlu0 %v1083, 104
    %v1632 = vpop.permute.xlu0 %1631
    %v1634 = vsel %vm230, %v1632, 0.0
    %1635 = vadd.xlane.f32.xlu0 %v1634
    %v1636 = vpop.xlane.xlu0 %1635
    %v1637 = vlaneseq
    %v1638 = vshrl.u32 %v1637, 7
    %v1639 = vsub.s32 3, %v1638
    %v1640 = vrot.slane %v1073, %v1639
    %1641 = vrot.lane.b32.xlu0 %v217, 104
    %v1642 = vpop.permute.xlu0 %1641
    %1643 = vrot.lane.b32.xlu0 %v217, 72
    %v1644 = vpop.permute.xlu0 %1643
    %v1645 = vsel %vm230, %v1642, 0
    %v1647 = vsel %vm230, %v1644, 0
    %1649 = vmatprep.subr.mxu0 0.0
    %1650 = vmatpush1.xpose.msra.mxu0 %v1647
    %1651 = vmatprep.subr.mxu0 0.0
    %1652 = vmatpush1.xpose.msra.mxu0 0.0
    %1653 = vmatprep.subr.mxu0 0.0
    %1654 = vmatpush1.xpose.msra.mxu0 0.0
    %1655 = vmatprep.subr.mxu0 0.0
    %1656 = vmatpush1.xpose.msra.mxu0 0.0
    %1657 = vmatprep.subr.mxu0 0.0
    %1658 = vmatpush1.xpose.msra.mxu0 0.0
    %1659 = vmatprep.subr.mxu0 0.0
    %1660 = vmatpush1.xpose.msra.mxu0 0.0
    %1661 = vmatprep.subr.mxu0 0.0
    %1662 = vmatpush1.xpose.msra.mxu0 0.0
    %1663 = vmatprep.subr.mxu0 0.0
    %1664 = vmatpush1.xpose.msra.mxu0 0.0
    %1665 = vmatprep.subr.mxu0 0.0
    %1666 = vmatpush1.xpose.msra.mxu0 0.0
    %1667 = vmatprep.subr.mxu0 0.0
    %1668 = vmatpush1.xpose.msra.mxu0 0.0
    %1669 = vmatprep.subr.mxu0 0.0
    %1670 = vmatpush1.xpose.msra.mxu0 0.0
    %1671 = vmatprep.subr.mxu0 0.0
    %1672 = vmatpush1.xpose.msra.mxu0 0.0
    %1673 = vmatprep.subr.mxu0 0.0
    %1674 = vmatpush1.xpose.msra.mxu0 0.0
    %1675 = vmatprep.subr.mxu0 0.0
    %1676 = vmatpush1.xpose.msra.mxu0 0.0
    %1677 = vmatprep.subr.mxu0 0.0
    %1678 = vmatpush1.xpose.msra.mxu0 0.0
    %1679 = vmatprep.subr.mxu0 0.0
    %1680 = vmatpush1.xpose.msra.mxu0 0.0
    %1681 = vmatprep.subr.mxu0 0.0
    %1682 = vmatpush1.xpose.msra.mxu0 0.0
    %1683 = vmatprep.subr.mxu0 0.0
    %1684 = vmatpush1.xpose.msra.mxu0 0.0
    %1685 = vmatprep.subr.mxu0 0.0
    %1686 = vmatpush1.xpose.msra.mxu0 0.0
    %1687 = vmatprep.subr.mxu0 0.0
    %1688 = vmatpush1.xpose.msra.mxu0 0.0
    %1689 = vmatprep.subr.mxu0 0.0
    %1690 = vmatpush1.xpose.msra.mxu0 0.0
    %1691 = vmatprep.subr.mxu0 0.0
    %1692 = vmatpush1.xpose.msra.mxu0 0.0
    %1693 = vmatprep.subr.mxu0 0.0
    %1694 = vmatpush1.xpose.msra.mxu0 0.0
    %1695 = vmatprep.subr.mxu0 0.0
    %1696 = vmatpush1.xpose.msra.mxu0 0.0
    %1697 = vmatprep.subr.mxu0 0.0
    %1698 = vmatpush1.xpose.msra.mxu0 0.0
    %1699 = vmatprep.subr.mxu0 0.0
    %1700 = vmatpush1.xpose.msra.mxu0 0.0
    %1701 = vmatprep.subr.mxu0 0.0
    %1702 = vmatpush1.xpose.msra.mxu0 0.0
    %1703 = vmatprep.subr.mxu0 0.0
    %1704 = vmatpush1.xpose.msra.mxu0 0.0
    %1705 = vmatprep.subr.mxu0 0.0
    %1706 = vmatpush1.xpose.msra.mxu0 0.0
    %1707 = vmatprep.subr.mxu0 0.0
    %1708 = vmatpush1.xpose.msra.mxu0 0.0
    %1709 = vmatprep.subr.mxu0 0.0
    %1710 = vmatpush1.xpose.msra.mxu0 0.0
    %1711 = vmatprep.subr.mxu0 0.0
    %1712 = vmatpush1.xpose.msra.mxu0 0.0
    %1713 = vmatprep.mubr.f32.mxu0 0.0
    %1714 = vmatmul.mubr.f32.gmra.mrb[0].mxu0 %v1645
    %v1715 = vpop.f32.mrb[0].mxu0
    %v1716 = vadd.f32 %v1640, %v1715
    %v1717 = vpop.f32.mrb[0].mxu0
    %1718 = vdwg.mxu0
    %v1719 = vadd.f32 %v1716, %v1636
    %v1720 = vrot.slane %v1084, 3
    %s1721 = vtos %v1720
    %v1722 = vstv %s1721
    %v1724 = vadd.f32 %v1719, %v1722
    %v1725 = vmul.f32 %v1724, 0.35355338
    %v1726 = vsel %vm73, %v1725, -3.4028235e+38
    %v1727 = vsel %vm230, %v1726, -inf
    %1728 = vmax.xlane.f32.xlu0 %v1727
    %v1729 = vpop.xlane.xlu0 %1728
    %v1730 = vsub.f32 %v1726, %v1729
    %v1731 = vmul.f32 %v1730, 1.442695
    %v1732 = vpow.pop %v1731
    %v1733 = vsel %vm230, %v1732, 0.0
    %1734 = vadd.xlane.f32.xlu0 %v1733
    %v1735 = vpop.xlane.xlu0 %1734
    %v1736 = vrcp.pop %v1735
    %v1737 = vmul.f32 %v1732, %v1736
    %1738 = vrot.lane.b32.xlu0 %v217, 40
    %v1739 = vpop.permute.xlu0 %1738
    %v1742 = vsel %vm230, %v1737, 0
    %1744 = vmatprep.subr.mxu0 0.0
    %1745 = vmatpush1.msra.mxu0 %v1739
    %1746 = vmatprep.subr.mxu0 0.0
    %1747 = vmatpush1.msra.mxu0 0.0
    %1748 = vmatprep.subr.mxu0 0.0
    %1749 = vmatpush1.msra.mxu0 0.0
    %1750 = vmatprep.subr.mxu0 0.0
    %1751 = vmatpush1.msra.mxu0 0.0
    %1752 = vmatprep.subr.mxu0 0.0
    %1753 = vmatpush1.msra.mxu0 0.0
    %1754 = vmatprep.subr.mxu0 0.0
    %1755 = vmatpush1.msra.mxu0 0.0
    %1756 = vmatprep.subr.mxu0 0.0
    %1757 = vmatpush1.msra.mxu0 0.0
    %1758 = vmatprep.subr.mxu0 0.0
    %1759 = vmatpush1.msra.mxu0 0.0
    %1760 = vmatprep.subr.mxu0 0.0
    %1761 = vmatpush1.msra.mxu0 0.0
    %1762 = vmatprep.subr.mxu0 0.0
    %1763 = vmatpush1.msra.mxu0 0.0
    %1764 = vmatprep.subr.mxu0 0.0
    %1765 = vmatpush1.msra.mxu0 0.0
    %1766 = vmatprep.subr.mxu0 0.0
    %1767 = vmatpush1.msra.mxu0 0.0
    %1768 = vmatprep.subr.mxu0 0.0
    %1769 = vmatpush1.msra.mxu0 0.0
    %1770 = vmatprep.subr.mxu0 0.0
    %1771 = vmatpush1.msra.mxu0 0.0
    %1772 = vmatprep.subr.mxu0 0.0
    %1773 = vmatpush1.msra.mxu0 0.0
    %1774 = vmatprep.subr.mxu0 0.0
    %1775 = vmatpush1.msra.mxu0 0.0
    %1776 = vmatprep.subr.mxu0 0.0
    %1777 = vmatpush1.msra.mxu0 0.0
    %1778 = vmatprep.subr.mxu0 0.0
    %1779 = vmatpush1.msra.mxu0 0.0
    %1780 = vmatprep.subr.mxu0 0.0
    %1781 = vmatpush1.msra.mxu0 0.0
    %1782 = vmatprep.subr.mxu0 0.0
    %1783 = vmatpush1.msra.mxu0 0.0
    %1784 = vmatprep.subr.mxu0 0.0
    %1785 = vmatpush1.msra.mxu0 0.0
    %1786 = vmatprep.subr.mxu0 0.0
    %1787 = vmatpush1.msra.mxu0 0.0
    %1788 = vmatprep.subr.mxu0 0.0
    %1789 = vmatpush1.msra.mxu0 0.0
    %1790 = vmatprep.subr.mxu0 0.0
    %1791 = vmatpush1.msra.mxu0 0.0
    %1792 = vmatprep.subr.mxu0 0.0
    %1793 = vmatpush1.msra.mxu0 0.0
    %1794 = vmatprep.subr.mxu0 0.0
    %1795 = vmatpush1.msra.mxu0 0.0
    %1796 = vmatprep.subr.mxu0 0.0
    %1797 = vmatpush1.msra.mxu0 0.0
    %1798 = vmatprep.subr.mxu0 0.0
    %1799 = vmatpush1.msra.mxu0 0.0
    %1800 = vmatprep.subr.mxu0 0.0
    %1801 = vmatpush1.msra.mxu0 0.0
    %1802 = vmatprep.subr.mxu0 0.0
    %1803 = vmatpush1.msra.mxu0 0.0
    %1804 = vmatprep.subr.mxu0 0.0
    %1805 = vmatpush1.msra.mxu0 0.0
    %1806 = vmatprep.subr.mxu0 0.0
    %1807 = vmatpush1.msra.mxu0 0.0
    %1808 = vmatprep.mubr.f32.mxu0 0.0
    %1809 = vmatmul.mubr.f32.gmra.mrb[0].mxu0 %v1742
    %v1810 = vpop.f32.mrb[0].mxu0
    %v1811 = vadd.f32 0.0, %v1810
    %v1812 = vpop.f32.mrb[0].mxu0
    %1813 = vdwg.mxu0
    %1815 = vrot.lane.b32.xlu0 %v1445, 8
    %v1816 = vpop.permute.xlu0 %1815
    %1819 = vrot.lane.b32.xlu0 %v1628, 16
    %v1820 = vpop.permute.xlu0 %1819
    %1823 = vrot.lane.b32.xlu0 %v1811, 24
    %v1824 = vpop.permute.xlu0 %1823
    %v1826 = vsel %vm230, %v1261, %v1816
    %v1827 = vsel %vm918, %v1826, %v1820
    %v1828 = vsel %vm920, %v1827, %v1824
    %v1829 = vld [vmem:[%s17] sm:$0x1]
    %v1831 = vlaneseq
    %v1832 = vshrl.u32 %v1831, 7
    %v1833 = vsub.s32 0, %v1832
    %v1834 = vrot.slane %v1829, %v1833
    %v1837 = vsel %vm118, %v1828, 0
    %1839 = vmatprep.subr.mxu0 0.0
    %1840 = vmatpush1.msra.mxu0 %v91
    %1841 = vmatprep.subr.mxu0 0.0
    %1842 = vmatpush1.msra.mxu0 %v92
    %1843 = vmatprep.subr.mxu0 0.0
    %1844 = vmatpush1.msra.mxu0 %v93
    %1845 = vmatprep.subr.mxu0 0.0
    %1846 = vmatpush1.msra.mxu0 %v94
    %1847 = vmatprep.subr.mxu0 0.0
    %1848 = vmatpush1.msra.mxu0 0.0
    %1849 = vmatprep.subr.mxu0 0.0
    %1850 = vmatpush1.msra.mxu0 0.0
    %1851 = vmatprep.subr.mxu0 0.0
    %1852 = vmatpush1.msra.mxu0 0.0
    %1853 = vmatprep.subr.mxu0 0.0
    %1854 = vmatpush1.msra.mxu0 0.0
    %1855 = vmatprep.subr.mxu0 0.0
    %1856 = vmatpush1.msra.mxu0 0.0
    %1857 = vmatprep.subr.mxu0 0.0
    %1858 = vmatpush1.msra.mxu0 0.0
    %1859 = vmatprep.subr.mxu0 0.0
    %1860 = vmatpush1.msra.mxu0 0.0
    %1861 = vmatprep.subr.mxu0 0.0
    %1862 = vmatpush1.msra.mxu0 0.0
    %1863 = vmatprep.subr.mxu0 0.0
    %1864 = vmatpush1.msra.mxu0 0.0
    %1865 = vmatprep.subr.mxu0 0.0
    %1866 = vmatpush1.msra.mxu0 0.0
    %1867 = vmatprep.subr.mxu0 0.0
    %1868 = vmatpush1.msra.mxu0 0.0
    %1869 = vmatprep.subr.mxu0 0.0
    %1870 = vmatpush1.msra.mxu0 0.0
    %1871 = vmatprep.subr.mxu0 0.0
    %1872 = vmatpush1.msra.mxu0 0.0
    %1873 = vmatprep.subr.mxu0 0.0
    %1874 = vmatpush1.msra.mxu0 0.0
    %1875 = vmatprep.subr.mxu0 0.0
    %1876 = vmatpush1.msra.mxu0 0.0
    %1877 = vmatprep.subr.mxu0 0.0
    %1878 = vmatpush1.msra.mxu0 0.0
    %1879 = vmatprep.subr.mxu0 0.0
    %1880 = vmatpush1.msra.mxu0 0.0
    %1881 = vmatprep.subr.mxu0 0.0
    %1882 = vmatpush1.msra.mxu0 0.0
    %1883 = vmatprep.subr.mxu0 0.0
    %1884 = vmatpush1.msra.mxu0 0.0
    %1885 = vmatprep.subr.mxu0 0.0
    %1886 = vmatpush1.msra.mxu0 0.0
    %1887 = vmatprep.subr.mxu0 0.0
    %1888 = vmatpush1.msra.mxu0 0.0
    %1889 = vmatprep.subr.mxu0 0.0
    %1890 = vmatpush1.msra.mxu0 0.0
    %1891 = vmatprep.subr.mxu0 0.0
    %1892 = vmatpush1.msra.mxu0 0.0
    %1893 = vmatprep.subr.mxu0 0.0
    %1894 = vmatpush1.msra.mxu0 0.0
    %1895 = vmatprep.subr.mxu0 0.0
    %1896 = vmatpush1.msra.mxu0 0.0
    %1897 = vmatprep.subr.mxu0 0.0
    %1898 = vmatpush1.msra.mxu0 0.0
    %1899 = vmatprep.subr.mxu0 0.0
    %1900 = vmatpush1.msra.mxu0 0.0
    %1901 = vmatprep.subr.mxu0 0.0
    %1902 = vmatpush1.msra.mxu0 0.0
    %1903 = vmatprep.mubr.f32.mxu0 0.0
    %1904 = vmatmul.mubr.f32.gmra.mrb[0].mxu0 %v1837
    %v1905 = vpop.f32.mrb[0].mxu0
    %v1906 = vadd.f32 %v1834, %v1905
    %v1907 = vpop.f32.mrb[0].mxu0
    %1908 = vdwg.mxu0
    %v1909 = vadd.f32 %v81, %v1906
    %v1910 = vadd.f32 %v1909, %v926
    %v1911 = vsel %vm118, %v1001, 0.0
    %1912 = vadd.xlane.f32.xlu0 %v1911
    %v1913 = vpop.xlane.xlu0 %1912
    %v1914 = vmul.f32 %v1913, %v122
    %v1915 = vsub.f32 %v1001, %v1914
    %v1916 = vmul.f32 %v1915, %v1915
    %v1917 = vsel %vm118, %v1916, 0.0
    %1918 = vadd.xlane.f32.xlu0 %v1917
    %v1919 = vpop.xlane.xlu0 %1918
    %v1920 = vmul.f32 %v1919, %v122
    %v1921 = vadd.f32 %v1920, 1e-05
    %v1922 = vrsqrt.pop %v1921
    %v1923 = vmul.f32 %v1915, %v1922
    %v1925 = vlaneseq
    %v1926 = vshrl.u32 %v1925, 7
    %v1927 = vsub.s32 0, %v1926
    %v1928 = vrot.slane %v84, %v1927
    %v1930 = vmul.f32 %v1923, %v1928
    %v1932 = vlaneseq
    %v1933 = vshrl.u32 %v1932, 7
    %v1934 = vsub.s32 0, %v1933
    %v1935 = vrot.slane %v85, %v1934
    %v1937 = vadd.f32 %v1930, %v1935
    %v1938 = vsel %vm118, %v1910, 0.0
    %1939 = vadd.xlane.f32.xlu0 %v1938
    %v1940 = vpop.xlane.xlu0 %1939
    %v1941 = vmul.f32 %v1940, %v122
    %v1942 = vsub.f32 %v1910, %v1941
    %v1943 = vmul.f32 %v1942, %v1942
    %v1944 = vsel %vm118, %v1943, 0.0
    %1945 = vadd.xlane.f32.xlu0 %v1944
    %v1946 = vpop.xlane.xlu0 %1945
    %v1947 = vmul.f32 %v1946, %v122
    %v1948 = vadd.f32 %v1947, 1e-05
    %v1949 = vrsqrt.pop %v1948
    %v1950 = vmul.f32 %v1942, %v1949
    %v1951 = vmul.f32 %v1950, %v1928
    %v1952 = vadd.f32 %v1951, %v1935
    %v1954 = vlaneseq
    %v1955 = vshrl.u32 %v1954, 7
    %v1956 = vsub.s32 0, %v1955
    %v1957 = vrot.slane %v100, %v1956
    %v1960 = vsel %vm118, %v1937, 0
    %v1963 = vsel %vm118, %v1952, 0
    %1965 = vmatprep.subr.mxu0 0.0
    %1966 = vmatpush1.msra.mxu0 %v96
    %1967 = vmatprep.subr.mxu0 0.0
    %1968 = vmatpush1.msra.mxu0 %v97
    %1969 = vmatprep.subr.mxu0 0.0
    %1970 = vmatpush1.msra.mxu0 %v98
    %1971 = vmatprep.subr.mxu0 0.0
    %1972 = vmatpush1.msra.mxu0 %v99
    %1973 = vmatprep.subr.mxu0 0.0
    %1974 = vmatpush1.msra.mxu0 0.0
    %1975 = vmatprep.subr.mxu0 0.0
    %1976 = vmatpush1.msra.mxu0 0.0
    %1977 = vmatprep.subr.mxu0 0.0
    %1978 = vmatpush1.msra.mxu0 0.0
    %1979 = vmatprep.subr.mxu0 0.0
    %1980 = vmatpush1.msra.mxu0 0.0
    %1981 = vmatprep.subr.mxu0 0.0
    %1982 = vmatpush1.msra.mxu0 0.0
    %1983 = vmatprep.subr.mxu0 0.0
    %1984 = vmatpush1.msra.mxu0 0.0
    %1985 = vmatprep.subr.mxu0 0.0
    %1986 = vmatpush1.msra.mxu0 0.0
    %1987 = vmatprep.subr.mxu0 0.0
    %1988 = vmatpush1.msra.mxu0 0.0
    %1989 = vmatprep.subr.mxu0 0.0
    %1990 = vmatpush1.msra.mxu0 0.0
    %1991 = vmatprep.subr.mxu0 0.0
    %1992 = vmatpush1.msra.mxu0 0.0
    %1993 = vmatprep.subr.mxu0 0.0
    %1994 = vmatpush1.msra.mxu0 0.0
    %1995 = vmatprep.subr.mxu0 0.0
    %1996 = vmatpush1.msra.mxu0 0.0
    %1997 = vmatprep.subr.mxu0 0.0
    %1998 = vmatpush1.msra.mxu0 0.0
    %1999 = vmatprep.subr.mxu0 0.0
    %2000 = vmatpush1.msra.mxu0 0.0
    %2001 = vmatprep.subr.mxu0 0.0
    %2002 = vmatpush1.msra.mxu0 0.0
    %2003 = vmatprep.subr.mxu0 0.0
    %2004 = vmatpush1.msra.mxu0 0.0
    %2005 = vmatprep.subr.mxu0 0.0
    %2006 = vmatpush1.msra.mxu0 0.0
    %2007 = vmatprep.subr.mxu0 0.0
    %2008 = vmatpush1.msra.mxu0 0.0
    %2009 = vmatprep.subr.mxu0 0.0
    %2010 = vmatpush1.msra.mxu0 0.0
    %2011 = vmatprep.subr.mxu0 0.0
    %2012 = vmatpush1.msra.mxu0 0.0
    %2013 = vmatprep.subr.mxu0 0.0
    %2014 = vmatpush1.msra.mxu0 0.0
    %2015 = vmatprep.subr.mxu0 0.0
    %2016 = vmatpush1.msra.mxu0 0.0
    %2017 = vmatprep.subr.mxu0 0.0
    %2018 = vmatpush1.msra.mxu0 0.0
    %2019 = vmatprep.subr.mxu0 0.0
    %2020 = vmatpush1.msra.mxu0 0.0
    %2021 = vmatprep.subr.mxu0 0.0
    %2022 = vmatpush1.msra.mxu0 0.0
    %2023 = vmatprep.subr.mxu0 0.0
    %2024 = vmatpush1.msra.mxu0 0.0
    %2025 = vmatprep.subr.mxu0 0.0
    %2026 = vmatpush1.msra.mxu0 0.0
    %2027 = vmatprep.subr.mxu0 0.0
    %2028 = vmatpush1.msra.mxu0 0.0
    %2029 = vmatprep.mubr.f32.mxu0 0.0
    %2030 = vmatmul.mubr.f32.gmra.mrb[0].mxu0 %v1960
    %v2031 = vpop.f32.mrb[0].mxu0
    %v2032 = vadd.f32 %v1957, %v2031
    %v2033 = vpop.f32.mrb[0].mxu0
    %2034 = vmatprep.mubr.f32.mxu0 0.0
    %2035 = vmatmul.mubr.f32.gmra.mrb[0].mxu0 %v1963
    %v2036 = vpop.f32.mrb[0].mxu0
    %v2037 = vadd.f32 %v1957, %v2036
    %v2038 = vpop.f32.mrb[0].mxu0
    %2039 = vdwg.mxu0
    %v2040 = vmul.f32 %v2032, 0.5
    %v2041 = vmul.f32 %v2037, 0.5
    %v2042 = vmul.f32 %v2032, 0.044715
    %v2043 = vmul.f32 %v2037, 0.044715
    %v2044 = vmul.f32 %v2042, %v2032
    %v2045 = vmul.f32 %v2043, %v2037
    %v2046 = vmul.f32 %v2044, %v2032
    %v2047 = vmul.f32 %v2045, %v2037
    %v2048 = vadd.f32 %v2032, %v2046
    %v2049 = vadd.f32 %v2037, %v2047
    %v2050 = vmul.f32 %v2048, 0.7978846
    %v2051 = vmul.f32 %v2049, 0.7978846
    %v2052 = vtanh.pop %v2050
    %v2053 = vtanh.pop %v2051
    %v2054 = vadd.f32 %v2052, 1.0
    %v2055 = vadd.f32 %v2053, 1.0
    %v2056 = vmul.f32 %v2040, %v2054
    %v2057 = vmul.f32 %v2041, %v2055
    %2058 = vmatprep.subr.mxu0 0.0
    %2059 = vmatpush1.msra.mxu0 %v101
    %2060 = vmatprep.subr.mxu0 0.0
    %2061 = vmatpush1.msra.mxu0 %v102
    %2062 = vmatprep.subr.mxu0 0.0
    %2063 = vmatpush1.msra.mxu0 %v103
    %2064 = vmatprep.subr.mxu0 0.0
    %2065 = vmatpush1.msra.mxu0 %v104
    %2066 = vmatprep.subr.mxu0 0.0
    %2067 = vmatpush1.msra.mxu0 %v105
    %2068 = vmatprep.subr.mxu0 0.0
    %2069 = vmatpush1.msra.mxu0 %v106
    %2070 = vmatprep.subr.mxu0 0.0
    %2071 = vmatpush1.msra.mxu0 %v107
    %2072 = vmatprep.subr.mxu0 0.0
    %2073 = vmatpush1.msra.mxu0 %v108
    %2074 = vmatprep.subr.mxu0 0.0
    %2075 = vmatpush1.msra.mxu0 %v109
    %2076 = vmatprep.subr.mxu0 0.0
    %2077 = vmatpush1.msra.mxu0 %v110
    %2078 = vmatprep.subr.mxu0 0.0
    %2079 = vmatpush1.msra.mxu0 %v111
    %2080 = vmatprep.subr.mxu0 0.0
    %2081 = vmatpush1.msra.mxu0 %v112
    %2082 = vmatprep.subr.mxu0 0.0
    %2083 = vmatpush1.msra.mxu0 %v113
    %2084 = vmatprep.subr.mxu0 0.0
    %2085 = vmatpush1.msra.mxu0 %v114
    %2086 = vmatprep.subr.mxu0 0.0
    %2087 = vmatpush1.msra.mxu0 %v115
    %2088 = vmatprep.subr.mxu0 0.0
    %2089 = vmatpush1.msra.mxu0 %v116
    %2090 = vmatprep.subr.mxu0 0.0
    %2091 = vmatpush1.msra.mxu0 0.0
    %2092 = vmatprep.subr.mxu0 0.0
    %2093 = vmatpush1.msra.mxu0 0.0
    %2094 = vmatprep.subr.mxu0 0.0
    %2095 = vmatpush1.msra.mxu0 0.0
    %2096 = vmatprep.subr.mxu0 0.0
    %2097 = vmatpush1.msra.mxu0 0.0
    %2098 = vmatprep.subr.mxu0 0.0
    %2099 = vmatpush1.msra.mxu0 0.0
    %2100 = vmatprep.subr.mxu0 0.0
    %2101 = vmatpush1.msra.mxu0 0.0
    %2102 = vmatprep.subr.mxu0 0.0
    %2103 = vmatpush1.msra.mxu0 0.0
    %2104 = vmatprep.subr.mxu0 0.0
    %2105 = vmatpush1.msra.mxu0 0.0
    %2106 = vmatprep.subr.mxu0 0.0
    %2107 = vmatpush1.msra.mxu0 0.0
    %2108 = vmatprep.subr.mxu0 0.0
    %2109 = vmatpush1.msra.mxu0 0.0
    %2110 = vmatprep.subr.mxu0 0.0
    %2111 = vmatpush1.msra.mxu0 0.0
    %2112 = vmatprep.subr.mxu0 0.0
    %2113 = vmatpush1.msra.mxu0 0.0
    %2114 = vmatprep.subr.mxu0 0.0
    %2115 = vmatpush1.msra.mxu0 0.0
    %2116 = vmatprep.subr.mxu0 0.0
    %2117 = vmatpush1.msra.mxu0 0.0
    %2118 = vmatprep.subr.mxu0 0.0
    %2119 = vmatpush1.msra.mxu0 0.0
    %2120 = vmatprep.subr.mxu0 0.0
    %2121 = vmatpush1.msra.mxu0 0.0
    %2122 = vmatprep.mubr.f32.mxu0 0.0
    %2123 = vmatmul.mubr.f32.gmra.mrb[0].mxu0 %v2056
    %v2124 = vpop.f32.mrb[0].mxu0
    %v2125 = vadd.f32 0.0, %v2124
    %v2126 = vpop.f32.mrb[0].mxu0
    %2127 = vmatprep.mubr.f32.mxu0 0.0
    %2128 = vmatmul.mubr.f32.gmra.mrb[0].mxu0 %v2057
    %v2129 = vpop.f32.mrb[0].mxu0
    %v2130 = vadd.f32 0.0, %v2129
    %v2131 = vpop.f32.mrb[0].mxu0
    %2132 = vdwg.mxu0
    %v2133 = vadd.f32 %v1001, %v2125
    %v2135 = vlaneseq
    %v2136 = vshrl.u32 %v2135, 7
    %v2137 = vsub.s32 0, %v2136
    %v2138 = vrot.slane %v117, %v2137
    %v2140 = vadd.f32 %v2133, %v2138
    %v2141 = vadd.f32 %v1910, %v2130
    %v2142 = vadd.f32 %v2141, %v2138
    %v2143 = vsel %vm118, %v2140, 0.0
    %2144 = vadd.xlane.f32.xlu0 %v2143
    %v2145 = vpop.xlane.xlu0 %2144
    %v2146 = vmul.f32 %v2145, %v122
    %v2147 = vsub.f32 %v2140, %v2146
    %v2148 = vmul.f32 %v2147, %v2147
    %v2149 = vsel %vm118, %v2148, 0.0
    %2150 = vadd.xlane.f32.xlu0 %v2149
    %v2151 = vpop.xlane.xlu0 %2150
    %v2152 = vmul.f32 %v2151, %v122
    %v2153 = vadd.f32 %v2152, 1e-05
    %v2154 = vrsqrt.pop %v2153
    %v2155 = vmul.f32 %v2147, %v2154
    %v2157 = vlaneseq
    %v2158 = vshrl.u32 %v2157, 7
    %v2159 = vsub.s32 0, %v2158
    %v2160 = vrot.slane %v75, %v2159
    %v2162 = vmul.f32 %v2155, %v2160
    %v2164 = vlaneseq
    %v2165 = vshrl.u32 %v2164, 7
    %v2166 = vsub.s32 0, %v2165
    %v2167 = vrot.slane %v76, %v2166
    %v2169 = vadd.f32 %v2162, %v2167
    %vm2170 = vcmask 261127
    %v2171 = vsel %vm2170, %v2142, 0.0
    %2172 = vadd.xlane.f32.xlu0 %v2171
    %v2173 = vpop.xlane.xlu0 %2172
    %v2174 = vmul.f32 %v2173, %v122
    %v2175 = vsub.f32 %v2142, %v2174
    %v2176 = vmul.f32 %v2175, %v2175
    %v2177 = vsel %vm2170, %v2176, 0.0
    %2178 = vadd.xlane.f32.xlu0 %v2177
    %v2179 = vpop.xlane.xlu0 %2178
    %v2180 = vmul.f32 %v2179, %v122
    %v2181 = vadd.f32 %v2180, 1e-05
    %v2182 = vrsqrt.pop %v2181
    %v2183 = vmul.f32 %v2175, %v2182
    %v2184 = vmul.f32 %v2183, %v2160
    %v2185 = vadd.f32 %v2184, %v2167
    %v2187 = vrot.slane %v2185, 7
    %v2189 = vsel %vm118, %v2169, 0
    %v2191 = vsel %vm118, %v2187, 0
    %2193 = vmatprep.subr.mxu0 0.0
    %2194 = vmatpush1.msra.mxu0 %v77
    %2195 = vmatprep.subr.mxu0 0.0
    %2196 = vmatpush1.msra.mxu0 %v78
    %2197 = vmatprep.subr.mxu0 0.0
    %2198 = vmatpush1.msra.mxu0 %v79
    %2199 = vmatprep.subr.mxu0 0.0
    %2200 = vmatpush1.msra.mxu0 %v80
    %2201 = vmatprep.subr.mxu0 0.0
    %2202 = vmatpush1.msra.mxu0 0.0
    %2203 = vmatprep.subr.mxu0 0.0
    %2204 = vmatpush1.msra.mxu0 0.0
    %2205 = vmatprep.subr.mxu0 0.0
    %2206 = vmatpush1.msra.mxu0 0.0
    %2207 = vmatprep.subr.mxu0 0.0
    %2208 = vmatpush1.msra.mxu0 0.0
    %2209 = vmatprep.subr.mxu0 0.0
    %2210 = vmatpush1.msra.mxu0 0.0
    %2211 = vmatprep.subr.mxu0 0.0
    %2212 = vmatpush1.msra.mxu0 0.0
    %2213 = vmatprep.subr.mxu0 0.0
    %2214 = vmatpush1.msra.mxu0 0.0
    %2215 = vmatprep.subr.mxu0 0.0
    %2216 = vmatpush1.msra.mxu0 0.0
    %2217 = vmatprep.subr.mxu0 0.0
    %2218 = vmatpush1.msra.mxu0 0.0
    %2219 = vmatprep.subr.mxu0 0.0
    %2220 = vmatpush1.msra.mxu0 0.0
    %2221 = vmatprep.subr.mxu0 0.0
    %2222 = vmatpush1.msra.mxu0 0.0
    %2223 = vmatprep.subr.mxu0 0.0
    %2224 = vmatpush1.msra.mxu0 0.0
    %2225 = vmatprep.subr.mxu0 0.0
    %2226 = vmatpush1.msra.mxu0 0.0
    %2227 = vmatprep.subr.mxu0 0.0
    %2228 = vmatpush1.msra.mxu0 0.0
    %2229 = vmatprep.subr.mxu0 0.0
    %2230 = vmatpush1.msra.mxu0 0.0
    %2231 = vmatprep.subr.mxu0 0.0
    %2232 = vmatpush1.msra.mxu0 0.0
    %2233 = vmatprep.subr.mxu0 0.0
    %2234 = vmatpush1.msra.mxu0 0.0
    %2235 = vmatprep.subr.mxu0 0.0
    %2236 = vmatpush1.msra.mxu0 0.0
    %2237 = vmatprep.subr.mxu0 0.0
    %2238 = vmatpush1.msra.mxu0 0.0
    %2239 = vmatprep.subr.mxu0 0.0
    %2240 = vmatpush1.msra.mxu0 0.0
    %2241 = vmatprep.subr.mxu0 0.0
    %2242 = vmatpush1.msra.mxu0 0.0
    %2243 = vmatprep.subr.mxu0 0.0
    %2244 = vmatpush1.msra.mxu0 0.0
    %2245 = vmatprep.subr.mxu0 0.0
    %2246 = vmatpush1.msra.mxu0 0.0
    %2247 = vmatprep.subr.mxu0 0.0
    %2248 = vmatpush1.msra.mxu0 0.0
    %2249 = vmatprep.subr.mxu0 0.0
    %2250 = vmatpush1.msra.mxu0 0.0
    %2251 = vmatprep.subr.mxu0 0.0
    %2252 = vmatpush1.msra.mxu0 0.0
    %2253 = vmatprep.subr.mxu0 0.0
    %2254 = vmatpush1.msra.mxu0 0.0
    %2255 = vmatprep.subr.mxu0 0.0
    %2256 = vmatpush1.msra.mxu0 0.0
    %2257 = vmatprep.mubr.f32.mxu0 0.0
    %2258 = vmatmul.mubr.f32.gmra.mrb[0].mxu0 %v2189
    %v2259 = vpop.f32.mrb[0].mxu0
    %v2260 = vadd.f32 0.0, %v2259
    %v2261 = vpop.f32.mrb[0].mxu0
    %2262 = vmatprep.mubr.f32.mxu0 0.0
    %2263 = vmatmul.mubr.f32.gmra.mrb[0].mxu0 %v2191
    %v2264 = vpop.f32.mrb[0].mxu0
    %v2265 = vadd.f32 0.0, %v2264
    %v2266 = vpop.f32.mrb[0].mxu0
    %2267 = vdwg.mxu0
    %v2268 = vrot.slane %v2169, 7
    %v2269 = vsel %vm118, %v2268, 0
    %2271 = vmatprep.subr.mxu0 0.0
    %2272 = vmatpush1.msra.mxu0 %v77
    %2273 = vmatprep.subr.mxu0 0.0
    %2274 = vmatpush1.msra.mxu0 %v78
    %2275 = vmatprep.subr.mxu0 0.0
    %2276 = vmatpush1.msra.mxu0 %v79
    %2277 = vmatprep.subr.mxu0 0.0
    %2278 = vmatpush1.msra.mxu0 %v80
    %2279 = vmatprep.subr.mxu0 0.0
    %2280 = vmatpush1.msra.mxu0 0.0
    %2281 = vmatprep.subr.mxu0 0.0
    %2282 = vmatpush1.msra.mxu0 0.0
    %2283 = vmatprep.subr.mxu0 0.0
    %2284 = vmatpush1.msra.mxu0 0.0
    %2285 = vmatprep.subr.mxu0 0.0
    %2286 = vmatpush1.msra.mxu0 0.0
    %2287 = vmatprep.subr.mxu0 0.0
    %2288 = vmatpush1.msra.mxu0 0.0
    %2289 = vmatprep.subr.mxu0 0.0
    %2290 = vmatpush1.msra.mxu0 0.0
    %2291 = vmatprep.subr.mxu0 0.0
    %2292 = vmatpush1.msra.mxu0 0.0
    %2293 = vmatprep.subr.mxu0 0.0
    %2294 = vmatpush1.msra.mxu0 0.0
    %2295 = vmatprep.subr.mxu0 0.0
    %2296 = vmatpush1.msra.mxu0 0.0
    %2297 = vmatprep.subr.mxu0 0.0
    %2298 = vmatpush1.msra.mxu0 0.0
    %2299 = vmatprep.subr.mxu0 0.0
    %2300 = vmatpush1.msra.mxu0 0.0
    %2301 = vmatprep.subr.mxu0 0.0
    %2302 = vmatpush1.msra.mxu0 0.0
    %2303 = vmatprep.subr.mxu0 0.0
    %2304 = vmatpush1.msra.mxu0 0.0
    %2305 = vmatprep.subr.mxu0 0.0
    %2306 = vmatpush1.msra.mxu0 0.0
    %2307 = vmatprep.subr.mxu0 0.0
    %2308 = vmatpush1.msra.mxu0 0.0
    %2309 = vmatprep.subr.mxu0 0.0
    %2310 = vmatpush1.msra.mxu0 0.0
    %2311 = vmatprep.subr.mxu0 0.0
    %2312 = vmatpush1.msra.mxu0 0.0
    %2313 = vmatprep.subr.mxu0 0.0
    %2314 = vmatpush1.msra.mxu0 0.0
    %2315 = vmatprep.subr.mxu0 0.0
    %2316 = vmatpush1.msra.mxu0 0.0
    %2317 = vmatprep.subr.mxu0 0.0
    %2318 = vmatpush1.msra.mxu0 0.0
    %2319 = vmatprep.subr.mxu0 0.0
    %2320 = vmatpush1.msra.mxu0 0.0
    %2321 = vmatprep.subr.mxu0 0.0
    %2322 = vmatpush1.msra.mxu0 0.0
    %2323 = vmatprep.subr.mxu0 0.0
    %2324 = vmatpush1.msra.mxu0 0.0
    %2325 = vmatprep.subr.mxu0 0.0
    %2326 = vmatpush1.msra.mxu0 0.0
    %2327 = vmatprep.subr.mxu0 0.0
    %2328 = vmatpush1.msra.mxu0 0.0
    %2329 = vmatprep.subr.mxu0 0.0
    %2330 = vmatpush1.msra.mxu0 0.0
    %2331 = vmatprep.subr.mxu0 0.0
    %2332 = vmatpush1.msra.mxu0 0.0
    %2333 = vmatprep.subr.mxu0 0.0
    %2334 = vmatpush1.msra.mxu0 0.0
    %2335 = vmatprep.mubr.f32.mxu0 0.0
    %2336 = vmatmul.mubr.f32.gmra.mrb[0].mxu0 %v2269
    %v2337 = vpop.f32.mrb[0].mxu0
    %v2338 = vadd.f32 0.0, %v2337
    %v2339 = vpop.f32.mrb[0].mxu0
    %2340 = vdwg.mxu0
    %v2342 = vrot.slane %v2338, 1
    %v2344 = vsub.f32 %v2260, %v2342
    %v2345 = vmul.f32 %v2344, %v2344
    %vm2346 = vcmask 523271
    %v2347 = vsel %vm2346, %v2345, 0.0
    %2348 = vadd.xlane.f32.xlu0 %v2347
    %v2349 = vpop.xlane.xlu0 %2348
    %v2350 = vmul.f32 %v2349, 0.015625
    %v2352 = vrot.slane %v2265, 1
    %v2354 = vsub.f32 %v2260, %v2352
    %v2355 = vmul.f32 %v2354, %v2354
    %v2356 = vsel %vm2346, %v2355, 0.0
    %2357 = vadd.xlane.f32.xlu0 %v2356
    %v2358 = vpop.xlane.xlu0 %2357
    %v2359 = vmul.f32 %v2358, 0.015625
    %2360 = vrot.lane.b32.xlu0 %v2352, 64
    %v2361 = vpop.permute.xlu0 %2360
    %vm2363 = vcmask 523264
    %v2364 = vsel %vm2363, %v2260, %v2361
    %vm2365 = vcmp.eq.s32.totalorder %v72, 0
    %vm2366 = vcmp.eq.s32.totalorder %v72, 1
    %v2367 = vsel %vm2366, %v2359, 0.0
    %v2368 = vsel %vm2365, %v2350, %v2367
    %v2370 = vrot.slane %v2364, 7
    %v2373 = vrot.slane %v2368, 6
    %vm2375 = vcmask 1040384
    %v2376 = vsel %vm2375, %v2370, %v2373
    %2377 = vst [vmem:[#allocation2] sm:$0x3] %v2376
    %s2378 = scalar_lea.vmem %s2, 1
    %v2379 = vld [vmem:[%s2378] sm:$0x1]
    %s2380 = scalar_lea.vmem %s3, 1
    %v2381 = vld [vmem:[%s2380] sm:$0x1]
    %s2382 = scalar_lea.vmem %s8, 1
    %v2383 = vld [vmem:[%s2382] sm:$0x1]
    %s2384 = scalar_lea.vmem %s9, 1
    %v2385 = vld [vmem:[%s2384] sm:$0x1]
    %s2386 = scalar_lea.vmem %s4, 32
    %v2387 = vld [vmem:[%s2386] sm:$0xff]
    %v2388 = vld [vmem:[%s2386 + $0x8] sm:$0xff]
    %v2389 = vld [vmem:[%s2386 + $0x10] sm:$0xff]
    %v2390 = vld [vmem:[%s2386 + $0x18] sm:$0xff]
    %s2391 = scalar_lea.vmem %s5, 1
    %v2392 = vld [vmem:[%s2391] sm:$0x1]
    %s2393 = scalar_lea.vmem %s6, 32
    %v2394 = vld [vmem:[%s2393] sm:$0xff]
    %v2395 = vld [vmem:[%s2393 + $0x8] sm:$0xff]
    %v2396 = vld [vmem:[%s2393 + $0x10] sm:$0xff]
    %v2397 = vld [vmem:[%s2393 + $0x18] sm:$0xff]
    %s2398 = scalar_lea.vmem %s7, 1
    %v2399 = vld [vmem:[%s2398] sm:$0x1]
    %s2400 = scalar_lea.vmem %s10, 32
    %v2401 = vld [vmem:[%s2400] sm:$0xff]
    %v2402 = vld [vmem:[%s2400 + $0x8] sm:$0xff]
    %v2403 = vld [vmem:[%s2400 + $0x10] sm:$0xff]
    %v2404 = vld [vmem:[%s2400 + $0x18] sm:$0xff]
    %s2405 = scalar_lea.vmem %s11, 1
    %v2406 = vld [vmem:[%s2405] sm:$0x1]
    %s2407 = scalar_lea.vmem %s12, 128
    %v2408 = vld [vmem:[%s2407] sm:$0xff]
    %v2409 = vld [vmem:[%s2407 + $0x8] sm:$0xff]
    %v2410 = vld [vmem:[%s2407 + $0x10] sm:$0xff]
    %v2411 = vld [vmem:[%s2407 + $0x18] sm:$0xff]
    %v2412 = vld [vmem:[%s2407 + $0x20] sm:$0xff]
    %v2413 = vld [vmem:[%s2407 + $0x28] sm:$0xff]
    %v2414 = vld [vmem:[%s2407 + $0x30] sm:$0xff]
    %v2415 = vld [vmem:[%s2407 + $0x38] sm:$0xff]
    %v2416 = vld [vmem:[%s2407 + $0x40] sm:$0xff]
    %v2417 = vld [vmem:[%s2407 + $0x48] sm:$0xff]
    %v2418 = vld [vmem:[%s2407 + $0x50] sm:$0xff]
    %v2419 = vld [vmem:[%s2407 + $0x58] sm:$0xff]
    %v2420 = vld [vmem:[%s2407 + $0x60] sm:$0xff]
    %v2421 = vld [vmem:[%s2407 + $0x68] sm:$0xff]
    %v2422 = vld [vmem:[%s2407 + $0x70] sm:$0xff]
    %v2423 = vld [vmem:[%s2407 + $0x78] sm:$0xff]
    %s2424 = scalar_lea.vmem %s13, 1
    %v2425 = vld [vmem:[%s2424] sm:$0x1]
    %v2427 = vlaneseq
    %v2428 = vshrl.u32 %v2427, 7
    %v2429 = vsub.s32 0, %v2428
    %v2430 = vrot.slane %v2379, %v2429
    %v2432 = vmul.f32 %v2155, %v2430
    %v2434 = vlaneseq
    %v2435 = vshrl.u32 %v2434, 7
    %v2436 = vsub.s32 0, %v2435
    %v2437 = vrot.slane %v2381, %v2436
    %v2439 = vadd.f32 %v2432, %v2437
    %v2441 = vsel %vm118, %v2439, 0
    %2443 = vmatprep.subr.mxu0 0.0
    %2444 = vmatpush1.msra.mxu0 %v2387
    %2445 = vmatprep.subr.mxu0 0.0
    %2446 = vmatpush1.msra.mxu0 %v2388
    %2447 = vmatprep.subr.mxu0 0.0
    %2448 = vmatpush1.msra.mxu0 %v2389
    %2449 = vmatprep.subr.mxu0 0.0
    %2450 = vmatpush1.msra.mxu0 %v2390
    %2451 = vmatprep.subr.mxu0 0.0
    %2452 = vmatpush1.msra.mxu0 0.0
    %2453 = vmatprep.subr.mxu0 0.0
    %2454 = vmatpush1.msra.mxu0 0.0
    %2455 = vmatprep.subr.mxu0 0.0
    %2456 = vmatpush1.msra.mxu0 0.0
    %2457 = vmatprep.subr.mxu0 0.0
    %2458 = vmatpush1.msra.mxu0 0.0
    %2459 = vmatprep.subr.mxu0 0.0
    %2460 = vmatpush1.msra.mxu0 0.0
    %2461 = vmatprep.subr.mxu0 0.0
    %2462 = vmatpush1.msra.mxu0 0.0
    %2463 = vmatprep.subr.mxu0 0.0
    %2464 = vmatpush1.msra.mxu0 0.0
    %2465 = vmatprep.subr.mxu0 0.0
    %2466 = vmatpush1.msra.mxu0 0.0
    %2467 = vmatprep.subr.mxu0 0.0
    %2468 = vmatpush1.msra.mxu0 0.0
    %2469 = vmatprep.subr.mxu0 0.0
    %2470 = vmatpush1.msra.mxu0 0.0
    %2471 = vmatprep.subr.mxu0 0.0
    %2472 = vmatpush1.msra.mxu0 0.0
    %2473 = vmatprep.subr.mxu0 0.0
    %2474 = vmatpush1.msra.mxu0 0.0
    %2475 = vmatprep.subr.mxu0 0.0
    %2476 = vmatpush1.msra.mxu0 0.0
    %2477 = vmatprep.subr.mxu0 0.0
    %2478 = vmatpush1.msra.mxu0 0.0
    %2479 = vmatprep.subr.mxu0 0.0
    %2480 = vmatpush1.msra.mxu0 0.0
    %2481 = vmatprep.subr.mxu0 0.0
    %2482 = vmatpush1.msra.mxu0 0.0
    %2483 = vmatprep.subr.mxu0 0.0
    %2484 = vmatpush1.msra.mxu0 0.0
    %2485 = vmatprep.subr.mxu0 0.0
    %2486 = vmatpush1.msra.mxu0 0.0
    %2487 = vmatprep.subr.mxu0 0.0
    %2488 = vmatpush1.msra.mxu0 0.0
    %2489 = vmatprep.subr.mxu0 0.0
    %2490 = vmatpush1.msra.mxu0 0.0
    %2491 = vmatprep.subr.mxu0 0.0
    %2492 = vmatpush1.msra.mxu0 0.0
    %2493 = vmatprep.subr.mxu0 0.0
    %2494 = vmatpush1.msra.mxu0 0.0
    %2495 = vmatprep.subr.mxu0 0.0
    %2496 = vmatpush1.msra.mxu0 0.0
    %2497 = vmatprep.subr.mxu0 0.0
    %2498 = vmatpush1.msra.mxu0 0.0
    %2499 = vmatprep.subr.mxu0 0.0
    %2500 = vmatpush1.msra.mxu0 0.0
    %2501 = vmatprep.subr.mxu0 0.0
    %2502 = vmatpush1.msra.mxu0 0.0
    %2503 = vmatprep.subr.mxu0 0.0
    %2504 = vmatpush1.msra.mxu0 0.0
    %2505 = vmatprep.subr.mxu0 0.0
    %2506 = vmatpush1.msra.mxu0 0.0
    %2507 = vmatprep.mubr.f32.mxu0 0.0
    %2508 = vmatmul.mubr.f32.gmra.mrb[0].mxu0 %v2441
    %v2509 = vpop.f32.mrb[0].mxu0
    %v2510 = vadd.f32 0.0, %v2509
    %v2511 = vpop.f32.mrb[0].mxu0
    %2512 = vdwg.mxu0
    %v2514 = vlaneseq
    %v2515 = vshrl.u32 %v2514, 7
    %v2516 = vsub.s32 0, %v2515
    %v2517 = vrot.slane %v2392, %v2516
    %v2519 = vadd.f32 %v2510, %v2517
    %2521 = vrot.lane.b32.xlu0 %v2519, 96
    %v2522 = vpop.permute.xlu0 %2521
    %v2523 = vsel %vm230, %v2519, 0
    %v2525 = vsel %vm230, %v2522, 0
    %2527 = vmatprep.subr.mxu0 0.0
    %2528 = vmatpush1.xpose.msra.mxu0 %v2525
    %2529 = vmatprep.subr.mxu0 0.0
    %2530 = vmatpush1.xpose.msra.mxu0 0.0
    %2531 = vmatprep.subr.mxu0 0.0
    %2532 = vmatpush1.xpose.msra.mxu0 0.0
    %2533 = vmatprep.subr.mxu0 0.0
    %2534 = vmatpush1.xpose.msra.mxu0 0.0
    %2535 = vmatprep.subr.mxu0 0.0
    %2536 = vmatpush1.xpose.msra.mxu0 0.0
    %2537 = vmatprep.subr.mxu0 0.0
    %2538 = vmatpush1.xpose.msra.mxu0 0.0
    %2539 = vmatprep.subr.mxu0 0.0
    %2540 = vmatpush1.xpose.msra.mxu0 0.0
    %2541 = vmatprep.subr.mxu0 0.0
    %2542 = vmatpush1.xpose.msra.mxu0 0.0
    %2543 = vmatprep.subr.mxu0 0.0
    %2544 = vmatpush1.xpose.msra.mxu0 0.0
    %2545 = vmatprep.subr.mxu0 0.0
    %2546 = vmatpush1.xpose.msra.mxu0 0.0
    %2547 = vmatprep.subr.mxu0 0.0
    %2548 = vmatpush1.xpose.msra.mxu0 0.0
    %2549 = vmatprep.subr.mxu0 0.0
    %2550 = vmatpush1.xpose.msra.mxu0 0.0
    %2551 = vmatprep.subr.mxu0 0.0
    %2552 = vmatpush1.xpose.msra.mxu0 0.0
    %2553 = vmatprep.subr.mxu0 0.0
    %2554 = vmatpush1.xpose.msra.mxu0 0.0
    %2555 = vmatprep.subr.mxu0 0.0
    %2556 = vmatpush1.xpose.msra.mxu0 0.0
    %2557 = vmatprep.subr.mxu0 0.0
    %2558 = vmatpush1.xpose.msra.mxu0 0.0
    %2559 = vmatprep.subr.mxu0 0.0
    %2560 = vmatpush1.xpose.msra.mxu0 0.0
    %2561 = vmatprep.subr.mxu0 0.0
    %2562 = vmatpush1.xpose.msra.mxu0 0.0
    %2563 = vmatprep.subr.mxu0 0.0
    %2564 = vmatpush1.xpose.msra.mxu0 0.0
    %2565 = vmatprep.subr.mxu0 0.0
    %2566 = vmatpush1.xpose.msra.mxu0 0.0
    %2567 = vmatprep.subr.mxu0 0.0
    %2568 = vmatpush1.xpose.msra.mxu0 0.0
    %2569 = vmatprep.subr.mxu0 0.0
    %2570 = vmatpush1.xpose.msra.mxu0 0.0
    %2571 = vmatprep.subr.mxu0 0.0
    %2572 = vmatpush1.xpose.msra.mxu0 0.0
    %2573 = vmatprep.subr.mxu0 0.0
    %2574 = vmatpush1.xpose.msra.mxu0 0.0
    %2575 = vmatprep.subr.mxu0 0.0
    %2576 = vmatpush1.xpose.msra.mxu0 0.0
    %2577 = vmatprep.subr.mxu0 0.0
    %2578 = vmatpush1.xpose.msra.mxu0 0.0
    %2579 = vmatprep.subr.mxu0 0.0
    %2580 = vmatpush1.xpose.msra.mxu0 0.0
    %2581 = vmatprep.subr.mxu0 0.0
    %2582 = vmatpush1.xpose.msra.mxu0 0.0
    %2583 = vmatprep.subr.mxu0 0.0
    %2584 = vmatpush1.xpose.msra.mxu0 0.0
    %2585 = vmatprep.subr.mxu0 0.0
    %2586 = vmatpush1.xpose.msra.mxu0 0.0
    %2587 = vmatprep.subr.mxu0 0.0
    %2588 = vmatpush1.xpose.msra.mxu0 0.0
    %2589 = vmatprep.subr.mxu0 0.0
    %2590 = vmatpush1.xpose.msra.mxu0 0.0
    %2591 = vmatprep.mubr.f32.mxu0 0.0
    %2592 = vmatmul.mubr.f32.gmra.mrb[0].mxu0 %v2523
    %v2593 = vpop.f32.mrb[0].mxu0
    %v2594 = vadd.f32 0.0, %v2593
    %v2595 = vpop.f32.mrb[0].mxu0
    %2596 = vdwg.mxu0
    %v2597 = vmul.f32 %v2594, 0.35355338
    %v2598 = vsel %vm73, %v2597, -3.4028235e+38
    %v2599 = vadd.f32 %v2598, %v311
    %v2600 = vsel %vm230, %v2599, -inf
    %2601 = vmax.xlane.f32.xlu0 %v2600
    %v2602 = vpop.xlane.xlu0 %2601
    %v2603 = vsub.f32 %v2599, %v2602
    %v2604 = vmul.f32 %v2603, 1.442695
    %v2605 = vpow.pop %v2604
    %v2606 = vsel %vm230, %v2605, 0.0
    %2607 = vadd.xlane.f32.xlu0 %v2606
    %v2608 = vpop.xlane.xlu0 %2607
    %v2609 = vrcp.pop %v2608
    %v2610 = vmul.f32 %v2605, %v2609
    %2611 = vrot.lane.b32.xlu0 %v2519, 64
    %v2612 = vpop.permute.xlu0 %2611
    %v2615 = vsel %vm230, %v2610, 0
    %2617 = vmatprep.subr.mxu0 0.0
    %2618 = vmatpush1.msra.mxu0 %v2612
    %2619 = vmatprep.subr.mxu0 0.0
    %2620 = vmatpush1.msra.mxu0 0.0
    %2621 = vmatprep.subr.mxu0 0.0
    %2622 = vmatpush1.msra.mxu0 0.0
    %2623 = vmatprep.subr.mxu0 0.0
    %2624 = vmatpush1.msra.mxu0 0.0
    %2625 = vmatprep.subr.mxu0 0.0
    %2626 = vmatpush1.msra.mxu0 0.0
    %2627 = vmatprep.subr.mxu0 0.0
    %2628 = vmatpush1.msra.mxu0 0.0
    %2629 = vmatprep.subr.mxu0 0.0
    %2630 = vmatpush1.msra.mxu0 0.0
    %2631 = vmatprep.subr.mxu0 0.0
    %2632 = vmatpush1.msra.mxu0 0.0
    %2633 = vmatprep.subr.mxu0 0.0
    %2634 = vmatpush1.msra.mxu0 0.0
    %2635 = vmatprep.subr.mxu0 0.0
    %2636 = vmatpush1.msra.mxu0 0.0
    %2637 = vmatprep.subr.mxu0 0.0
    %2638 = vmatpush1.msra.mxu0 0.0
    %2639 = vmatprep.subr.mxu0 0.0
    %2640 = vmatpush1.msra.mxu0 0.0
    %2641 = vmatprep.subr.mxu0 0.0
    %2642 = vmatpush1.msra.mxu0 0.0
    %2643 = vmatprep.subr.mxu0 0.0
    %2644 = vmatpush1.msra.mxu0 0.0
    %2645 = vmatprep.subr.mxu0 0.0
    %2646 = vmatpush1.msra.mxu0 0.0
    %2647 = vmatprep.subr.mxu0 0.0
    %2648 = vmatpush1.msra.mxu0 0.0
    %2649 = vmatprep.subr.mxu0 0.0
    %2650 = vmatpush1.msra.mxu0 0.0
    %2651 = vmatprep.subr.mxu0 0.0
    %2652 = vmatpush1.msra.mxu0 0.0
    %2653 = vmatprep.subr.mxu0 0.0
    %2654 = vmatpush1.msra.mxu0 0.0
    %2655 = vmatprep.subr.mxu0 0.0
    %2656 = vmatpush1.msra.mxu0 0.0
    %2657 = vmatprep.subr.mxu0 0.0
    %2658 = vmatpush1.msra.mxu0 0.0
    %2659 = vmatprep.subr.mxu0 0.0
    %2660 = vmatpush1.msra.mxu0 0.0
    %2661 = vmatprep.subr.mxu0 0.0
    %2662 = vmatpush1.msra.mxu0 0.0
    %2663 = vmatprep.subr.mxu0 0.0
    %2664 = vmatpush1.msra.mxu0 0.0
    %2665 = vmatprep.subr.mxu0 0.0
    %2666 = vmatpush1.msra.mxu0 0.0
    %2667 = vmatprep.subr.mxu0 0.0
    %2668 = vmatpush1.msra.mxu0 0.0
    %2669 = vmatprep.subr.mxu0 0.0
    %2670 = vmatpush1.msra.mxu0 0.0
    %2671 = vmatprep.subr.mxu0 0.0
    %2672 = vmatpush1.msra.mxu0 0.0
    %2673 = vmatprep.subr.mxu0 0.0
    %2674 = vmatpush1.msra.mxu0 0.0
    %2675 = vmatprep.subr.mxu0 0.0
    %2676 = vmatpush1.msra.mxu0 0.0
    %2677 = vmatprep.subr.mxu0 0.0
    %2678 = vmatpush1.msra.mxu0 0.0
    %2679 = vmatprep.subr.mxu0 0.0
    %2680 = vmatpush1.msra.mxu0 0.0
    %2681 = vmatprep.mubr.f32.mxu0 0.0
    %2682 = vmatmul.mubr.f32.gmra.mrb[0].mxu0 %v2615
    %v2683 = vpop.f32.mrb[0].mxu0
    %v2684 = vadd.f32 0.0, %v2683
    %v2685 = vpop.f32.mrb[0].mxu0
    %2686 = vdwg.mxu0
    %2687 = vrot.lane.b32.xlu0 %v2519, 120
    %v2688 = vpop.permute.xlu0 %2687
    %2689 = vrot.lane.b32.xlu0 %v2519, 88
    %v2690 = vpop.permute.xlu0 %2689
    %v2691 = vsel %vm230, %v2688, 0
    %v2693 = vsel %vm230, %v2690, 0
    %2695 = vmatprep.subr.mxu0 0.0
    %2696 = vmatpush1.xpose.msra.mxu0 %v2693
    %2697 = vmatprep.subr.mxu0 0.0
    %2698 = vmatpush1.xpose.msra.mxu0 0.0
    %2699 = vmatprep.subr.mxu0 0.0
    %2700 = vmatpush1.xpose.msra.mxu0 0.0
    %2701 = vmatprep.subr.mxu0 0.0
    %2702 = vmatpush1.xpose.msra.mxu0 0.0
    %2703 = vmatprep.subr.mxu0 0.0
    %2704 = vmatpush1.xpose.msra.mxu0 0.0
    %2705 = vmatprep.subr.mxu0 0.0
    %2706 = vmatpush1.xpose.msra.mxu0 0.0
    %2707 = vmatprep.subr.mxu0 0.0
    %2708 = vmatpush1.xpose.msra.mxu0 0.0
    %2709 = vmatprep.subr.mxu0 0.0
    %2710 = vmatpush1.xpose.msra.mxu0 0.0
    %2711 = vmatprep.subr.mxu0 0.0
    %2712 = vmatpush1.xpose.msra.mxu0 0.0
    %2713 = vmatprep.subr.mxu0 0.0
    %2714 = vmatpush1.xpose.msra.mxu0 0.0
    %2715 = vmatprep.subr.mxu0 0.0
    %2716 = vmatpush1.xpose.msra.mxu0 0.0
    %2717 = vmatprep.subr.mxu0 0.0
    %2718 = vmatpush1.xpose.msra.mxu0 0.0
    %2719 = vmatprep.subr.mxu0 0.0
    %2720 = vmatpush1.xpose.msra.mxu0 0.0
    %2721 = vmatprep.subr.mxu0 0.0
    %2722 = vmatpush1.xpose.msra.mxu0 0.0
    %2723 = vmatprep.subr.mxu0 0.0
    %2724 = vmatpush1.xpose.msra.mxu0 0.0
    %2725 = vmatprep.subr.mxu0 0.0
    %2726 = vmatpush1.xpose.msra.mxu0 0.0
    %2727 = vmatprep.subr.mxu0 0.0
    %2728 = vmatpush1.xpose.msra.mxu0 0.0
    %2729 = vmatprep.subr.mxu0 0.0
    %2730 = vmatpush1.xpose.msra.mxu0 0.0
    %2731 = vmatprep.subr.mxu0 0.0
    %2732 = vmatpush1.xpose.msra.mxu0 0.0
    %2733 = vmatprep.subr.mxu0 0.0
    %2734 = vmatpush1.xpose.msra.mxu0 0.0
    %2735 = vmatprep.subr.mxu0 0.0
    %2736 = vmatpush1.xpose.msra.mxu0 0.0
    %2737 = vmatprep.subr.mxu0 0.0
    %2738 = vmatpush1.xpose.msra.mxu0 0.0
    %2739 = vmatprep.subr.mxu0 0.0
    %2740 = vmatpush1.xpose.msra.mxu0 0.0
    %2741 = vmatprep.subr.mxu0 0.0
    %2742 = vmatpush1.xpose.msra.mxu0 0.0
    %2743 = vmatprep.subr.mxu0 0.0
    %2744 = vmatpush1.xpose.msra.mxu0 0.0
    %2745 = vmatprep.subr.mxu0 0.0
    %2746 = vmatpush1.xpose.msra.mxu0 0.0
    %2747 = vmatprep.subr.mxu0 0.0
    %2748 = vmatpush1.xpose.msra.mxu0 0.0
    %2749 = vmatprep.subr.mxu0 0.0
    %2750 = vmatpush1.xpose.msra.mxu0 0.0
    %2751 = vmatprep.subr.mxu0 0.0
    %2752 = vmatpush1.xpose.msra.mxu0 0.0
    %2753 = vmatprep.subr.mxu0 0.0
    %2754 = vmatpush1.xpose.msra.mxu0 0.0
    %2755 = vmatprep.subr.mxu0 0.0
    %2756 = vmatpush1.xpose.msra.mxu0 0.0
    %2757 = vmatprep.subr.mxu0 0.0
    %2758 = vmatpush1.xpose.msra.mxu0 0.0
    %2759 = vmatprep.mubr.f32.mxu0 0.0
    %2760 = vmatmul.mubr.f32.gmra.mrb[0].mxu0 %v2691
    %v2761 = vpop.f32.mrb[0].mxu0
    %v2762 = vadd.f32 0.0, %v2761
    %v2763 = vpop.f32.mrb[0].mxu0
    %2764 = vdwg.mxu0
    %v2765 = vmul.f32 %v2762, 0.35355338
    %v2766 = vsel %vm73, %v2765, -3.4028235e+38
    %v2767 = vadd.f32 %v2766, %v311
    %v2768 = vsel %vm230, %v2767, -inf
    %2769 = vmax.xlane.f32.xlu0 %v2768
    %v2770 = vpop.xlane.xlu0 %2769
    %v2771 = vsub.f32 %v2767, %v2770
    %v2772 = vmul.f32 %v2771, 1.442695
    %v2773 = vpow.pop %v2772
    %v2774 = vsel %vm230, %v2773, 0.0
    %2775 = vadd.xlane.f32.xlu0 %v2774
    %v2776 = vpop.xlane.xlu0 %2775
    %v2777 = vrcp.pop %v2776
    %v2778 = vmul.f32 %v2773, %v2777
    %2779 = vrot.lane.b32.xlu0 %v2519, 56
    %v2780 = vpop.permute.xlu0 %2779
    %v2783 = vsel %vm230, %v2778, 0
    %2785 = vmatprep.subr.mxu0 0.0
    %2786 = vmatpush1.msra.mxu0 %v2780
    %2787 = vmatprep.subr.mxu0 0.0
    %2788 = vmatpush1.msra.mxu0 0.0
    %2789 = vmatprep.subr.mxu0 0.0
    %2790 = vmatpush1.msra.mxu0 0.0
    %2791 = vmatprep.subr.mxu0 0.0
    %2792 = vmatpush1.msra.mxu0 0.0
    %2793 = vmatprep.subr.mxu0 0.0
    %2794 = vmatpush1.msra.mxu0 0.0
    %2795 = vmatprep.subr.mxu0 0.0
    %2796 = vmatpush1.msra.mxu0 0.0
    %2797 = vmatprep.subr.mxu0 0.0
    %2798 = vmatpush1.msra.mxu0 0.0
    %2799 = vmatprep.subr.mxu0 0.0
    %2800 = vmatpush1.msra.mxu0 0.0
    %2801 = vmatprep.subr.mxu0 0.0
    %2802 = vmatpush1.msra.mxu0 0.0
    %2803 = vmatprep.subr.mxu0 0.0
    %2804 = vmatpush1.msra.mxu0 0.0
    %2805 = vmatprep.subr.mxu0 0.0
    %2806 = vmatpush1.msra.mxu0 0.0
    %2807 = vmatprep.subr.mxu0 0.0
    %2808 = vmatpush1.msra.mxu0 0.0
    %2809 = vmatprep.subr.mxu0 0.0
    %2810 = vmatpush1.msra.mxu0 0.0
    %2811 = vmatprep.subr.mxu0 0.0
    %2812 = vmatpush1.msra.mxu0 0.0
    %2813 = vmatprep.subr.mxu0 0.0
    %2814 = vmatpush1.msra.mxu0 0.0
    %2815 = vmatprep.subr.mxu0 0.0
    %2816 = vmatpush1.msra.mxu0 0.0
    %2817 = vmatprep.subr.mxu0 0.0
    %2818 = vmatpush1.msra.mxu0 0.0
    %2819 = vmatprep.subr.mxu0 0.0
    %2820 = vmatpush1.msra.mxu0 0.0
    %2821 = vmatprep.subr.mxu0 0.0
    %2822 = vmatpush1.msra.mxu0 0.0
    %2823 = vmatprep.subr.mxu0 0.0
    %2824 = vmatpush1.msra.mxu0 0.0
    %2825 = vmatprep.subr.mxu0 0.0
    %2826 = vmatpush1.msra.mxu0 0.0
    %2827 = vmatprep.subr.mxu0 0.0
    %2828 = vmatpush1.msra.mxu0 0.0
    %2829 = vmatprep.subr.mxu0 0.0
    %2830 = vmatpush1.msra.mxu0 0.0
    %2831 = vmatprep.subr.mxu0 0.0
    %2832 = vmatpush1.msra.mxu0 0.0
    %2833 = vmatprep.subr.mxu0 0.0
    %2834 = vmatpush1.msra.mxu0 0.0
    %2835 = vmatprep.subr.mxu0 0.0
    %2836 = vmatpush1.msra.mxu0 0.0
    %2837 = vmatprep.subr.mxu0 0.0
    %2838 = vmatpush1.msra.mxu0 0.0
    %2839 = vmatprep.subr.mxu0 0.0
    %2840 = vmatpush1.msra.mxu0 0.0
    %2841 = vmatprep.subr.mxu0 0.0
    %2842 = vmatpush1.msra.mxu0 0.0
    %2843 = vmatprep.subr.mxu0 0.0
    %2844 = vmatpush1.msra.mxu0 0.0
    %2845 = vmatprep.subr.mxu0 0.0
    %2846 = vmatpush1.msra.mxu0 0.0
    %2847 = vmatprep.subr.mxu0 0.0
    %2848 = vmatpush1.msra.mxu0 0.0
    %2849 = vmatprep.mubr.f32.mxu0 0.0
    %2850 = vmatmul.mubr.f32.gmra.mrb[0].mxu0 %v2783
    %v2851 = vpop.f32.mrb[0].mxu0
    %v2852 = vadd.f32 0.0, %v2851
    %v2853 = vpop.f32.mrb[0].mxu0
    %2854 = vdwg.mxu0
    %2855 = vrot.lane.b32.xlu0 %v2519, 112
    %v2856 = vpop.permute.xlu0 %2855
    %2857 = vrot.lane.b32.xlu0 %v2519, 80
    %v2858 = vpop.permute.xlu0 %2857
    %v2859 = vsel %vm230, %v2856, 0
    %v2861 = vsel %vm230, %v2858, 0
    %2863 = vmatprep.subr.mxu0 0.0
    %2864 = vmatpush1.xpose.msra.mxu0 %v2861
    %2865 = vmatprep.subr.mxu0 0.0
    %2866 = vmatpush1.xpose.msra.mxu0 0.0
    %2867 = vmatprep.subr.mxu0 0.0
    %2868 = vmatpush1.xpose.msra.mxu0 0.0
    %2869 = vmatprep.subr.mxu0 0.0
    %2870 = vmatpush1.xpose.msra.mxu0 0.0
    %2871 = vmatprep.subr.mxu0 0.0
    %2872 = vmatpush1.xpose.msra.mxu0 0.0
    %2873 = vmatprep.subr.mxu0 0.0
    %2874 = vmatpush1.xpose.msra.mxu0 0.0
    %2875 = vmatprep.subr.mxu0 0.0
    %2876 = vmatpush1.xpose.msra.mxu0 0.0
    %2877 = vmatprep.subr.mxu0 0.0
    %2878 = vmatpush1.xpose.msra.mxu0 0.0
    %2879 = vmatprep.subr.mxu0 0.0
    %2880 = vmatpush1.xpose.msra.mxu0 0.0
    %2881 = vmatprep.subr.mxu0 0.0
    %2882 = vmatpush1.xpose.msra.mxu0 0.0
    %2883 = vmatprep.subr.mxu0 0.0
    %2884 = vmatpush1.xpose.msra.mxu0 0.0
    %2885 = vmatprep.subr.mxu0 0.0
    %2886 = vmatpush1.xpose.msra.mxu0 0.0
    %2887 = vmatprep.subr.mxu0 0.0
    %2888 = vmatpush1.xpose.msra.mxu0 0.0
    %2889 = vmatprep.subr.mxu0 0.0
    %2890 = vmatpush1.xpose.msra.mxu0 0.0
    %2891 = vmatprep.subr.mxu0 0.0
    %2892 = vmatpush1.xpose.msra.mxu0 0.0
    %2893 = vmatprep.subr.mxu0 0.0
    %2894 = vmatpush1.xpose.msra.mxu0 0.0
    %2895 = vmatprep.subr.mxu0 0.0
    %2896 = vmatpush1.xpose.msra.mxu0 0.0
    %2897 = vmatprep.subr.mxu0 0.0
    %2898 = vmatpush1.xpose.msra.mxu0 0.0
    %2899 = vmatprep.subr.mxu0 0.0
    %2900 = vmatpush1.xpose.msra.mxu0 0.0
    %2901 = vmatprep.subr.mxu0 0.0
    %2902 = vmatpush1.xpose.msra.mxu0 0.0
    %2903 = vmatprep.subr.mxu0 0.0
    %2904 = vmatpush1.xpose.msra.mxu0 0.0
    %2905 = vmatprep.subr.mxu0 0.0
    %2906 = vmatpush1.xpose.msra.mxu0 0.0
    %2907 = vmatprep.subr.mxu0 0.0
    %2908 = vmatpush1.xpose.msra.mxu0 0.0
    %2909 = vmatprep.subr.mxu0 0.0
    %2910 = vmatpush1.xpose.msra.mxu0 0.0
    %2911 = vmatprep.subr.mxu0 0.0
    %2912 = vmatpush1.xpose.msra.mxu0 0.0
    %2913 = vmatprep.subr.mxu0 0.0
    %2914 = vmatpush1.xpose.msra.mxu0 0.0
    %2915 = vmatprep.subr.mxu0 0.0
    %2916 = vmatpush1.xpose.msra.mxu0 0.0
    %2917 = vmatprep.subr.mxu0 0.0
    %2918 = vmatpush1.xpose.msra.mxu0 0.0
    %2919 = vmatprep.subr.mxu0 0.0
    %2920 = vmatpush1.xpose.msra.mxu0 0.0
    %2921 = vmatprep.subr.mxu0 0.0
    %2922 = vmatpush1.xpose.msra.mxu0 0.0
    %2923 = vmatprep.subr.mxu0 0.0
    %2924 = vmatpush1.xpose.msra.mxu0 0.0
    %2925 = vmatprep.subr.mxu0 0.0
    %2926 = vmatpush1.xpose.msra.mxu0 0.0
    %2927 = vmatprep.mubr.f32.mxu0 0.0
    %2928 = vmatmul.mubr.f32.gmra.mrb[0].mxu0 %v2859
    %v2929 = vpop.f32.mrb[0].mxu0
    %v2930 = vadd.f32 0.0, %v2929
    %v2931 = vpop.f32.mrb[0].mxu0
    %2932 = vdwg.mxu0
    %v2933 = vmul.f32 %v2930, 0.35355338
    %v2934 = vsel %vm73, %v2933, -3.4028235e+38
    %v2935 = vadd.f32 %v2934, %v311
    %v2936 = vsel %vm230, %v2935, -inf
    %2937 = vmax.xlane.f32.xlu0 %v2936
    %v2938 = vpop.xlane.xlu0 %2937
    %v2939 = vsub.f32 %v2935, %v2938
    %v2940 = vmul.f32 %v2939, 1.442695
    %v2941 = vpow.pop %v2940
    %v2942 = vsel %vm230, %v2941, 0.0
    %2943 = vadd.xlane.f32.xlu0 %v2942
    %v2944 = vpop.xlane.xlu0 %2943
    %v2945 = vrcp.pop %v2944
    %v2946 = vmul.f32 %v2941, %v2945
    %2947 = vrot.lane.b32.xlu0 %v2519, 48
    %v2948 = vpop.permute.xlu0 %2947
    %v2951 = vsel %vm230, %v2946, 0
    %2953 = vmatprep.subr.mxu0 0.0
    %2954 = vmatpush1.msra.mxu0 %v2948
    %2955 = vmatprep.subr.mxu0 0.0
    %2956 = vmatpush1.msra.mxu0 0.0
    %2957 = vmatprep.subr.mxu0 0.0
    %2958 = vmatpush1.msra.mxu0 0.0
    %2959 = vmatprep.subr.mxu0 0.0
    %2960 = vmatpush1.msra.mxu0 0.0
    %2961 = vmatprep.subr.mxu0 0.0
    %2962 = vmatpush1.msra.mxu0 0.0
    %2963 = vmatprep.subr.mxu0 0.0
    %2964 = vmatpush1.msra.mxu0 0.0
    %2965 = vmatprep.subr.mxu0 0.0
    %2966 = vmatpush1.msra.mxu0 0.0
    %2967 = vmatprep.subr.mxu0 0.0
    %2968 = vmatpush1.msra.mxu0 0.0
    %2969 = vmatprep.subr.mxu0 0.0
    %2970 = vmatpush1.msra.mxu0 0.0
    %2971 = vmatprep.subr.mxu0 0.0
    %2972 = vmatpush1.msra.mxu0 0.0
    %2973 = vmatprep.subr.mxu0 0.0
    %2974 = vmatpush1.msra.mxu0 0.0
    %2975 = vmatprep.subr.mxu0 0.0
    %2976 = vmatpush1.msra.mxu0 0.0
    %2977 = vmatprep.subr.mxu0 0.0
    %2978 = vmatpush1.msra.mxu0 0.0
    %2979 = vmatprep.subr.mxu0 0.0
    %2980 = vmatpush1.msra.mxu0 0.0
    %2981 = vmatprep.subr.mxu0 0.0
    %2982 = vmatpush1.msra.mxu0 0.0
    %2983 = vmatprep.subr.mxu0 0.0
    %2984 = vmatpush1.msra.mxu0 0.0
    %2985 = vmatprep.subr.mxu0 0.0
    %2986 = vmatpush1.msra.mxu0 0.0
    %2987 = vmatprep.subr.mxu0 0.0
    %2988 = vmatpush1.msra.mxu0 0.0
    %2989 = vmatprep.subr.mxu0 0.0
    %2990 = vmatpush1.msra.mxu0 0.0
    %2991 = vmatprep.subr.mxu0 0.0
    %2992 = vmatpush1.msra.mxu0 0.0
    %2993 = vmatprep.subr.mxu0 0.0
    %2994 = vmatpush1.msra.mxu0 0.0
    %2995 = vmatprep.subr.mxu0 0.0
    %2996 = vmatpush1.msra.mxu0 0.0
    %2997 = vmatprep.subr.mxu0 0.0
    %2998 = vmatpush1.msra.mxu0 0.0
    %2999 = vmatprep.subr.mxu0 0.0
    %3000 = vmatpush1.msra.mxu0 0.0
    %3001 = vmatprep.subr.mxu0 0.0
    %3002 = vmatpush1.msra.mxu0 0.0
    %3003 = vmatprep.subr.mxu0 0.0
    %3004 = vmatpush1.msra.mxu0 0.0
    %3005 = vmatprep.subr.mxu0 0.0
    %3006 = vmatpush1.msra.mxu0 0.0
    %3007 = vmatprep.subr.mxu0 0.0
    %3008 = vmatpush1.msra.mxu0 0.0
    %3009 = vmatprep.subr.mxu0 0.0
    %3010 = vmatpush1.msra.mxu0 0.0
    %3011 = vmatprep.subr.mxu0 0.0
    %3012 = vmatpush1.msra.mxu0 0.0
    %3013 = vmatprep.subr.mxu0 0.0
    %3014 = vmatpush1.msra.mxu0 0.0
    %3015 = vmatprep.subr.mxu0 0.0
    %3016 = vmatpush1.msra.mxu0 0.0
    %3017 = vmatprep.mubr.f32.mxu0 0.0
    %3018 = vmatmul.mubr.f32.gmra.mrb[0].mxu0 %v2951
    %v3019 = vpop.f32.mrb[0].mxu0
    %v3020 = vadd.f32 0.0, %v3019
    %v3021 = vpop.f32.mrb[0].mxu0
    %3022 = vdwg.mxu0
    %3023 = vrot.lane.b32.xlu0 %v2519, 104
    %v3024 = vpop.permute.xlu0 %3023
    %3025 = vrot.lane.b32.xlu0 %v2519, 72
    %v3026 = vpop.permute.xlu0 %3025
    %v3027 = vsel %vm230, %v3024, 0
    %v3029 = vsel %vm230, %v3026, 0
    %3031 = vmatprep.subr.mxu0 0.0
    %3032 = vmatpush1.xpose.msra.mxu0 %v3029
    %3033 = vmatprep.subr.mxu0 0.0
    %3034 = vmatpush1.xpose.msra.mxu0 0.0
    %3035 = vmatprep.subr.mxu0 0.0
    %3036 = vmatpush1.xpose.msra.mxu0 0.0
    %3037 = vmatprep.subr.mxu0 0.0
    %3038 = vmatpush1.xpose.msra.mxu0 0.0
    %3039 = vmatprep.subr.mxu0 0.0
    %3040 = vmatpush1.xpose.msra.mxu0 0.0
    %3041 = vmatprep.subr.mxu0 0.0
    %3042 = vmatpush1.xpose.msra.mxu0 0.0
    %3043 = vmatprep.subr.mxu0 0.0
    %3044 = vmatpush1.xpose.msra.mxu0 0.0
    %3045 = vmatprep.subr.mxu0 0.0
    %3046 = vmatpush1.xpose.msra.mxu0 0.0
    %3047 = vmatprep.subr.mxu0 0.0
    %3048 = vmatpush1.xpose.msra.mxu0 0.0
    %3049 = vmatprep.subr.mxu0 0.0
    %3050 = vmatpush1.xpose.msra.mxu0 0.0
    %3051 = vmatprep.subr.mxu0 0.0
    %3052 = vmatpush1.xpose.msra.mxu0 0.0
    %3053 = vmatprep.subr.mxu0 0.0
    %3054 = vmatpush1.xpose.msra.mxu0 0.0
    %3055 = vmatprep.subr.mxu0 0.0
    %3056 = vmatpush1.xpose.msra.mxu0 0.0
    %3057 = vmatprep.subr.mxu0 0.0
    %3058 = vmatpush1.xpose.msra.mxu0 0.0
    %3059 = vmatprep.subr.mxu0 0.0
    %3060 = vmatpush1.xpose.msra.mxu0 0.0
    %3061 = vmatprep.subr.mxu0 0.0
    %3062 = vmatpush1.xpose.msra.mxu0 0.0
    %3063 = vmatprep.subr.mxu0 0.0
    %3064 = vmatpush1.xpose.msra.mxu0 0.0
    %3065 = vmatprep.subr.mxu0 0.0
    %3066 = vmatpush1.xpose.msra.mxu0 0.0
    %3067 = vmatprep.subr.mxu0 0.0
    %3068 = vmatpush1.xpose.msra.mxu0 0.0
    %3069 = vmatprep.subr.mxu0 0.0
    %3070 = vmatpush1.xpose.msra.mxu0 0.0
    %3071 = vmatprep.subr.mxu0 0.0
    %3072 = vmatpush1.xpose.msra.mxu0 0.0
    %3073 = vmatprep.subr.mxu0 0.0
    %3074 = vmatpush1.xpose.msra.mxu0 0.0
    %3075 = vmatprep.subr.mxu0 0.0
    %3076 = vmatpush1.xpose.msra.mxu0 0.0
    %3077 = vmatprep.subr.mxu0 0.0
    %3078 = vmatpush1.xpose.msra.mxu0 0.0
    %3079 = vmatprep.subr.mxu0 0.0
    %3080 = vmatpush1.xpose.msra.mxu0 0.0
    %3081 = vmatprep.subr.mxu0 0.0
    %3082 = vmatpush1.xpose.msra.mxu0 0.0
    %3083 = vmatprep.subr.mxu0 0.0
    %3084 = vmatpush1.xpose.msra.mxu0 0.0
    %3085 = vmatprep.subr.mxu0 0.0
    %3086 = vmatpush1.xpose.msra.mxu0 0.0
    %3087 = vmatprep.subr.mxu0 0.0
    %3088 = vmatpush1.xpose.msra.mxu0 0.0
    %3089 = vmatprep.subr.mxu0 0.0
    %3090 = vmatpush1.xpose.msra.mxu0 0.0
    %3091 = vmatprep.subr.mxu0 0.0
    %3092 = vmatpush1.xpose.msra.mxu0 0.0
    %3093 = vmatprep.subr.mxu0 0.0
    %3094 = vmatpush1.xpose.msra.mxu0 0.0
    %3095 = vmatprep.mubr.f32.mxu0 0.0
    %3096 = vmatmul.mubr.f32.gmra.mrb[0].mxu0 %v3027
    %v3097 = vpop.f32.mrb[0].mxu0
    %v3098 = vadd.f32 0.0, %v3097
    %v3099 = vpop.f32.mrb[0].mxu0
    %3100 = vdwg.mxu0
    %v3101 = vmul.f32 %v3098, 0.35355338
    %v3102 = vsel %vm73, %v3101, -3.4028235e+38
    %v3103 = vadd.f32 %v3102, %v311
    %v3104 = vsel %vm230, %v3103, -inf
    %3105 = vmax.xlane.f32.xlu0 %v3104
    %v3106 = vpop.xlane.xlu0 %3105
    %v3107 = vsub.f32 %v3103, %v3106
    %v3108 = vmul.f32 %v3107, 1.442695
    %v3109 = vpow.pop %v3108
    %v3110 = vsel %vm230, %v3109, 0.0
    %3111 = vadd.xlane.f32.xlu0 %v3110
    %v3112 = vpop.xlane.xlu0 %3111
    %v3113 = vrcp.pop %v3112
    %v3114 = vmul.f32 %v3109, %v3113
    %3115 = vrot.lane.b32.xlu0 %v2519, 40
    %v3116 = vpop.permute.xlu0 %3115
    %v3119 = vsel %vm230, %v3114, 0
    %3121 = vmatprep.subr.mxu0 0.0
    %3122 = vmatpush1.msra.mxu0 %v3116
    %3123 = vmatprep.subr.mxu0 0.0
    %3124 = vmatpush1.msra.mxu0 0.0
    %3125 = vmatprep.subr.mxu0 0.0
    %3126 = vmatpush1.msra.mxu0 0.0
    %3127 = vmatprep.subr.mxu0 0.0
    %3128 = vmatpush1.msra.mxu0 0.0
    %3129 = vmatprep.subr.mxu0 0.0
    %3130 = vmatpush1.msra.mxu0 0.0
    %3131 = vmatprep.subr.mxu0 0.0
    %3132 = vmatpush1.msra.mxu0 0.0
    %3133 = vmatprep.subr.mxu0 0.0
    %3134 = vmatpush1.msra.mxu0 0.0
    %3135 = vmatprep.subr.mxu0 0.0
    %3136 = vmatpush1.msra.mxu0 0.0
    %3137 = vmatprep.subr.mxu0 0.0
    %3138 = vmatpush1.msra.mxu0 0.0
    %3139 = vmatprep.subr.mxu0 0.0
    %3140 = vmatpush1.msra.mxu0 0.0
    %3141 = vmatprep.subr.mxu0 0.0
    %3142 = vmatpush1.msra.mxu0 0.0
    %3143 = vmatprep.subr.mxu0 0.0
    %3144 = vmatpush1.msra.mxu0 0.0
    %3145 = vmatprep.subr.mxu0 0.0
    %3146 = vmatpush1.msra.mxu0 0.0
    %3147 = vmatprep.subr.mxu0 0.0
    %3148 = vmatpush1.msra.mxu0 0.0
    %3149 = vmatprep.subr.mxu0 0.0
    %3150 = vmatpush1.msra.mxu0 0.0
    %3151 = vmatprep.subr.mxu0 0.0
    %3152 = vmatpush1.msra.mxu0 0.0
    %3153 = vmatprep.subr.mxu0 0.0
    %3154 = vmatpush1.msra.mxu0 0.0
    %3155 = vmatprep.subr.mxu0 0.0
    %3156 = vmatpush1.msra.mxu0 0.0
    %3157 = vmatprep.subr.mxu0 0.0
    %3158 = vmatpush1.msra.mxu0 0.0
    %3159 = vmatprep.subr.mxu0 0.0
    %3160 = vmatpush1.msra.mxu0 0.0
    %3161 = vmatprep.subr.mxu0 0.0
    %3162 = vmatpush1.msra.mxu0 0.0
    %3163 = vmatprep.subr.mxu0 0.0
    %3164 = vmatpush1.msra.mxu0 0.0
    %3165 = vmatprep.subr.mxu0 0.0
    %3166 = vmatpush1.msra.mxu0 0.0
    %3167 = vmatprep.subr.mxu0 0.0
    %3168 = vmatpush1.msra.mxu0 0.0
    %3169 = vmatprep.subr.mxu0 0.0
    %3170 = vmatpush1.msra.mxu0 0.0
    %3171 = vmatprep.subr.mxu0 0.0
    %3172 = vmatpush1.msra.mxu0 0.0
    %3173 = vmatprep.subr.mxu0 0.0
    %3174 = vmatpush1.msra.mxu0 0.0
    %3175 = vmatprep.subr.mxu0 0.0
    %3176 = vmatpush1.msra.mxu0 0.0
    %3177 = vmatprep.subr.mxu0 0.0
    %3178 = vmatpush1.msra.mxu0 0.0
    %3179 = vmatprep.subr.mxu0 0.0
    %3180 = vmatpush1.msra.mxu0 0.0
    %3181 = vmatprep.subr.mxu0 0.0
    %3182 = vmatpush1.msra.mxu0 0.0
    %3183 = vmatprep.subr.mxu0 0.0
    %3184 = vmatpush1.msra.mxu0 0.0
    %3185 = vmatprep.mubr.f32.mxu0 0.0
    %3186 = vmatmul.mubr.f32.gmra.mrb[0].mxu0 %v3119
    %v3187 = vpop.f32.mrb[0].mxu0
    %v3188 = vadd.f32 0.0, %v3187
    %v3189 = vpop.f32.mrb[0].mxu0
    %3190 = vdwg.mxu0
    %3192 = vrot.lane.b32.xlu0 %v2852, 8
    %v3193 = vpop.permute.xlu0 %3192
    %3196 = vrot.lane.b32.xlu0 %v3020, 16
    %v3197 = vpop.permute.xlu0 %3196
    %3200 = vrot.lane.b32.xlu0 %v3188, 24
    %v3201 = vpop.permute.xlu0 %3200
    %v3203 = vsel %vm230, %v2684, %v3193
    %v3204 = vsel %vm918, %v3203, %v3197
    %v3205 = vsel %vm920, %v3204, %v3201
    %v3207 = vlaneseq
    %v3208 = vshrl.u32 %v3207, 7
    %v3209 = vsub.s32 0, %v3208
    %v3210 = vrot.slane %v2399, %v3209
    %v3213 = vsel %vm118, %v3205, 0
    %3215 = vmatprep.subr.mxu0 0.0
    %3216 = vmatpush1.msra.mxu0 %v2394
    %3217 = vmatprep.subr.mxu0 0.0
    %3218 = vmatpush1.msra.mxu0 %v2395
    %3219 = vmatprep.subr.mxu0 0.0
    %3220 = vmatpush1.msra.mxu0 %v2396
    %3221 = vmatprep.subr.mxu0 0.0
    %3222 = vmatpush1.msra.mxu0 %v2397
    %3223 = vmatprep.subr.mxu0 0.0
    %3224 = vmatpush1.msra.mxu0 0.0
    %3225 = vmatprep.subr.mxu0 0.0
    %3226 = vmatpush1.msra.mxu0 0.0
    %3227 = vmatprep.subr.mxu0 0.0
    %3228 = vmatpush1.msra.mxu0 0.0
    %3229 = vmatprep.subr.mxu0 0.0
    %3230 = vmatpush1.msra.mxu0 0.0
    %3231 = vmatprep.subr.mxu0 0.0
    %3232 = vmatpush1.msra.mxu0 0.0
    %3233 = vmatprep.subr.mxu0 0.0
    %3234 = vmatpush1.msra.mxu0 0.0
    %3235 = vmatprep.subr.mxu0 0.0
    %3236 = vmatpush1.msra.mxu0 0.0
    %3237 = vmatprep.subr.mxu0 0.0
    %3238 = vmatpush1.msra.mxu0 0.0
    %3239 = vmatprep.subr.mxu0 0.0
    %3240 = vmatpush1.msra.mxu0 0.0
    %3241 = vmatprep.subr.mxu0 0.0
    %3242 = vmatpush1.msra.mxu0 0.0
    %3243 = vmatprep.subr.mxu0 0.0
    %3244 = vmatpush1.msra.mxu0 0.0
    %3245 = vmatprep.subr.mxu0 0.0
    %3246 = vmatpush1.msra.mxu0 0.0
    %3247 = vmatprep.subr.mxu0 0.0
    %3248 = vmatpush1.msra.mxu0 0.0
    %3249 = vmatprep.subr.mxu0 0.0
    %3250 = vmatpush1.msra.mxu0 0.0
    %3251 = vmatprep.subr.mxu0 0.0
    %3252 = vmatpush1.msra.mxu0 0.0
    %3253 = vmatprep.subr.mxu0 0.0
    %3254 = vmatpush1.msra.mxu0 0.0
    %3255 = vmatprep.subr.mxu0 0.0
    %3256 = vmatpush1.msra.mxu0 0.0
    %3257 = vmatprep.subr.mxu0 0.0
    %3258 = vmatpush1.msra.mxu0 0.0
    %3259 = vmatprep.subr.mxu0 0.0
    %3260 = vmatpush1.msra.mxu0 0.0
    %3261 = vmatprep.subr.mxu0 0.0
    %3262 = vmatpush1.msra.mxu0 0.0
    %3263 = vmatprep.subr.mxu0 0.0
    %3264 = vmatpush1.msra.mxu0 0.0
    %3265 = vmatprep.subr.mxu0 0.0
    %3266 = vmatpush1.msra.mxu0 0.0
    %3267 = vmatprep.subr.mxu0 0.0
    %3268 = vmatpush1.msra.mxu0 0.0
    %3269 = vmatprep.subr.mxu0 0.0
    %3270 = vmatpush1.msra.mxu0 0.0
    %3271 = vmatprep.subr.mxu0 0.0
    %3272 = vmatpush1.msra.mxu0 0.0
    %3273 = vmatprep.subr.mxu0 0.0
    %3274 = vmatpush1.msra.mxu0 0.0
    %3275 = vmatprep.subr.mxu0 0.0
    %3276 = vmatpush1.msra.mxu0 0.0
    %3277 = vmatprep.subr.mxu0 0.0
    %3278 = vmatpush1.msra.mxu0 0.0
    %3279 = vmatprep.mubr.f32.mxu0 0.0
    %3280 = vmatmul.mubr.f32.gmra.mrb[0].mxu0 %v3213
    %v3281 = vpop.f32.mrb[0].mxu0
    %v3282 = vadd.f32 %v3210, %v3281
    %v3283 = vpop.f32.mrb[0].mxu0
    %3284 = vdwg.mxu0
    %v3285 = vadd.f32 %v2140, %v3282
    %s3286 = scalar_lea.vmem %s14, 4
    %v3287 = vld [vmem:[%s3286] sm:$0xf]
    %v3289 = vsel %vm118, %v3287, 0
    %3291 = vmatprep.subr.mxu0 0.0
    %3292 = vmatpush1.xpose.msra.mxu0 %v2441
    %3293 = vmatprep.subr.mxu0 0.0
    %3294 = vmatpush1.xpose.msra.mxu0 0.0
    %3295 = vmatprep.subr.mxu0 0.0
    %3296 = vmatpush1.xpose.msra.mxu0 0.0
    %3297 = vmatprep.subr.mxu0 0.0
    %3298 = vmatpush1.xpose.msra.mxu0 0.0
    %3299 = vmatprep.subr.mxu0 0.0
    %3300 = vmatpush1.xpose.msra.mxu0 0.0
    %3301 = vmatprep.subr.mxu0 0.0
    %3302 = vmatpush1.xpose.msra.mxu0 0.0
    %3303 = vmatprep.subr.mxu0 0.0
    %3304 = vmatpush1.xpose.msra.mxu0 0.0
    %3305 = vmatprep.subr.mxu0 0.0
    %3306 = vmatpush1.xpose.msra.mxu0 0.0
    %3307 = vmatprep.subr.mxu0 0.0
    %3308 = vmatpush1.xpose.msra.mxu0 0.0
    %3309 = vmatprep.subr.mxu0 0.0
    %3310 = vmatpush1.xpose.msra.mxu0 0.0
    %3311 = vmatprep.subr.mxu0 0.0
    %3312 = vmatpush1.xpose.msra.mxu0 0.0
    %3313 = vmatprep.subr.mxu0 0.0
    %3314 = vmatpush1.xpose.msra.mxu0 0.0
    %3315 = vmatprep.subr.mxu0 0.0
    %3316 = vmatpush1.xpose.msra.mxu0 0.0
    %3317 = vmatprep.subr.mxu0 0.0
    %3318 = vmatpush1.xpose.msra.mxu0 0.0
    %3319 = vmatprep.subr.mxu0 0.0
    %3320 = vmatpush1.xpose.msra.mxu0 0.0
    %3321 = vmatprep.subr.mxu0 0.0
    %3322 = vmatpush1.xpose.msra.mxu0 0.0
    %3323 = vmatprep.subr.mxu0 0.0
    %3324 = vmatpush1.xpose.msra.mxu0 0.0
    %3325 = vmatprep.subr.mxu0 0.0
    %3326 = vmatpush1.xpose.msra.mxu0 0.0
    %3327 = vmatprep.subr.mxu0 0.0
    %3328 = vmatpush1.xpose.msra.mxu0 0.0
    %3329 = vmatprep.subr.mxu0 0.0
    %3330 = vmatpush1.xpose.msra.mxu0 0.0
    %3331 = vmatprep.subr.mxu0 0.0
    %3332 = vmatpush1.xpose.msra.mxu0 0.0
    %3333 = vmatprep.subr.mxu0 0.0
    %3334 = vmatpush1.xpose.msra.mxu0 0.0
    %3335 = vmatprep.subr.mxu0 0.0
    %3336 = vmatpush1.xpose.msra.mxu0 0.0
    %3337 = vmatprep.subr.mxu0 0.0
    %3338 = vmatpush1.xpose.msra.mxu0 0.0
    %3339 = vmatprep.subr.mxu0 0.0
    %3340 = vmatpush1.xpose.msra.mxu0 0.0
    %3341 = vmatprep.subr.mxu0 0.0
    %3342 = vmatpush1.xpose.msra.mxu0 0.0
    %3343 = vmatprep.subr.mxu0 0.0
    %3344 = vmatpush1.xpose.msra.mxu0 0.0
    %3345 = vmatprep.subr.mxu0 0.0
    %3346 = vmatpush1.xpose.msra.mxu0 0.0
    %3347 = vmatprep.subr.mxu0 0.0
    %3348 = vmatpush1.xpose.msra.mxu0 0.0
    %3349 = vmatprep.subr.mxu0 0.0
    %3350 = vmatpush1.xpose.msra.mxu0 0.0
    %3351 = vmatprep.subr.mxu0 0.0
    %3352 = vmatpush1.xpose.msra.mxu0 0.0
    %3353 = vmatprep.subr.mxu0 0.0
    %3354 = vmatpush1.xpose.msra.mxu0 0.0
    %3355 = vmatprep.mubr.f32.mxu0 0.0
    %3356 = vmatmul.mubr.f32.gmra.mrb[0].mxu0 %v3289
    %v3357 = vpop.f32.mrb[0].mxu0
    %v3358 = vadd.f32 0.0, %v3357
    %v3359 = vpop.f32.mrb[0].mxu0
    %3360 = vdwg.mxu0
    %s3361 = scalar_lea.vmem %s15, 1
    %v3362 = vld [vmem:[%s3361] sm:$0x1]
    %v3364 = vlaneseq
    %v3365 = vshrl.u32 %v3364, 7
    %v3366 = vsub.s32 0, %v3365
    %v3367 = vrot.slane %v3362, %v3366
    %v3369 = vmul.f32 %v2510, %v3367
    %s3370 = scalar_lea.vmem %s16, 4
    %v3371 = vld [vmem:[%s3370] sm:$0xf]
    %v3372 = vsel %vm230, %v3369, 0.0
    %3373 = vadd.xlane.f32.xlu0 %v3372
    %v3374 = vpop.xlane.xlu0 %3373
    %v3375 = vlaneseq
    %v3376 = vshrl.u32 %v3375, 7
    %v3377 = vsub.s32 0, %v3376
    %v3378 = vrot.slane %v3358, %v3377
    %3380 = vrot.lane.b32.xlu0 %v2510, 96
    %v3381 = vpop.permute.xlu0 %3380
    %v3382 = vsel %vm230, %v2510, 0
    %v3384 = vsel %vm230, %v3381, 0
    %3386 = vmatprep.subr.mxu0 0.0
    %3387 = vmatpush1.xpose.msra.mxu0 %v3384
    %3388 = vmatprep.subr.mxu0 0.0
    %3389 = vmatpush1.xpose.msra.mxu0 0.0
    %3390 = vmatprep.subr.mxu0 0.0
    %3391 = vmatpush1.xpose.msra.mxu0 0.0
    %3392 = vmatprep.subr.mxu0 0.0
    %3393 = vmatpush1.xpose.msra.mxu0 0.0
    %3394 = vmatprep.subr.mxu0 0.0
    %3395 = vmatpush1.xpose.msra.mxu0 0.0
    %3396 = vmatprep.subr.mxu0 0.0
    %3397 = vmatpush1.xpose.msra.mxu0 0.0
    %3398 = vmatprep.subr.mxu0 0.0
    %3399 = vmatpush1.xpose.msra.mxu0 0.0
    %3400 = vmatprep.subr.mxu0 0.0
    %3401 = vmatpush1.xpose.msra.mxu0 0.0
    %3402 = vmatprep.subr.mxu0 0.0
    %3403 = vmatpush1.xpose.msra.mxu0 0.0
    %3404 = vmatprep.subr.mxu0 0.0
    %3405 = vmatpush1.xpose.msra.mxu0 0.0
    %3406 = vmatprep.subr.mxu0 0.0
    %3407 = vmatpush1.xpose.msra.mxu0 0.0
    %3408 = vmatprep.subr.mxu0 0.0
    %3409 = vmatpush1.xpose.msra.mxu0 0.0
    %3410 = vmatprep.subr.mxu0 0.0
    %3411 = vmatpush1.xpose.msra.mxu0 0.0
    %3412 = vmatprep.subr.mxu0 0.0
    %3413 = vmatpush1.xpose.msra.mxu0 0.0
    %3414 = vmatprep.subr.mxu0 0.0
    %3415 = vmatpush1.xpose.msra.mxu0 0.0
    %3416 = vmatprep.subr.mxu0 0.0
    %3417 = vmatpush1.xpose.msra.mxu0 0.0
    %3418 = vmatprep.subr.mxu0 0.0
    %3419 = vmatpush1.xpose.msra.mxu0 0.0
    %3420 = vmatprep.subr.mxu0 0.0
    %3421 = vmatpush1.xpose.msra.mxu0 0.0
    %3422 = vmatprep.subr.mxu0 0.0
    %3423 = vmatpush1.xpose.msra.mxu0 0.0
    %3424 = vmatprep.subr.mxu0 0.0
    %3425 = vmatpush1.xpose.msra.mxu0 0.0
    %3426 = vmatprep.subr.mxu0 0.0
    %3427 = vmatpush1.xpose.msra.mxu0 0.0
    %3428 = vmatprep.subr.mxu0 0.0
    %3429 = vmatpush1.xpose.msra.mxu0 0.0
    %3430 = vmatprep.subr.mxu0 0.0
    %3431 = vmatpush1.xpose.msra.mxu0 0.0
    %3432 = vmatprep.subr.mxu0 0.0
    %3433 = vmatpush1.xpose.msra.mxu0 0.0
    %3434 = vmatprep.subr.mxu0 0.0
    %3435 = vmatpush1.xpose.msra.mxu0 0.0
    %3436 = vmatprep.subr.mxu0 0.0
    %3437 = vmatpush1.xpose.msra.mxu0 0.0
    %3438 = vmatprep.subr.mxu0 0.0
    %3439 = vmatpush1.xpose.msra.mxu0 0.0
    %3440 = vmatprep.subr.mxu0 0.0
    %3441 = vmatpush1.xpose.msra.mxu0 0.0
    %3442 = vmatprep.subr.mxu0 0.0
    %3443 = vmatpush1.xpose.msra.mxu0 0.0
    %3444 = vmatprep.subr.mxu0 0.0
    %3445 = vmatpush1.xpose.msra.mxu0 0.0
    %3446 = vmatprep.subr.mxu0 0.0
    %3447 = vmatpush1.xpose.msra.mxu0 0.0
    %3448 = vmatprep.subr.mxu0 0.0
    %3449 = vmatpush1.xpose.msra.mxu0 0.0
    %3450 = vmatprep.mubr.f32.mxu0 0.0
    %3451 = vmatmul.mubr.f32.gmra.mrb[0].mxu0 %v3382
    %v3452 = vpop.f32.mrb[0].mxu0
    %v3453 = vadd.f32 %v3378, %v3452
    %v3454 = vpop.f32.mrb[0].mxu0
    %3455 = vdwg.mxu0
    %v3456 = vadd.f32 %v3453, %v3374
    %s3458 = vtos %v3371
    %v3459 = vstv %s3458
    %v3461 = vadd.f32 %v3456, %v3459
    %v3462 = vmul.f32 %v3461, 0.35355338
    %v3463 = vsel %vm73, %v3462, -3.4028235e+38
    %v3464 = vsel %vm230, %v3463, -inf
    %3465 = vmax.xlane.f32.xlu0 %v3464
    %v3466 = vpop.xlane.xlu0 %3465
    %v3467 = vsub.f32 %v3463, %v3466
    %v3468 = vmul.f32 %v3467, 1.442695
    %v3469 = vpow.pop %v3468
    %v3470 = vsel %vm230, %v3469, 0.0
    %3471 = vadd.xlane.f32.xlu0 %v3470
    %v3472 = vpop.xlane.xlu0 %3471
    %v3473 = vrcp.pop %v3472
    %v3474 = vmul.f32 %v3469, %v3473
    %3475 = vrot.lane.b32.xlu0 %v2510, 64
    %v3476 = vpop.permute.xlu0 %3475
    %v3479 = vsel %vm230, %v3474, 0
    %3481 = vmatprep.subr.mxu0 0.0
    %3482 = vmatpush1.msra.mxu0 %v3476
    %3483 = vmatprep.subr.mxu0 0.0
    %3484 = vmatpush1.msra.mxu0 0.0
    %3485 = vmatprep.subr.mxu0 0.0
    %3486 = vmatpush1.msra.mxu0 0.0
    %3487 = vmatprep.subr.mxu0 0.0
    %3488 = vmatpush1.msra.mxu0 0.0
    %3489 = vmatprep.subr.mxu0 0.0
    %3490 = vmatpush1.msra.mxu0 0.0
    %3491 = vmatprep.subr.mxu0 0.0
    %3492 = vmatpush1.msra.mxu0 0.0
    %3493 = vmatprep.subr.mxu0 0.0
    %3494 = vmatpush1.msra.mxu0 0.0
    %3495 = vmatprep.subr.mxu0 0.0
    %3496 = vmatpush1.msra.mxu0 0.0
    %3497 = vmatprep.subr.mxu0 0.0
    %3498 = vmatpush1.msra.mxu0 0.0
    %3499 = vmatprep.subr.mxu0 0.0
    %3500 = vmatpush1.msra.mxu0 0.0
    %3501 = vmatprep.subr.mxu0 0.0
    %3502 = vmatpush1.msra.mxu0 0.0
    %3503 = vmatprep.subr.mxu0 0.0
    %3504 = vmatpush1.msra.mxu0 0.0
    %3505 = vmatprep.subr.mxu0 0.0
    %3506 = vmatpush1.msra.mxu0 0.0
    %3507 = vmatprep.subr.mxu0 0.0
    %3508 = vmatpush1.msra.mxu0 0.0
    %3509 = vmatprep.subr.mxu0 0.0
    %3510 = vmatpush1.msra.mxu0 0.0
    %3511 = vmatprep.subr.mxu0 0.0
    %3512 = vmatpush1.msra.mxu0 0.0
    %3513 = vmatprep.subr.mxu0 0.0
    %3514 = vmatpush1.msra.mxu0 0.0
    %3515 = vmatprep.subr.mxu0 0.0
    %3516 = vmatpush1.msra.mxu0 0.0
    %3517 = vmatprep.subr.mxu0 0.0
    %3518 = vmatpush1.msra.mxu0 0.0
    %3519 = vmatprep.subr.mxu0 0.0
    %3520 = vmatpush1.msra.mxu0 0.0
    %3521 = vmatprep.subr.mxu0 0.0
    %3522 = vmatpush1.msra.mxu0 0.0
    %3523 = vmatprep.subr.mxu0 0.0
    %3524 = vmatpush1.msra.mxu0 0.0
    %3525 = vmatprep.subr.mxu0 0.0
    %3526 = vmatpush1.msra.mxu0 0.0
    %3527 = vmatprep.subr.mxu0 0.0
    %3528 = vmatpush1.msra.mxu0 0.0
    %3529 = vmatprep.subr.mxu0 0.0
    %3530 = vmatpush1.msra.mxu0 0.0
    %3531 = vmatprep.subr.mxu0 0.0
    %3532 = vmatpush1.msra.mxu0 0.0
    %3533 = vmatprep.subr.mxu0 0.0
    %3534 = vmatpush1.msra.mxu0 0.0
    %3535 = vmatprep.subr.mxu0 0.0
    %3536 = vmatpush1.msra.mxu0 0.0
    %3537 = vmatprep.subr.mxu0 0.0
    %3538 = vmatpush1.msra.mxu0 0.0
    %3539 = vmatprep.subr.mxu0 0.0
    %3540 = vmatpush1.msra.mxu0 0.0
    %3541 = vmatprep.subr.mxu0 0.0
    %3542 = vmatpush1.msra.mxu0 0.0
    %3543 = vmatprep.subr.mxu0 0.0
    %3544 = vmatpush1.msra.mxu0 0.0
    %3545 = vmatprep.mubr.f32.mxu0 0.0
    %3546 = vmatmul.mubr.f32.gmra.mrb[0].mxu0 %v3479
    %v3547 = vpop.f32.mrb[0].mxu0
    %v3548 = vadd.f32 0.0, %v3547
    %v3549 = vpop.f32.mrb[0].mxu0
    %3550 = vdwg.mxu0
    %3552 = vrot.lane.b32.xlu0 %v3369, 120
    %v3553 = vpop.permute.xlu0 %3552
    %v3555 = vsel %vm230, %v3553, 0.0
    %3556 = vadd.xlane.f32.xlu0 %v3555
    %v3557 = vpop.xlane.xlu0 %3556
    %v3558 = vlaneseq
    %v3559 = vshrl.u32 %v3558, 7
    %v3560 = vsub.s32 1, %v3559
    %v3561 = vrot.slane %v3358, %v3560
    %3562 = vrot.lane.b32.xlu0 %v2510, 120
    %v3563 = vpop.permute.xlu0 %3562
    %3564 = vrot.lane.b32.xlu0 %v2510, 88
    %v3565 = vpop.permute.xlu0 %3564
    %v3566 = vsel %vm230, %v3563, 0
    %v3568 = vsel %vm230, %v3565, 0
    %3570 = vmatprep.subr.mxu0 0.0
    %3571 = vmatpush1.xpose.msra.mxu0 %v3568
    %3572 = vmatprep.subr.mxu0 0.0
    %3573 = vmatpush1.xpose.msra.mxu0 0.0
    %3574 = vmatprep.subr.mxu0 0.0
    %3575 = vmatpush1.xpose.msra.mxu0 0.0
    %3576 = vmatprep.subr.mxu0 0.0
    %3577 = vmatpush1.xpose.msra.mxu0 0.0
    %3578 = vmatprep.subr.mxu0 0.0
    %3579 = vmatpush1.xpose.msra.mxu0 0.0
    %3580 = vmatprep.subr.mxu0 0.0
    %3581 = vmatpush1.xpose.msra.mxu0 0.0
    %3582 = vmatprep.subr.mxu0 0.0
    %3583 = vmatpush1.xpose.msra.mxu0 0.0
    %3584 = vmatprep.subr.mxu0 0.0
    %3585 = vmatpush1.xpose.msra.mxu0 0.0
    %3586 = vmatprep.subr.mxu0 0.0
    %3587 = vmatpush1.xpose.msra.mxu0 0.0
    %3588 = vmatprep.subr.mxu0 0.0
    %3589 = vmatpush1.xpose.msra.mxu0 0.0
    %3590 = vmatprep.subr.mxu0 0.0
    %3591 = vmatpush1.xpose.msra.mxu0 0.0
    %3592 = vmatprep.subr.mxu0 0.0
    %3593 = vmatpush1.xpose.msra.mxu0 0.0
    %3594 = vmatprep.subr.mxu0 0.0
    %3595 = vmatpush1.xpose.msra.mxu0 0.0
    %3596 = vmatprep.subr.mxu0 0.0
    %3597 = vmatpush1.xpose.msra.mxu0 0.0
    %3598 = vmatprep.subr.mxu0 0.0
    %3599 = vmatpush1.xpose.msra.mxu0 0.0
    %3600 = vmatprep.subr.mxu0 0.0
    %3601 = vmatpush1.xpose.msra.mxu0 0.0
    %3602 = vmatprep.subr.mxu0 0.0
    %3603 = vmatpush1.xpose.msra.mxu0 0.0
    %3604 = vmatprep.subr.mxu0 0.0
    %3605 = vmatpush1.xpose.msra.mxu0 0.0
    %3606 = vmatprep.subr.mxu0 0.0
    %3607 = vmatpush1.xpose.msra.mxu0 0.0
    %3608 = vmatprep.subr.mxu0 0.0
    %3609 = vmatpush1.xpose.msra.mxu0 0.0
    %3610 = vmatprep.subr.mxu0 0.0
    %3611 = vmatpush1.xpose.msra.mxu0 0.0
    %3612 = vmatprep.subr.mxu0 0.0
    %3613 = vmatpush1.xpose.msra.mxu0 0.0
    %3614 = vmatprep.subr.mxu0 0.0
    %3615 = vmatpush1.xpose.msra.mxu0 0.0
    %3616 = vmatprep.subr.mxu0 0.0
    %3617 = vmatpush1.xpose.msra.mxu0 0.0
    %3618 = vmatprep.subr.mxu0 0.0
    %3619 = vmatpush1.xpose.msra.mxu0 0.0
    %3620 = vmatprep.subr.mxu0 0.0
    %3621 = vmatpush1.xpose.msra.mxu0 0.0
    %3622 = vmatprep.subr.mxu0 0.0
    %3623 = vmatpush1.xpose.msra.mxu0 0.0
    %3624 = vmatprep.subr.mxu0 0.0
    %3625 = vmatpush1.xpose.msra.mxu0 0.0
    %3626 = vmatprep.subr.mxu0 0.0
    %3627 = vmatpush1.xpose.msra.mxu0 0.0
    %3628 = vmatprep.subr.mxu0 0.0
    %3629 = vmatpush1.xpose.msra.mxu0 0.0
    %3630 = vmatprep.subr.mxu0 0.0
    %3631 = vmatpush1.xpose.msra.mxu0 0.0
    %3632 = vmatprep.subr.mxu0 0.0
    %3633 = vmatpush1.xpose.msra.mxu0 0.0
    %3634 = vmatprep.mubr.f32.mxu0 0.0
    %3635 = vmatmul.mubr.f32.gmra.mrb[0].mxu0 %v3566
    %v3636 = vpop.f32.mrb[0].mxu0
    %v3637 = vadd.f32 %v3561, %v3636
    %v3638 = vpop.f32.mrb[0].mxu0
    %3639 = vdwg.mxu0
    %v3640 = vadd.f32 %v3637, %v3557
    %v3641 = vrot.slane %v3371, 1
    %s3642 = vtos %v3641
    %v3643 = vstv %s3642
    %v3645 = vadd.f32 %v3640, %v3643
    %v3646 = vmul.f32 %v3645, 0.35355338
    %v3647 = vsel %vm73, %v3646, -3.4028235e+38
    %v3648 = vsel %vm230, %v3647, -inf
    %3649 = vmax.xlane.f32.xlu0 %v3648
    %v3650 = vpop.xlane.xlu0 %3649
    %v3651 = vsub.f32 %v3647, %v3650
    %v3652 = vmul.f32 %v3651, 1.442695
    %v3653 = vpow.pop %v3652
    %v3654 = vsel %vm230, %v3653, 0.0
    %3655 = vadd.xlane.f32.xlu0 %v3654
    %v3656 = vpop.xlane.xlu0 %3655
    %v3657 = vrcp.pop %v3656
    %v3658 = vmul.f32 %v3653, %v3657
    %3659 = vrot.lane.b32.xlu0 %v2510, 56
    %v3660 = vpop.permute.xlu0 %3659
    %v3663 = vsel %vm230, %v3658, 0
    %3665 = vmatprep.subr.mxu0 0.0
    %3666 = vmatpush1.msra.mxu0 %v3660
    %3667 = vmatprep.subr.mxu0 0.0
    %3668 = vmatpush1.msra.mxu0 0.0
    %3669 = vmatprep.subr.mxu0 0.0
    %3670 = vmatpush1.msra.mxu0 0.0
    %3671 = vmatprep.subr.mxu0 0.0
    %3672 = vmatpush1.msra.mxu0 0.0
    %3673 = vmatprep.subr.mxu0 0.0
    %3674 = vmatpush1.msra.mxu0 0.0
    %3675 = vmatprep.subr.mxu0 0.0
    %3676 = vmatpush1.msra.mxu0 0.0
    %3677 = vmatprep.subr.mxu0 0.0
    %3678 = vmatpush1.msra.mxu0 0.0
    %3679 = vmatprep.subr.mxu0 0.0
    %3680 = vmatpush1.msra.mxu0 0.0
    %3681 = vmatprep.subr.mxu0 0.0
    %3682 = vmatpush1.msra.mxu0 0.0
    %3683 = vmatprep.subr.mxu0 0.0
    %3684 = vmatpush1.msra.mxu0 0.0
    %3685 = vmatprep.subr.mxu0 0.0
    %3686 = vmatpush1.msra.mxu0 0.0
    %3687 = vmatprep.subr.mxu0 0.0
    %3688 = vmatpush1.msra.mxu0 0.0
    %3689 = vmatprep.subr.mxu0 0.0
    %3690 = vmatpush1.msra.mxu0 0.0
    %3691 = vmatprep.subr.mxu0 0.0
    %3692 = vmatpush1.msra.mxu0 0.0
    %3693 = vmatprep.subr.mxu0 0.0
    %3694 = vmatpush1.msra.mxu0 0.0
    %3695 = vmatprep.subr.mxu0 0.0
    %3696 = vmatpush1.msra.mxu0 0.0
    %3697 = vmatprep.subr.mxu0 0.0
    %3698 = vmatpush1.msra.mxu0 0.0
    %3699 = vmatprep.subr.mxu0 0.0
    %3700 = vmatpush1.msra.mxu0 0.0
    %3701 = vmatprep.subr.mxu0 0.0
    %3702 = vmatpush1.msra.mxu0 0.0
    %3703 = vmatprep.subr.mxu0 0.0
    %3704 = vmatpush1.msra.mxu0 0.0
    %3705 = vmatprep.subr.mxu0 0.0
    %3706 = vmatpush1.msra.mxu0 0.0
    %3707 = vmatprep.subr.mxu0 0.0
    %3708 = vmatpush1.msra.mxu0 0.0
    %3709 = vmatprep.subr.mxu0 0.0
    %3710 = vmatpush1.msra.mxu0 0.0
    %3711 = vmatprep.subr.mxu0 0.0
    %3712 = vmatpush1.msra.mxu0 0.0
    %3713 = vmatprep.subr.mxu0 0.0
    %3714 = vmatpush1.msra.mxu0 0.0
    %3715 = vmatprep.subr.mxu0 0.0
    %3716 = vmatpush1.msra.mxu0 0.0
    %3717 = vmatprep.subr.mxu0 0.0
    %3718 = vmatpush1.msra.mxu0 0.0
    %3719 = vmatprep.subr.mxu0 0.0
    %3720 = vmatpush1.msra.mxu0 0.0
    %3721 = vmatprep.subr.mxu0 0.0
    %3722 = vmatpush1.msra.mxu0 0.0
    %3723 = vmatprep.subr.mxu0 0.0
    %3724 = vmatpush1.msra.mxu0 0.0
    %3725 = vmatprep.subr.mxu0 0.0
    %3726 = vmatpush1.msra.mxu0 0.0
    %3727 = vmatprep.subr.mxu0 0.0
    %3728 = vmatpush1.msra.mxu0 0.0
    %3729 = vmatprep.mubr.f32.mxu0 0.0
    %3730 = vmatmul.mubr.f32.gmra.mrb[0].mxu0 %v3663
    %v3731 = vpop.f32.mrb[0].mxu0
    %v3732 = vadd.f32 0.0, %v3731
    %v3733 = vpop.f32.mrb[0].mxu0
    %3734 = vdwg.mxu0
    %3735 = vrot.lane.b32.xlu0 %v3369, 112
    %v3736 = vpop.permute.xlu0 %3735
    %v3738 = vsel %vm230, %v3736, 0.0
    %3739 = vadd.xlane.f32.xlu0 %v3738
    %v3740 = vpop.xlane.xlu0 %3739
    %v3741 = vlaneseq
    %v3742 = vshrl.u32 %v3741, 7
    %v3743 = vsub.s32 2, %v3742
    %v3744 = vrot.slane %v3358, %v3743
    %3745 = vrot.lane.b32.xlu0 %v2510, 112
    %v3746 = vpop.permute.xlu0 %3745
    %3747 = vrot.lane.b32.xlu0 %v2510, 80
    %v3748 = vpop.permute.xlu0 %3747
    %v3749 = vsel %vm230, %v3746, 0
    %v3751 = vsel %vm230, %v3748, 0
    %3753 = vmatprep.subr.mxu0 0.0
    %3754 = vmatpush1.xpose.msra.mxu0 %v3751
    %3755 = vmatprep.subr.mxu0 0.0
    %3756 = vmatpush1.xpose.msra.mxu0 0.0
    %3757 = vmatprep.subr.mxu0 0.0
    %3758 = vmatpush1.xpose.msra.mxu0 0.0
    %3759 = vmatprep.subr.mxu0 0.0
    %3760 = vmatpush1.xpose.msra.mxu0 0.0
    %3761 = vmatprep.subr.mxu0 0.0
    %3762 = vmatpush1.xpose.msra.mxu0 0.0
    %3763 = vmatprep.subr.mxu0 0.0
    %3764 = vmatpush1.xpose.msra.mxu0 0.0
    %3765 = vmatprep.subr.mxu0 0.0
    %3766 = vmatpush1.xpose.msra.mxu0 0.0
    %3767 = vmatprep.subr.mxu0 0.0
    %3768 = vmatpush1.xpose.msra.mxu0 0.0
    %3769 = vmatprep.subr.mxu0 0.0
    %3770 = vmatpush1.xpose.msra.mxu0 0.0
    %3771 = vmatprep.subr.mxu0 0.0
    %3772 = vmatpush1.xpose.msra.mxu0 0.0
    %3773 = vmatprep.subr.mxu0 0.0
    %3774 = vmatpush1.xpose.msra.mxu0 0.0
    %3775 = vmatprep.subr.mxu0 0.0
    %3776 = vmatpush1.xpose.msra.mxu0 0.0
    %3777 = vmatprep.subr.mxu0 0.0
    %3778 = vmatpush1.xpose.msra.mxu0 0.0
    %3779 = vmatprep.subr.mxu0 0.0
    %3780 = vmatpush1.xpose.msra.mxu0 0.0
    %3781 = vmatprep.subr.mxu0 0.0
    %3782 = vmatpush1.xpose.msra.mxu0 0.0
    %3783 = vmatprep.subr.mxu0 0.0
    %3784 = vmatpush1.xpose.msra.mxu0 0.0
    %3785 = vmatprep.subr.mxu0 0.0
    %3786 = vmatpush1.xpose.msra.mxu0 0.0
    %3787 = vmatprep.subr.mxu0 0.0
    %3788 = vmatpush1.xpose.msra.mxu0 0.0
    %3789 = vmatprep.subr.mxu0 0.0
    %3790 = vmatpush1.xpose.msra.mxu0 0.0
    %3791 = vmatprep.subr.mxu0 0.0
    %3792 = vmatpush1.xpose.msra.mxu0 0.0
    %3793 = vmatprep.subr.mxu0 0.0
    %3794 = vmatpush1.xpose.msra.mxu0 0.0
    %3795 = vmatprep.subr.mxu0 0.0
    %3796 = vmatpush1.xpose.msra.mxu0 0.0
    %3797 = vmatprep.subr.mxu0 0.0
    %3798 = vmatpush1.xpose.msra.mxu0 0.0
    %3799 = vmatprep.subr.mxu0 0.0
    %3800 = vmatpush1.xpose.msra.mxu0 0.0
    %3801 = vmatprep.subr.mxu0 0.0
    %3802 = vmatpush1.xpose.msra.mxu0 0.0
    %3803 = vmatprep.subr.mxu0 0.0
    %3804 = vmatpush1.xpose.msra.mxu0 0.0
    %3805 = vmatprep.subr.mxu0 0.0
    %3806 = vmatpush1.xpose.msra.mxu0 0.0
    %3807 = vmatprep.subr.mxu0 0.0
    %3808 = vmatpush1.xpose.msra.mxu0 0.0
    %3809 = vmatprep.subr.mxu0 0.0
    %3810 = vmatpush1.xpose.msra.mxu0 0.0
    %3811 = vmatprep.subr.mxu0 0.0
    %3812 = vmatpush1.xpose.msra.mxu0 0.0
    %3813 = vmatprep.subr.mxu0 0.0
    %3814 = vmatpush1.xpose.msra.mxu0 0.0
    %3815 = vmatprep.subr.mxu0 0.0
    %3816 = vmatpush1.xpose.msra.mxu0 0.0
    %3817 = vmatprep.mubr.f32.mxu0 0.0
    %3818 = vmatmul.mubr.f32.gmra.mrb[0].mxu0 %v3749
    %v3819 = vpop.f32.mrb[0].mxu0
    %v3820 = vadd.f32 %v3744, %v3819
    %v3821 = vpop.f32.mrb[0].mxu0
    %3822 = vdwg.mxu0
    %v3823 = vadd.f32 %v3820, %v3740
    %v3824 = vrot.slane %v3371, 2
    %s3825 = vtos %v3824
    %v3826 = vstv %s3825
    %v3828 = vadd.f32 %v3823, %v3826
    %v3829 = vmul.f32 %v3828, 0.35355338
    %v3830 = vsel %vm73, %v3829, -3.4028235e+38
    %v3831 = vsel %vm230, %v3830, -inf
    %3832 = vmax.xlane.f32.xlu0 %v3831
    %v3833 = vpop.xlane.xlu0 %3832
    %v3834 = vsub.f32 %v3830, %v3833
    %v3835 = vmul.f32 %v3834, 1.442695
    %v3836 = vpow.pop %v3835
    %v3837 = vsel %vm230, %v3836, 0.0
    %3838 = vadd.xlane.f32.xlu0 %v3837
    %v3839 = vpop.xlane.xlu0 %3838
    %v3840 = vrcp.pop %v3839
    %v3841 = vmul.f32 %v3836, %v3840
    %3842 = vrot.lane.b32.xlu0 %v2510, 48
    %v3843 = vpop.permute.xlu0 %3842
    %v3846 = vsel %vm230, %v3841, 0
    %3848 = vmatprep.subr.mxu0 0.0
    %3849 = vmatpush1.msra.mxu0 %v3843
    %3850 = vmatprep.subr.mxu0 0.0
    %3851 = vmatpush1.msra.mxu0 0.0
    %3852 = vmatprep.subr.mxu0 0.0
    %3853 = vmatpush1.msra.mxu0 0.0
    %3854 = vmatprep.subr.mxu0 0.0
    %3855 = vmatpush1.msra.mxu0 0.0
    %3856 = vmatprep.subr.mxu0 0.0
    %3857 = vmatpush1.msra.mxu0 0.0
    %3858 = vmatprep.subr.mxu0 0.0
    %3859 = vmatpush1.msra.mxu0 0.0
    %3860 = vmatprep.subr.mxu0 0.0
    %3861 = vmatpush1.msra.mxu0 0.0
    %3862 = vmatprep.subr.mxu0 0.0
    %3863 = vmatpush1.msra.mxu0 0.0
    %3864 = vmatprep.subr.mxu0 0.0
    %3865 = vmatpush1.msra.mxu0 0.0
    %3866 = vmatprep.subr.mxu0 0.0
    %3867 = vmatpush1.msra.mxu0 0.0
    %3868 = vmatprep.subr.mxu0 0.0
    %3869 = vmatpush1.msra.mxu0 0.0
    %3870 = vmatprep.subr.mxu0 0.0
    %3871 = vmatpush1.msra.mxu0 0.0
    %3872 = vmatprep.subr.mxu0 0.0
    %3873 = vmatpush1.msra.mxu0 0.0
    %3874 = vmatprep.subr.mxu0 0.0
    %3875 = vmatpush1.msra.mxu0 0.0
    %3876 = vmatprep.subr.mxu0 0.0
    %3877 = vmatpush1.msra.mxu0 0.0
    %3878 = vmatprep.subr.mxu0 0.0
    %3879 = vmatpush1.msra.mxu0 0.0
    %3880 = vmatprep.subr.mxu0 0.0
    %3881 = vmatpush1.msra.mxu0 0.0
    %3882 = vmatprep.subr.mxu0 0.0
    %3883 = vmatpush1.msra.mxu0 0.0
    %3884 = vmatprep.subr.mxu0 0.0
    %3885 = vmatpush1.msra.mxu0 0.0
    %3886 = vmatprep.subr.mxu0 0.0
    %3887 = vmatpush1.msra.mxu0 0.0
    %3888 = vmatprep.subr.mxu0 0.0
    %3889 = vmatpush1.msra.mxu0 0.0
    %3890 = vmatprep.subr.mxu0 0.0
    %3891 = vmatpush1.msra.mxu0 0.0
    %3892 = vmatprep.subr.mxu0 0.0
    %3893 = vmatpush1.msra.mxu0 0.0
    %3894 = vmatprep.subr.mxu0 0.0
    %3895 = vmatpush1.msra.mxu0 0.0
    %3896 = vmatprep.subr.mxu0 0.0
    %3897 = vmatpush1.msra.mxu0 0.0
    %3898 = vmatprep.subr.mxu0 0.0
    %3899 = vmatpush1.msra.mxu0 0.0
    %3900 = vmatprep.subr.mxu0 0.0
    %3901 = vmatpush1.msra.mxu0 0.0
    %3902 = vmatprep.subr.mxu0 0.0
    %3903 = vmatpush1.msra.mxu0 0.0
    %3904 = vmatprep.subr.mxu0 0.0
    %3905 = vmatpush1.msra.mxu0 0.0
    %3906 = vmatprep.subr.mxu0 0.0
    %3907 = vmatpush1.msra.mxu0 0.0
    %3908 = vmatprep.subr.mxu0 0.0
    %3909 = vmatpush1.msra.mxu0 0.0
    %3910 = vmatprep.subr.mxu0 0.0
    %3911 = vmatpush1.msra.mxu0 0.0
    %3912 = vmatprep.mubr.f32.mxu0 0.0
    %3913 = vmatmul.mubr.f32.gmra.mrb[0].mxu0 %v3846
    %v3914 = vpop.f32.mrb[0].mxu0
    %v3915 = vadd.f32 0.0, %v3914
    %v3916 = vpop.f32.mrb[0].mxu0
    %3917 = vdwg.mxu0
    %3918 = vrot.lane.b32.xlu0 %v3369, 104
    %v3919 = vpop.permute.xlu0 %3918
    %v3921 = vsel %vm230, %v3919, 0.0
    %3922 = vadd.xlane.f32.xlu0 %v3921
    %v3923 = vpop.xlane.xlu0 %3922
    %v3924 = vlaneseq
    %v3925 = vshrl.u32 %v3924, 7
    %v3926 = vsub.s32 3, %v3925
    %v3927 = vrot.slane %v3358, %v3926
    %3928 = vrot.lane.b32.xlu0 %v2510, 104
    %v3929 = vpop.permute.xlu0 %3928
    %3930 = vrot.lane.b32.xlu0 %v2510, 72
    %v3931 = vpop.permute.xlu0 %3930
    %v3932 = vsel %vm230, %v3929, 0
    %v3934 = vsel %vm230, %v3931, 0
    %3936 = vmatprep.subr.mxu0 0.0
    %3937 = vmatpush1.xpose.msra.mxu0 %v3934
    %3938 = vmatprep.subr.mxu0 0.0
    %3939 = vmatpush1.xpose.msra.mxu0 0.0
    %3940 = vmatprep.subr.mxu0 0.0
    %3941 = vmatpush1.xpose.msra.mxu0 0.0
    %3942 = vmatprep.subr.mxu0 0.0
    %3943 = vmatpush1.xpose.msra.mxu0 0.0
    %3944 = vmatprep.subr.mxu0 0.0
    %3945 = vmatpush1.xpose.msra.mxu0 0.0
    %3946 = vmatprep.subr.mxu0 0.0
    %3947 = vmatpush1.xpose.msra.mxu0 0.0
    %3948 = vmatprep.subr.mxu0 0.0
    %3949 = vmatpush1.xpose.msra.mxu0 0.0
    %3950 = vmatprep.subr.mxu0 0.0
    %3951 = vmatpush1.xpose.msra.mxu0 0.0
    %3952 = vmatprep.subr.mxu0 0.0
    %3953 = vmatpush1.xpose.msra.mxu0 0.0
    %3954 = vmatprep.subr.mxu0 0.0
    %3955 = vmatpush1.xpose.msra.mxu0 0.0
    %3956 = vmatprep.subr.mxu0 0.0
    %3957 = vmatpush1.xpose.msra.mxu0 0.0
    %3958 = vmatprep.subr.mxu0 0.0
    %3959 = vmatpush1.xpose.msra.mxu0 0.0
    %3960 = vmatprep.subr.mxu0 0.0
    %3961 = vmatpush1.xpose.msra.mxu0 0.0
    %3962 = vmatprep.subr.mxu0 0.0
    %3963 = vmatpush1.xpose.msra.mxu0 0.0
    %3964 = vmatprep.subr.mxu0 0.0
    %3965 = vmatpush1.xpose.msra.mxu0 0.0
    %3966 = vmatprep.subr.mxu0 0.0
    %3967 = vmatpush1.xpose.msra.mxu0 0.0
    %3968 = vmatprep.subr.mxu0 0.0
    %3969 = vmatpush1.xpose.msra.mxu0 0.0
    %3970 = vmatprep.subr.mxu0 0.0
    %3971 = vmatpush1.xpose.msra.mxu0 0.0
    %3972 = vmatprep.subr.mxu0 0.0
    %3973 = vmatpush1.xpose.msra.mxu0 0.0
    %3974 = vmatprep.subr.mxu0 0.0
    %3975 = vmatpush1.xpose.msra.mxu0 0.0
    %3976 = vmatprep.subr.mxu0 0.0
    %3977 = vmatpush1.xpose.msra.mxu0 0.0
    %3978 = vmatprep.subr.mxu0 0.0
    %3979 = vmatpush1.xpose.msra.mxu0 0.0
    %3980 = vmatprep.subr.mxu0 0.0
    %3981 = vmatpush1.xpose.msra.mxu0 0.0
    %3982 = vmatprep.subr.mxu0 0.0
    %3983 = vmatpush1.xpose.msra.mxu0 0.0
    %3984 = vmatprep.subr.mxu0 0.0
    %3985 = vmatpush1.xpose.msra.mxu0 0.0
    %3986 = vmatprep.subr.mxu0 0.0
    %3987 = vmatpush1.xpose.msra.mxu0 0.0
    %3988 = vmatprep.subr.mxu0 0.0
    %3989 = vmatpush1.xpose.msra.mxu0 0.0
    %3990 = vmatprep.subr.mxu0 0.0
    %3991 = vmatpush1.xpose.msra.mxu0 0.0
    %3992 = vmatprep.subr.mxu0 0.0
    %3993 = vmatpush1.xpose.msra.mxu0 0.0
    %3994 = vmatprep.subr.mxu0 0.0
    %3995 = vmatpush1.xpose.msra.mxu0 0.0
    %3996 = vmatprep.subr.mxu0 0.0
    %3997 = vmatpush1.xpose.msra.mxu0 0.0
    %3998 = vmatprep.subr.mxu0 0.0
    %3999 = vmatpush1.xpose.msra.mxu0 0.0
    %4000 = vmatprep.mubr.f32.mxu0 0.0
    %4001 = vmatmul.mubr.f32.gmra.mrb[0].mxu0 %v3932
    %v4002 = vpop.f32.mrb[0].mxu0
    %v4003 = vadd.f32 %v3927, %v4002
    %v4004 = vpop.f32.mrb[0].mxu0
    %4005 = vdwg.mxu0
    %v4006 = vadd.f32 %v4003, %v3923
    %v4007 = vrot.slane %v3371, 3
    %s4008 = vtos %v4007
    %v4009 = vstv %s4008
    %v4011 = vadd.f32 %v4006, %v4009
    %v4012 = vmul.f32 %v4011, 0.35355338
    %v4013 = vsel %vm73, %v4012, -3.4028235e+38
    %v4014 = vsel %vm230, %v4013, -inf
    %4015 = vmax.xlane.f32.xlu0 %v4014
    %v4016 = vpop.xlane.xlu0 %4015
    %v4017 = vsub.f32 %v4013, %v4016
    %v4018 = vmul.f32 %v4017, 1.442695
    %v4019 = vpow.pop %v4018
    %v4020 = vsel %vm230, %v4019, 0.0
    %4021 = vadd.xlane.f32.xlu0 %v4020
    %v4022 = vpop.xlane.xlu0 %4021
    %v4023 = vrcp.pop %v4022
    %v4024 = vmul.f32 %v4019, %v4023
    %4025 = vrot.lane.b32.xlu0 %v2510, 40
    %v4026 = vpop.permute.xlu0 %4025
    %v4029 = vsel %vm230, %v4024, 0
    %4031 = vmatprep.subr.mxu0 0.0
    %4032 = vmatpush1.msra.mxu0 %v4026
    %4033 = vmatprep.subr.mxu0 0.0
    %4034 = vmatpush1.msra.mxu0 0.0
    %4035 = vmatprep.subr.mxu0 0.0
    %4036 = vmatpush1.msra.mxu0 0.0
    %4037 = vmatprep.subr.mxu0 0.0
    %4038 = vmatpush1.msra.mxu0 0.0
    %4039 = vmatprep.subr.mxu0 0.0
    %4040 = vmatpush1.msra.mxu0 0.0
    %4041 = vmatprep.subr.mxu0 0.0
    %4042 = vmatpush1.msra.mxu0 0.0
    %4043 = vmatprep.subr.mxu0 0.0
    %4044 = vmatpush1.msra.mxu0 0.0
    %4045 = vmatprep.subr.mxu0 0.0
    %4046 = vmatpush1.msra.mxu0 0.0
    %4047 = vmatprep.subr.mxu0 0.0
    %4048 = vmatpush1.msra.mxu0 0.0
    %4049 = vmatprep.subr.mxu0 0.0
    %4050 = vmatpush1.msra.mxu0 0.0
    %4051 = vmatprep.subr.mxu0 0.0
    %4052 = vmatpush1.msra.mxu0 0.0
    %4053 = vmatprep.subr.mxu0 0.0
    %4054 = vmatpush1.msra.mxu0 0.0
    %4055 = vmatprep.subr.mxu0 0.0
    %4056 = vmatpush1.msra.mxu0 0.0
    %4057 = vmatprep.subr.mxu0 0.0
    %4058 = vmatpush1.msra.mxu0 0.0
    %4059 = vmatprep.subr.mxu0 0.0
    %4060 = vmatpush1.msra.mxu0 0.0
    %4061 = vmatprep.subr.mxu0 0.0
    %4062 = vmatpush1.msra.mxu0 0.0
    %4063 = vmatprep.subr.mxu0 0.0
    %4064 = vmatpush1.msra.mxu0 0.0
    %4065 = vmatprep.subr.mxu0 0.0
    %4066 = vmatpush1.msra.mxu0 0.0
    %4067 = vmatprep.subr.mxu0 0.0
    %4068 = vmatpush1.msra.mxu0 0.0
    %4069 = vmatprep.subr.mxu0 0.0
    %4070 = vmatpush1.msra.mxu0 0.0
    %4071 = vmatprep.subr.mxu0 0.0
    %4072 = vmatpush1.msra.mxu0 0.0
    %4073 = vmatprep.subr.mxu0 0.0
    %4074 = vmatpush1.msra.mxu0 0.0
    %4075 = vmatprep.subr.mxu0 0.0
    %4076 = vmatpush1.msra.mxu0 0.0
    %4077 = vmatprep.subr.mxu0 0.0
    %4078 = vmatpush1.msra.mxu0 0.0
    %4079 = vmatprep.subr.mxu0 0.0
    %4080 = vmatpush1.msra.mxu0 0.0
    %4081 = vmatprep.subr.mxu0 0.0
    %4082 = vmatpush1.msra.mxu0 0.0
    %4083 = vmatprep.subr.mxu0 0.0
    %4084 = vmatpush1.msra.mxu0 0.0
    %4085 = vmatprep.subr.mxu0 0.0
    %4086 = vmatpush1.msra.mxu0 0.0
    %4087 = vmatprep.subr.mxu0 0.0
    %4088 = vmatpush1.msra.mxu0 0.0
    %4089 = vmatprep.subr.mxu0 0.0
    %4090 = vmatpush1.msra.mxu0 0.0
    %4091 = vmatprep.subr.mxu0 0.0
    %4092 = vmatpush1.msra.mxu0 0.0
    %4093 = vmatprep.subr.mxu0 0.0
    %4094 = vmatpush1.msra.mxu0 0.0
    %4095 = vmatprep.mubr.f32.mxu0 0.0
    %4096 = vmatmul.mubr.f32.gmra.mrb[0].mxu0 %v4029
    %v4097 = vpop.f32.mrb[0].mxu0
    %v4098 = vadd.f32 0.0, %v4097
    %v4099 = vpop.f32.mrb[0].mxu0
    %4100 = vdwg.mxu0
    %4102 = vrot.lane.b32.xlu0 %v3732, 8
    %v4103 = vpop.permute.xlu0 %4102
    %4106 = vrot.lane.b32.xlu0 %v3915, 16
    %v4107 = vpop.permute.xlu0 %4106
    %4110 = vrot.lane.b32.xlu0 %v4098, 24
    %v4111 = vpop.permute.xlu0 %4110
    %v4113 = vsel %vm230, %v3548, %v4103
    %v4114 = vsel %vm918, %v4113, %v4107
    %v4115 = vsel %vm920, %v4114, %v4111
    %s4116 = scalar_lea.vmem %s17, 1
    %v4117 = vld [vmem:[%s4116] sm:$0x1]
    %v4119 = vlaneseq
    %v4120 = vshrl.u32 %v4119, 7
    %v4121 = vsub.s32 0, %v4120
    %v4122 = vrot.slane %v4117, %v4121
    %v4125 = vsel %vm118, %v4115, 0
    %4127 = vmatprep.subr.mxu0 0.0
    %4128 = vmatpush1.msra.mxu0 %v2394
    %4129 = vmatprep.subr.mxu0 0.0
    %4130 = vmatpush1.msra.mxu0 %v2395
    %4131 = vmatprep.subr.mxu0 0.0
    %4132 = vmatpush1.msra.mxu0 %v2396
    %4133 = vmatprep.subr.mxu0 0.0
    %4134 = vmatpush1.msra.mxu0 %v2397
    %4135 = vmatprep.subr.mxu0 0.0
    %4136 = vmatpush1.msra.mxu0 0.0
    %4137 = vmatprep.subr.mxu0 0.0
    %4138 = vmatpush1.msra.mxu0 0.0
    %4139 = vmatprep.subr.mxu0 0.0
    %4140 = vmatpush1.msra.mxu0 0.0
    %4141 = vmatprep.subr.mxu0 0.0
    %4142 = vmatpush1.msra.mxu0 0.0
    %4143 = vmatprep.subr.mxu0 0.0
    %4144 = vmatpush1.msra.mxu0 0.0
    %4145 = vmatprep.subr.mxu0 0.0
    %4146 = vmatpush1.msra.mxu0 0.0
    %4147 = vmatprep.subr.mxu0 0.0
    %4148 = vmatpush1.msra.mxu0 0.0
    %4149 = vmatprep.subr.mxu0 0.0
    %4150 = vmatpush1.msra.mxu0 0.0
    %4151 = vmatprep.subr.mxu0 0.0
    %4152 = vmatpush1.msra.mxu0 0.0
    %4153 = vmatprep.subr.mxu0 0.0
    %4154 = vmatpush1.msra.mxu0 0.0
    %4155 = vmatprep.subr.mxu0 0.0
    %4156 = vmatpush1.msra.mxu0 0.0
    %4157 = vmatprep.subr.mxu0 0.0
    %4158 = vmatpush1.msra.mxu0 0.0
    %4159 = vmatprep.subr.mxu0 0.0
    %4160 = vmatpush1.msra.mxu0 0.0
    %4161 = vmatprep.subr.mxu0 0.0
    %4162 = vmatpush1.msra.mxu0 0.0
    %4163 = vmatprep.subr.mxu0 0.0
    %4164 = vmatpush1.msra.mxu0 0.0
    %4165 = vmatprep.subr.mxu0 0.0
    %4166 = vmatpush1.msra.mxu0 0.0
    %4167 = vmatprep.subr.mxu0 0.0
    %4168 = vmatpush1.msra.mxu0 0.0
    %4169 = vmatprep.subr.mxu0 0.0
    %4170 = vmatpush1.msra.mxu0 0.0
    %4171 = vmatprep.subr.mxu0 0.0
    %4172 = vmatpush1.msra.mxu0 0.0
    %4173 = vmatprep.subr.mxu0 0.0
    %4174 = vmatpush1.msra.mxu0 0.0
    %4175 = vmatprep.subr.mxu0 0.0
    %4176 = vmatpush1.msra.mxu0 0.0
    %4177 = vmatprep.subr.mxu0 0.0
    %4178 = vmatpush1.msra.mxu0 0.0
    %4179 = vmatprep.subr.mxu0 0.0
    %4180 = vmatpush1.msra.mxu0 0.0
    %4181 = vmatprep.subr.mxu0 0.0
    %4182 = vmatpush1.msra.mxu0 0.0
    %4183 = vmatprep.subr.mxu0 0.0
    %4184 = vmatpush1.msra.mxu0 0.0
    %4185 = vmatprep.subr.mxu0 0.0
    %4186 = vmatpush1.msra.mxu0 0.0
    %4187 = vmatprep.subr.mxu0 0.0
    %4188 = vmatpush1.msra.mxu0 0.0
    %4189 = vmatprep.subr.mxu0 0.0
    %4190 = vmatpush1.msra.mxu0 0.0
    %4191 = vmatprep.mubr.f32.mxu0 0.0
    %4192 = vmatmul.mubr.f32.gmra.mrb[0].mxu0 %v4125
    %v4193 = vpop.f32.mrb[0].mxu0
    %v4194 = vadd.f32 %v4122, %v4193
    %v4195 = vpop.f32.mrb[0].mxu0
    %4196 = vdwg.mxu0
    %v4197 = vadd.f32 %v2140, %v4194
    %v4198 = vadd.f32 %v4197, %v3210
    %v4199 = vsel %vm118, %v3285, 0.0
    %4200 = vadd.xlane.f32.xlu0 %v4199
    %v4201 = vpop.xlane.xlu0 %4200
    %v4202 = vmul.f32 %v4201, %v122
    %v4203 = vsub.f32 %v3285, %v4202
    %v4204 = vmul.f32 %v4203, %v4203
    %v4205 = vsel %vm118, %v4204, 0.0
    %4206 = vadd.xlane.f32.xlu0 %v4205
    %v4207 = vpop.xlane.xlu0 %4206
    %v4208 = vmul.f32 %v4207, %v122
    %v4209 = vadd.f32 %v4208, 1e-05
    %v4210 = vrsqrt.pop %v4209
    %v4211 = vmul.f32 %v4203, %v4210
    %v4213 = vlaneseq
    %v4214 = vshrl.u32 %v4213, 7
    %v4215 = vsub.s32 0, %v4214
    %v4216 = vrot.slane %v2383, %v4215
    %v4218 = vmul.f32 %v4211, %v4216
    %v4220 = vlaneseq
    %v4221 = vshrl.u32 %v4220, 7
    %v4222 = vsub.s32 0, %v4221
    %v4223 = vrot.slane %v2385, %v4222
    %v4225 = vadd.f32 %v4218, %v4223
    %v4226 = vsel %vm118, %v4198, 0.0
    %4227 = vadd.xlane.f32.xlu0 %v4226
    %v4228 = vpop.xlane.xlu0 %4227
    %v4229 = vmul.f32 %v4228, %v122
    %v4230 = vsub.f32 %v4198, %v4229
    %v4231 = vmul.f32 %v4230, %v4230
    %v4232 = vsel %vm118, %v4231, 0.0
    %4233 = vadd.xlane.f32.xlu0 %v4232
    %v4234 = vpop.xlane.xlu0 %4233
    %v4235 = vmul.f32 %v4234, %v122
    %v4236 = vadd.f32 %v4235, 1e-05
    %v4237 = vrsqrt.pop %v4236
    %v4238 = vmul.f32 %v4230, %v4237
    %v4239 = vmul.f32 %v4238, %v4216
    %v4240 = vadd.f32 %v4239, %v4223
    %v4242 = vlaneseq
    %v4243 = vshrl.u32 %v4242, 7
    %v4244 = vsub.s32 0, %v4243
    %v4245 = vrot.slane %v2406, %v4244
    %v4248 = vsel %vm118, %v4225, 0
    %v4251 = vsel %vm118, %v4240, 0
    %4253 = vmatprep.subr.mxu0 0.0
    %4254 = vmatpush1.msra.mxu0 %v2401
    %4255 = vmatprep.subr.mxu0 0.0
    %4256 = vmatpush1.msra.mxu0 %v2402
    %4257 = vmatprep.subr.mxu0 0.0
    %4258 = vmatpush1.msra.mxu0 %v2403
    %4259 = vmatprep.subr.mxu0 0.0
    %4260 = vmatpush1.msra.mxu0 %v2404
    %4261 = vmatprep.subr.mxu0 0.0
    %4262 = vmatpush1.msra.mxu0 0.0
    %4263 = vmatprep.subr.mxu0 0.0
    %4264 = vmatpush1.msra.mxu0 0.0
    %4265 = vmatprep.subr.mxu0 0.0
    %4266 = vmatpush1.msra.mxu0 0.0
    %4267 = vmatprep.subr.mxu0 0.0
    %4268 = vmatpush1.msra.mxu0 0.0
    %4269 = vmatprep.subr.mxu0 0.0
    %4270 = vmatpush1.msra.mxu0 0.0
    %4271 = vmatprep.subr.mxu0 0.0
    %4272 = vmatpush1.msra.mxu0 0.0
    %4273 = vmatprep.subr.mxu0 0.0
    %4274 = vmatpush1.msra.mxu0 0.0
    %4275 = vmatprep.subr.mxu0 0.0
    %4276 = vmatpush1.msra.mxu0 0.0
    %4277 = vmatprep.subr.mxu0 0.0
    %4278 = vmatpush1.msra.mxu0 0.0
    %4279 = vmatprep.subr.mxu0 0.0
    %4280 = vmatpush1.msra.mxu0 0.0
    %4281 = vmatprep.subr.mxu0 0.0
    %4282 = vmatpush1.msra.mxu0 0.0
    %4283 = vmatprep.subr.mxu0 0.0
    %4284 = vmatpush1.msra.mxu0 0.0
    %4285 = vmatprep.subr.mxu0 0.0
    %4286 = vmatpush1.msra.mxu0 0.0
    %4287 = vmatprep.subr.mxu0 0.0
    %4288 = vmatpush1.msra.mxu0 0.0
    %4289 = vmatprep.subr.mxu0 0.0
    %4290 = vmatpush1.msra.mxu0 0.0
    %4291 = vmatprep.subr.mxu0 0.0
    %4292 = vmatpush1.msra.mxu0 0.0
    %4293 = vmatprep.subr.mxu0 0.0
    %4294 = vmatpush1.msra.mxu0 0.0
    %4295 = vmatprep.subr.mxu0 0.0
    %4296 = vmatpush1.msra.mxu0 0.0
    %4297 = vmatprep.subr.mxu0 0.0
    %4298 = vmatpush1.msra.mxu0 0.0
    %4299 = vmatprep.subr.mxu0 0.0
    %4300 = vmatpush1.msra.mxu0 0.0
    %4301 = vmatprep.subr.mxu0 0.0
    %4302 = vmatpush1.msra.mxu0 0.0
    %4303 = vmatprep.subr.mxu0 0.0
    %4304 = vmatpush1.msra.mxu0 0.0
    %4305 = vmatprep.subr.mxu0 0.0
    %4306 = vmatpush1.msra.mxu0 0.0
    %4307 = vmatprep.subr.mxu0 0.0
    %4308 = vmatpush1.msra.mxu0 0.0
    %4309 = vmatprep.subr.mxu0 0.0
    %4310 = vmatpush1.msra.mxu0 0.0
    %4311 = vmatprep.subr.mxu0 0.0
    %4312 = vmatpush1.msra.mxu0 0.0
    %4313 = vmatprep.subr.mxu0 0.0
    %4314 = vmatpush1.msra.mxu0 0.0
    %4315 = vmatprep.subr.mxu0 0.0
    %4316 = vmatpush1.msra.mxu0 0.0
    %4317 = vmatprep.mubr.f32.mxu0 0.0
    %4318 = vmatmul.mubr.f32.gmra.mrb[0].mxu0 %v4248
    %v4319 = vpop.f32.mrb[0].mxu0
    %v4320 = vadd.f32 %v4245, %v4319
    %v4321 = vpop.f32.mrb[0].mxu0
    %4322 = vmatprep.mubr.f32.mxu0 0.0
    %4323 = vmatmul.mubr.f32.gmra.mrb[0].mxu0 %v4251
    %v4324 = vpop.f32.mrb[0].mxu0
    %v4325 = vadd.f32 %v4245, %v4324
    %v4326 = vpop.f32.mrb[0].mxu0
    %4327 = vdwg.mxu0
    %v4328 = vmul.f32 %v4320, 0.5
    %v4329 = vmul.f32 %v4325, 0.5
    %v4330 = vmul.f32 %v4320, 0.044715
    %v4331 = vmul.f32 %v4325, 0.044715
    %v4332 = vmul.f32 %v4330, %v4320
    %v4333 = vmul.f32 %v4331, %v4325
    %v4334 = vmul.f32 %v4332, %v4320
    %v4335 = vmul.f32 %v4333, %v4325
    %v4336 = vadd.f32 %v4320, %v4334
    %v4337 = vadd.f32 %v4325, %v4335
    %v4338 = vmul.f32 %v4336, 0.7978846
    %v4339 = vmul.f32 %v4337, 0.7978846
    %v4340 = vtanh.pop %v4338
    %v4341 = vtanh.pop %v4339
    %v4342 = vadd.f32 %v4340, 1.0
    %v4343 = vadd.f32 %v4341, 1.0
    %v4344 = vmul.f32 %v4328, %v4342
    %v4345 = vmul.f32 %v4329, %v4343
    %4346 = vmatprep.subr.mxu0 0.0
    %4347 = vmatpush1.msra.mxu0 %v2408
    %4348 = vmatprep.subr.mxu0 0.0
    %4349 = vmatpush1.msra.mxu0 %v2409
    %4350 = vmatprep.subr.mxu0 0.0
    %4351 = vmatpush1.msra.mxu0 %v2410
    %4352 = vmatprep.subr.mxu0 0.0
    %4353 = vmatpush1.msra.mxu0 %v2411
    %4354 = vmatprep.subr.mxu0 0.0
    %4355 = vmatpush1.msra.mxu0 %v2412
    %4356 = vmatprep.subr.mxu0 0.0
    %4357 = vmatpush1.msra.mxu0 %v2413
    %4358 = vmatprep.subr.mxu0 0.0
    %4359 = vmatpush1.msra.mxu0 %v2414
    %4360 = vmatprep.subr.mxu0 0.0
    %4361 = vmatpush1.msra.mxu0 %v2415
    %4362 = vmatprep.subr.mxu0 0.0
    %4363 = vmatpush1.msra.mxu0 %v2416
    %4364 = vmatprep.subr.mxu0 0.0
    %4365 = vmatpush1.msra.mxu0 %v2417
    %4366 = vmatprep.subr.mxu0 0.0
    %4367 = vmatpush1.msra.mxu0 %v2418
    %4368 = vmatprep.subr.mxu0 0.0
    %4369 = vmatpush1.msra.mxu0 %v2419
    %4370 = vmatprep.subr.mxu0 0.0
    %4371 = vmatpush1.msra.mxu0 %v2420
    %4372 = vmatprep.subr.mxu0 0.0
    %4373 = vmatpush1.msra.mxu0 %v2421
    %4374 = vmatprep.subr.mxu0 0.0
    %4375 = vmatpush1.msra.mxu0 %v2422
    %4376 = vmatprep.subr.mxu0 0.0
    %4377 = vmatpush1.msra.mxu0 %v2423
    %4378 = vmatprep.subr.mxu0 0.0
    %4379 = vmatpush1.msra.mxu0 0.0
    %4380 = vmatprep.subr.mxu0 0.0
    %4381 = vmatpush1.msra.mxu0 0.0
    %4382 = vmatprep.subr.mxu0 0.0
    %4383 = vmatpush1.msra.mxu0 0.0
    %4384 = vmatprep.subr.mxu0 0.0
    %4385 = vmatpush1.msra.mxu0 0.0
    %4386 = vmatprep.subr.mxu0 0.0
    %4387 = vmatpush1.msra.mxu0 0.0
    %4388 = vmatprep.subr.mxu0 0.0
    %4389 = vmatpush1.msra.mxu0 0.0
    %4390 = vmatprep.subr.mxu0 0.0
    %4391 = vmatpush1.msra.mxu0 0.0
    %4392 = vmatprep.subr.mxu0 0.0
    %4393 = vmatpush1.msra.mxu0 0.0
    %4394 = vmatprep.subr.mxu0 0.0
    %4395 = vmatpush1.msra.mxu0 0.0
    %4396 = vmatprep.subr.mxu0 0.0
    %4397 = vmatpush1.msra.mxu0 0.0
    %4398 = vmatprep.subr.mxu0 0.0
    %4399 = vmatpush1.msra.mxu0 0.0
    %4400 = vmatprep.subr.mxu0 0.0
    %4401 = vmatpush1.msra.mxu0 0.0
    %4402 = vmatprep.subr.mxu0 0.0
    %4403 = vmatpush1.msra.mxu0 0.0
    %4404 = vmatprep.subr.mxu0 0.0
    %4405 = vmatpush1.msra.mxu0 0.0
    %4406 = vmatprep.subr.mxu0 0.0
    %4407 = vmatpush1.msra.mxu0 0.0
    %4408 = vmatprep.subr.mxu0 0.0
    %4409 = vmatpush1.msra.mxu0 0.0
    %4410 = vmatprep.mubr.f32.mxu0 0.0
    %4411 = vmatmul.mubr.f32.gmra.mrb[0].mxu0 %v4344
    %v4412 = vpop.f32.mrb[0].mxu0
    %v4413 = vadd.f32 0.0, %v4412
    %v4414 = vpop.f32.mrb[0].mxu0
    %4415 = vmatprep.mubr.f32.mxu0 0.0
    %4416 = vmatmul.mubr.f32.gmra.mrb[0].mxu0 %v4345
    %v4417 = vpop.f32.mrb[0].mxu0
    %v4418 = vadd.f32 0.0, %v4417
    %v4419 = vpop.f32.mrb[0].mxu0
    %4420 = vdwg.mxu0
    %v4421 = vadd.f32 %v3285, %v4413
    %v4423 = vlaneseq
    %v4424 = vshrl.u32 %v4423, 7
    %v4425 = vsub.s32 0, %v4424
    %v4426 = vrot.slane %v2425, %v4425
    %v4428 = vadd.f32 %v4421, %v4426
    %v4429 = vadd.f32 %v4198, %v4418
    %v4430 = vadd.f32 %v4429, %v4426
    %v4431 = vsel %vm118, %v4428, 0.0
    %4432 = vadd.xlane.f32.xlu0 %v4431
    %v4433 = vpop.xlane.xlu0 %4432
    %v4434 = vmul.f32 %v4433, %v122
    %v4435 = vsub.f32 %v4428, %v4434
    %v4436 = vmul.f32 %v4435, %v4435
    %v4437 = vsel %vm118, %v4436, 0.0
    %4438 = vadd.xlane.f32.xlu0 %v4437
    %v4439 = vpop.xlane.xlu0 %4438
    %v4440 = vmul.f32 %v4439, %v122
    %v4441 = vadd.f32 %v4440, 1e-05
    %v4442 = vrsqrt.pop %v4441
    %v4443 = vmul.f32 %v4435, %v4442
    %v4444 = vmul.f32 %v4443, %v2160
    %v4445 = vadd.f32 %v4444, %v2167
    %v4446 = vsel %vm2170, %v4430, 0.0
    %4447 = vadd.xlane.f32.xlu0 %v4446
    %v4448 = vpop.xlane.xlu0 %4447
    %v4449 = vmul.f32 %v4448, %v122
    %v4450 = vsub.f32 %v4430, %v4449
    %v4451 = vmul.f32 %v4450, %v4450
    %v4452 = vsel %vm2170, %v4451, 0.0
    %4453 = vadd.xlane.f32.xlu0 %v4452
    %v4454 = vpop.xlane.xlu0 %4453
    %v4455 = vmul.f32 %v4454, %v122
    %v4456 = vadd.f32 %v4455, 1e-05
    %v4457 = vrsqrt.pop %v4456
    %v4458 = vmul.f32 %v4450, %v4457
    %v4459 = vmul.f32 %v4458, %v2160
    %v4460 = vadd.f32 %v4459, %v2167
    %v4462 = vrot.slane %v4460, 7
    %v4464 = vsel %vm118, %v4445, 0
    %v4466 = vsel %vm118, %v4462, 0
    %4468 = vmatprep.subr.mxu0 0.0
    %4469 = vmatpush1.msra.mxu0 %v77
    %4470 = vmatprep.subr.mxu0 0.0
    %4471 = vmatpush1.msra.mxu0 %v78
    %4472 = vmatprep.subr.mxu0 0.0
    %4473 = vmatpush1.msra.mxu0 %v79
    %4474 = vmatprep.subr.mxu0 0.0
    %4475 = vmatpush1.msra.mxu0 %v80
    %4476 = vmatprep.subr.mxu0 0.0
    %4477 = vmatpush1.msra.mxu0 0.0
    %4478 = vmatprep.subr.mxu0 0.0
    %4479 = vmatpush1.msra.mxu0 0.0
    %4480 = vmatprep.subr.mxu0 0.0
    %4481 = vmatpush1.msra.mxu0 0.0
    %4482 = vmatprep.subr.mxu0 0.0
    %4483 = vmatpush1.msra.mxu0 0.0
    %4484 = vmatprep.subr.mxu0 0.0
    %4485 = vmatpush1.msra.mxu0 0.0
    %4486 = vmatprep.subr.mxu0 0.0
    %4487 = vmatpush1.msra.mxu0 0.0
    %4488 = vmatprep.subr.mxu0 0.0
    %4489 = vmatpush1.msra.mxu0 0.0
    %4490 = vmatprep.subr.mxu0 0.0
    %4491 = vmatpush1.msra.mxu0 0.0
    %4492 = vmatprep.subr.mxu0 0.0
    %4493 = vmatpush1.msra.mxu0 0.0
    %4494 = vmatprep.subr.mxu0 0.0
    %4495 = vmatpush1.msra.mxu0 0.0
    %4496 = vmatprep.subr.mxu0 0.0
    %4497 = vmatpush1.msra.mxu0 0.0
    %4498 = vmatprep.subr.mxu0 0.0
    %4499 = vmatpush1.msra.mxu0 0.0
    %4500 = vmatprep.subr.mxu0 0.0
    %4501 = vmatpush1.msra.mxu0 0.0
    %4502 = vmatprep.subr.mxu0 0.0
    %4503 = vmatpush1.msra.mxu0 0.0
    %4504 = vmatprep.subr.mxu0 0.0
    %4505 = vmatpush1.msra.mxu0 0.0
    %4506 = vmatprep.subr.mxu0 0.0
    %4507 = vmatpush1.msra.mxu0 0.0
    %4508 = vmatprep.subr.mxu0 0.0
    %4509 = vmatpush1.msra.mxu0 0.0
    %4510 = vmatprep.subr.mxu0 0.0
    %4511 = vmatpush1.msra.mxu0 0.0
    %4512 = vmatprep.subr.mxu0 0.0
    %4513 = vmatpush1.msra.mxu0 0.0
    %4514 = vmatprep.subr.mxu0 0.0
    %4515 = vmatpush1.msra.mxu0 0.0
    %4516 = vmatprep.subr.mxu0 0.0
    %4517 = vmatpush1.msra.mxu0 0.0
    %4518 = vmatprep.subr.mxu0 0.0
    %4519 = vmatpush1.msra.mxu0 0.0
    %4520 = vmatprep.subr.mxu0 0.0
    %4521 = vmatpush1.msra.mxu0 0.0
    %4522 = vmatprep.subr.mxu0 0.0
    %4523 = vmatpush1.msra.mxu0 0.0
    %4524 = vmatprep.subr.mxu0 0.0
    %4525 = vmatpush1.msra.mxu0 0.0
    %4526 = vmatprep.subr.mxu0 0.0
    %4527 = vmatpush1.msra.mxu0 0.0
    %4528 = vmatprep.subr.mxu0 0.0
    %4529 = vmatpush1.msra.mxu0 0.0
    %4530 = vmatprep.subr.mxu0 0.0
    %4531 = vmatpush1.msra.mxu0 0.0
    %4532 = vmatprep.mubr.f32.mxu0 0.0
    %4533 = vmatmul.mubr.f32.gmra.mrb[0].mxu0 %v4464
    %v4534 = vpop.f32.mrb[0].mxu0
    %v4535 = vadd.f32 0.0, %v4534
    %v4536 = vpop.f32.mrb[0].mxu0
    %4537 = vmatprep.mubr.f32.mxu0 0.0
    %4538 = vmatmul.mubr.f32.gmra.mrb[0].mxu0 %v4466
    %v4539 = vpop.f32.mrb[0].mxu0
    %v4540 = vadd.f32 0.0, %v4539
    %v4541 = vpop.f32.mrb[0].mxu0
    %4542 = vdwg.mxu0
    %v4543 = vrot.slane %v4445, 7
    %v4544 = vsel %vm118, %v4543, 0
    %4546 = vmatprep.subr.mxu0 0.0
    %4547 = vmatpush1.msra.mxu0 %v77
    %4548 = vmatprep.subr.mxu0 0.0
    %4549 = vmatpush1.msra.mxu0 %v78
    %4550 = vmatprep.subr.mxu0 0.0
    %4551 = vmatpush1.msra.mxu0 %v79
    %4552 = vmatprep.subr.mxu0 0.0
    %4553 = vmatpush1.msra.mxu0 %v80
    %4554 = vmatprep.subr.mxu0 0.0
    %4555 = vmatpush1.msra.mxu0 0.0
    %4556 = vmatprep.subr.mxu0 0.0
    %4557 = vmatpush1.msra.mxu0 0.0
    %4558 = vmatprep.subr.mxu0 0.0
    %4559 = vmatpush1.msra.mxu0 0.0
    %4560 = vmatprep.subr.mxu0 0.0
    %4561 = vmatpush1.msra.mxu0 0.0
    %4562 = vmatprep.subr.mxu0 0.0
    %4563 = vmatpush1.msra.mxu0 0.0
    %4564 = vmatprep.subr.mxu0 0.0
    %4565 = vmatpush1.msra.mxu0 0.0
    %4566 = vmatprep.subr.mxu0 0.0
    %4567 = vmatpush1.msra.mxu0 0.0
    %4568 = vmatprep.subr.mxu0 0.0
    %4569 = vmatpush1.msra.mxu0 0.0
    %4570 = vmatprep.subr.mxu0 0.0
    %4571 = vmatpush1.msra.mxu0 0.0
    %4572 = vmatprep.subr.mxu0 0.0
    %4573 = vmatpush1.msra.mxu0 0.0
    %4574 = vmatprep.subr.mxu0 0.0
    %4575 = vmatpush1.msra.mxu0 0.0
    %4576 = vmatprep.subr.mxu0 0.0
    %4577 = vmatpush1.msra.mxu0 0.0
    %4578 = vmatprep.subr.mxu0 0.0
    %4579 = vmatpush1.msra.mxu0 0.0
    %4580 = vmatprep.subr.mxu0 0.0
    %4581 = vmatpush1.msra.mxu0 0.0
    %4582 = vmatprep.subr.mxu0 0.0
    %4583 = vmatpush1.msra.mxu0 0.0
    %4584 = vmatprep.subr.mxu0 0.0
    %4585 = vmatpush1.msra.mxu0 0.0
    %4586 = vmatprep.subr.mxu0 0.0
    %4587 = vmatpush1.msra.mxu0 0.0
    %4588 = vmatprep.subr.mxu0 0.0
    %4589 = vmatpush1.msra.mxu0 0.0
    %4590 = vmatprep.subr.mxu0 0.0
    %4591 = vmatpush1.msra.mxu0 0.0
    %4592 = vmatprep.subr.mxu0 0.0
    %4593 = vmatpush1.msra.mxu0 0.0
    %4594 = vmatprep.subr.mxu0 0.0
    %4595 = vmatpush1.msra.mxu0 0.0
    %4596 = vmatprep.subr.mxu0 0.0
    %4597 = vmatpush1.msra.mxu0 0.0
    %4598 = vmatprep.subr.mxu0 0.0
    %4599 = vmatpush1.msra.mxu0 0.0
    %4600 = vmatprep.subr.mxu0 0.0
    %4601 = vmatpush1.msra.mxu0 0.0
    %4602 = vmatprep.subr.mxu0 0.0
    %4603 = vmatpush1.msra.mxu0 0.0
    %4604 = vmatprep.subr.mxu0 0.0
    %4605 = vmatpush1.msra.mxu0 0.0
    %4606 = vmatprep.subr.mxu0 0.0
    %4607 = vmatpush1.msra.mxu0 0.0
    %4608 = vmatprep.subr.mxu0 0.0
    %4609 = vmatpush1.msra.mxu0 0.0
    %4610 = vmatprep.mubr.f32.mxu0 0.0
    %4611 = vmatmul.mubr.f32.gmra.mrb[0].mxu0 %v4544
    %v4612 = vpop.f32.mrb[0].mxu0
    %v4613 = vadd.f32 0.0, %v4612
    %v4614 = vpop.f32.mrb[0].mxu0
    %4615 = vdwg.mxu0
    %v4617 = vrot.slane %v4613, 1
    %v4619 = vsub.f32 %v4535, %v4617
    %v4620 = vmul.f32 %v4619, %v4619
    %v4621 = vsel %vm2346, %v4620, 0.0
    %4622 = vadd.xlane.f32.xlu0 %v4621
    %v4623 = vpop.xlane.xlu0 %4622
    %v4624 = vmul.f32 %v4623, 0.015625
    %v4626 = vrot.slane %v4540, 1
    %v4628 = vsub.f32 %v4535, %v4626
    %v4629 = vmul.f32 %v4628, %v4628
    %v4630 = vsel %vm2346, %v4629, 0.0
    %4631 = vadd.xlane.f32.xlu0 %v4630
    %v4632 = vpop.xlane.xlu0 %4631
    %v4633 = vmul.f32 %v4632, 0.015625
    %4634 = vrot.lane.b32.xlu0 %v4626, 64
    %v4635 = vpop.permute.xlu0 %4634
    %v4637 = vsel %vm2363, %v4535, %v4635
    %v4638 = vsel %vm2366, %v4633, 0.0
    %v4639 = vsel %vm2365, %v4624, %v4638
    %v4641 = vrot.slane %v4637, 7
    %v4644 = vrot.slane %v4639, 6
    %v4646 = vsel %vm2375, %v4641, %v4644
    %s4647 = scalar_lea.vmem [#allocation2], 2
    %4648 = vst [vmem:[%s4647] sm:$0x3] %v4646
    // Predicated region
    $region86: #{tpu_custom_call.1} parent=1 // pred_check
      _
    $region87: #{tpu_custom_call.1} parent=1 // pred_check_branch
      %4650 = sbr.rel (0) target = $region89
    $region88: #{tpu_custom_call.1} parent=1 // pred_region
      %s4652 = ssub.s32 64, 64
      %4653 = vsyncadd [#allocation3], %s4652
      %s4654 = sshll.u32 [#allocation2], 4
      %s4655 = int_to_ptr.vmem [resolvable:$true] %s4654
      %4660 = dma.vmem_to_hbm [thread:$0]  %s4655, 64, %s21, [#allocation3], 32, 32, 2
    $region89: #{tpu_custom_call.1} parent=1 // pred_fallthru
      _
    // Predicated region
    $region90: #{tpu_custom_call.1} parent=1 // pred_check
      _
    $region91: #{tpu_custom_call.1} parent=1 // pred_check_branch
      %4662 = sbr.rel (0) target = $region93
    $region92: #{tpu_custom_call.1} parent=1 // pred_region
      %4663 = dma.done [#allocation3], 64
    $region93: #{tpu_custom_call.1} parent=1 // pred_fallthru
      _
    %4664 = vsyncpa [#allocation3], 1

</llo_original>
